<compile_context>
chip_gen: v5e
topology: v5e:2x2
jax: 0.10.0
libtpu: 0.0.40
codegen_flags: <defaults>
</compile_context>

<pallas_src>
import numpy as np
import jax
import jax.numpy as jnp
from jax.experimental import pallas as pl
from jax.experimental.pallas import tpu as pltpu

# ---- lane-packing constants (lane index = w * C_pad + c) ----
C0P = 4                 # conv1 input channels 3 -> padded 4
C1P = 8                 # conv1 output channels 6 -> padded 8
C2P = 16                # conv2 output channels 16
L0 = 32 * C0P           # 128 lanes : input rows    (32, 128)
L1 = 28 * C1P           # 224 lanes : conv1 rows    (28, 224)
L2 = 10 * C2P           # 160 lanes : conv2 rows    (10, 160)
P1S = 2 * C1P           # 16 : lane stride of one pooled-w unit in pool1 (uncompacted) space
P2S = 2 * C2P           # 32 : lane stride of one pooled-w unit in pool2 (uncompacted) space
FCP = 128               # fc feature lanes (120/84/10 -> padded 128)


# ---------------- fused per-image kernel ----------------

def lenet_fused_kernel(x_ref, cw1_ref, cb1_ref, s14e_ref, s14o_ref, r1_ref,
                       cw2_ref, cb2_ref, s5e_ref, s5o_ref, r2_ref,
                       f1_ref, fb1_ref, w2_ref, fb2_ref, w3_ref, fb3_ref,
                       o_ref, p1_ref, p2_ref):
    f32 = jnp.float32

    # ---- conv1 (5x5 valid) as 5 row-shifted matmuls + bias + relu ----
    z1 = jnp.zeros((28, L1), f32)
    for i in range(5):
        z1 = z1 + jnp.dot(x_ref[0, i:i + 28, :], cw1_ref[i],
                          preferred_element_type=f32)
    z1 = jnp.maximum(z1 + cb1_ref[...], 0.0)                       # (28, 224)

    # ---- maxpool1 2x2 : lane-shift max (w dir) then row-select max (h dir) ----
    wm1 = jnp.maximum(z1, jnp.dot(z1, r1_ref[...], preferred_element_type=f32))
    p1_ref[...] = jnp.maximum(
        jnp.dot(s14e_ref[...], wm1, preferred_element_type=f32),
        jnp.dot(s14o_ref[...], wm1, preferred_element_type=f32))   # (14, 224)

    # ---- conv2 + bias + relu ----
    z2 = jnp.zeros((10, L2), f32)
    for i in range(5):
        z2 = z2 + jnp.dot(p1_ref[i:i + 10, :], cw2_ref[i],
                          preferred_element_type=f32)
    z2 = jnp.maximum(z2 + cb2_ref[...], 0.0)                       # (10, 160)

    # ---- maxpool2 ----
    wm2 = jnp.maximum(z2, jnp.dot(z2, r2_ref[...], preferred_element_type=f32))
    p2_ref[...] = jnp.maximum(
        jnp.dot(s5e_ref[...], wm2, preferred_element_type=f32),
        jnp.dot(s5o_ref[...], wm2, preferred_element_type=f32))    # (5, 160)

    # ---- fc1 (CHW flatten folded into per-row weight slabs) + sigmoid ----
    y = fb1_ref[...]                                               # (1, 128)
    for h in range(5):
        y = y + jnp.dot(p2_ref[h:h + 1, :], f1_ref[h], preferred_element_type=f32)
    y = pl.reciprocal(1.0 + jnp.exp(-y), approx=True)

    # ---- fc2 + sigmoid ----
    y = jnp.dot(y, w2_ref[...], preferred_element_type=f32) + fb2_ref[...]
    y = pl.reciprocal(1.0 + jnp.exp(-y), approx=True)

    # ---- fc3 (linear) ----
    y = jnp.dot(y, w3_ref[...], preferred_element_type=f32) + fb3_ref[...]
    o_ref[0] = y.astype(o_ref.dtype)


# ---------------- wrapper ----------------

def net_forward(x, packed):
    n = x.shape[0]
    # Layout-only prep of the raw input (one-time, tiny): NCHW -> NHWC, pad C 3->4,
    # pack (w, c) into lanes -> (N, 32, 128).
    x2d = jnp.pad(jnp.transpose(x, (0, 2, 3, 1)),
                  ((0, 0), (0, 0), (0, 0), (0, C0P - 3)))
    x2d = x2d.reshape(n, 32, L0)

    def const_spec(arr):
        nd = arr.ndim
        return pl.BlockSpec(arr.shape, lambda i, _nd=nd: (0,) * _nd)

    in_specs = [pl.BlockSpec((1, 32, L0), lambda i: (i, 0, 0))]
    in_specs += [const_spec(a) for a in packed]

    out = pl.pallas_call(
        lenet_fused_kernel,
        out_shape=jax.ShapeDtypeStruct((n, 1, FCP), jnp.float32),
        grid_spec=pltpu.PrefetchScalarGridSpec(
            num_scalar_prefetch=0,
            grid=(n,),
            in_specs=in_specs,
            out_specs=pl.BlockSpec((1, 1, FCP), lambda i: (i, 0, 0)),
            scratch_shapes=[pltpu.VMEM((14, L1), jnp.float32),   # pool1 activations
                            pltpu.VMEM((5, L2), jnp.float32)],   # pool2 activations
        ),
        compiler_params=pltpu.CompilerParams(
            dimension_semantics=("parallel",)),
    )(x2d, *packed)
    return out.reshape(n, FCP)[:, :10]


# ---------------- host-side weight packing (one-time) ----------------

def pack_params(params):
    w1 = np.asarray(params["conv1_w"], np.float32)   # (6, 3, 5, 5)
    b1 = np.asarray(params["conv1_b"], np.float32)
    w2 = np.asarray(params["conv2_w"], np.float32)   # (16, 6, 5, 5)
    b2 = np.asarray(params["conv2_b"], np.float32)
    f1w = np.asarray(params["fc1_w"], np.float32)    # (120, 400)
    f1b = np.asarray(params["fc1_b"], np.float32)
    f2w = np.asarray(params["fc2_w"], np.float32)    # (84, 120)
    f2b = np.asarray(params["fc2_b"], np.float32)
    f3w = np.asarray(params["fc3_w"], np.float32)    # (10, 84)
    f3b = np.asarray(params["fc3_b"], np.float32)

    # conv1 block weights: cw1[i, (w+j)*4 + c, w*8 + o] = w1[o, c, i, j]
    cw1 = np.zeros((5, L0, L1), np.float32)
    for i in range(5):
        for j in range(5):
            blk = w1[:, :, i, j].T                   # (c=3, o=6)
            for w in range(28):
                cw1[i, (w + j) * C0P:(w + j) * C0P + 3, w * C1P:w * C1P + 6] = blk
    cb1 = np.zeros((1, L1), np.float32)
    for w in range(28):
        cb1[0, w * C1P:w * C1P + 6] = b1

    # conv2 block weights against pool1's uncompacted lane space:
    # cw2[i, (w+j)*16 + c, w*16 + o] = w2[o, c, i, j]
    cw2 = np.zeros((5, L1, L2), np.float32)
    for i in range(5):
        for j in range(5):
            blk = w2[:, :, i, j].T                   # (c=6, o=16)
            for w in range(10):
                cw2[i, (w + j) * P1S:(w + j) * P1S + 6, w * C2P:w * C2P + 16] = blk
    cb2 = np.zeros((1, L2), np.float32)
    for w in range(10):
        cb2[0, w * C2P:w * C2P + 16] = b2

    # row-pair selection matrices for the h-direction of maxpool
    def even_odd(nout, nin):
        e = np.zeros((nout, nin), np.float32)
        o = np.zeros((nout, nin), np.float32)
        e[np.arange(nout), 2 * np.arange(nout)] = 1.0
        o[np.arange(nout), 2 * np.arange(nout) + 1] = 1.0
        return e, o
    s14e, s14o = even_odd(14, 28)
    s5e, s5o = even_odd(5, 10)

    # lane-shift matrices for the w-direction of maxpool: (z @ r)[:, l] = z[:, l + shift]
    def lane_shift(width, shift):
        r = np.zeros((width, width), np.float32)
        r[np.arange(shift, width), np.arange(0, width - shift)] = 1.0
        return r
    r1 = lane_shift(L1, C1P)
    r2 = lane_shift(L2, C2P)

    # fc1 with the PyTorch (C,H,W) flatten folded in; pool2 lane space: lane = 32*w + c
    f1 = np.zeros((5, L2, FCP), np.float32)
    fw = f1w.reshape(120, 16, 5, 5)                  # (o, c, h, w)
    for h in range(5):
        for w in range(5):
            f1[h, w * P2S:w * P2S + 16, :120] = fw[:, :, h, w].T   # (c=16, o=120)
    fb1 = np.zeros((1, FCP), np.float32); fb1[0, :120] = f1b

    w2p = np.zeros((FCP, FCP), np.float32); w2p[:120, :84] = f2w.T
    fb2 = np.zeros((1, FCP), np.float32); fb2[0, :84] = f2b
    w3p = np.zeros((FCP, FCP), np.float32); w3p[:84, :10] = f3w.T
    fb3 = np.zeros((1, FCP), np.float32); fb3[0, :10] = f3b

    arrs = (cw1, cb1, s14e, s14o, r1, cw2, cb2, s5e, s5o, r2,
            f1, fb1, w2p, fb2, w3p, fb3)
    return tuple(jnp.asarray(a) for a in arrs)


# ---------------- deterministic parameter init (PyTorch-style bounds) ----------------

def init_params(key):
    def uni(k, shape, fan_in):
        bound = 1.0 / jnp.sqrt(jnp.float32(fan_in))
        return jax.random.uniform(k, shape, jnp.float32, -bound, bound)

    ks = jax.random.split(key, 10)
    return {
        "conv1_w": uni(ks[0], (6, 3, 5, 5), 3 * 5 * 5),
        "conv1_b": uni(ks[1], (6,), 3 * 5 * 5),
        "conv2_w": uni(ks[2], (16, 6, 5, 5), 6 * 5 * 5),
        "conv2_b": uni(ks[3], (16,), 6 * 5 * 5),
        "fc1_w": uni(ks[4], (120, 400), 400),
        "fc1_b": uni(ks[5], (120,), 400),
        "fc2_w": uni(ks[6], (84, 120), 120),
        "fc2_b": uni(ks[7], (84,), 120),
        "fc3_w": uni(ks[8], (10, 84), 84),
        "fc3_b": uni(ks[9], (10,), 84),
    }


# ---------------- pure-JAX reference (for a sanity check only) ----------------

def reference_forward(x, params):
    dn = ("NCHW", "OIHW", "NCHW")

    def pool(y):
        n, c, h, w = y.shape
        return y.reshape(n, c, h // 2, 2, w // 2, 2).max(axis=(3, 5))

    y = jax.lax.conv_general_dilated(x, params["conv1_w"], (1, 1), "VALID",
                                     dimension_numbers=dn)
    y = pool(jnp.maximum(y + params["conv1_b"][None, :, None, None], 0.0))
    y = jax.lax.conv_general_dilated(y, params["conv2_w"], (1, 1), "VALID",
                                     dimension_numbers=dn)
    y = pool(jnp.maximum(y + params["conv2_b"][None, :, None, None], 0.0))
    y = y.reshape(y.shape[0], -1)
    y = jax.nn.sigmoid(y @ params["fc1_w"].T + params["fc1_b"])
    y = jax.nn.sigmoid(y @ params["fc2_w"].T + params["fc2_b"])
    return y @ params["fc3_w"].T + params["fc3_b"]


if __name__ == "__main__":
    key = jax.random.PRNGKey(0)
    k_x, k_p = jax.random.split(key)
    # Architecture requires 32x32 spatial input (so the flatten is exactly 16*5*5).
    x = jax.random.normal(k_x, (2, 3, 32, 32), dtype=jnp.float32)
    params = init_params(k_p)
    packed = pack_params(params)

    out = jax.block_until_ready(jax.jit(net_forward)(x, packed))
    assert out.shape == (2, 10) and bool(jnp.all(jnp.isfinite(out)))

    # loose tolerance: kernel sigmoid uses the approximate EUP reciprocal
    ref = jax.block_until_ready(jax.jit(reference_forward)(x, params))
    assert float(jnp.max(jnp.abs(out - ref))) < 0.1

    print("KERNEL_OK")
</pallas_src>

<mosaic_0001>
module attributes {stable_mosaic.version = 11 : i64} {
  func.func @lenet_fused_kernel(%arg0: i32, %arg1: memref<1x32x128xf32, #tpu.memory_space<vmem>>, %arg2: memref<5x128x224xf32, #tpu.memory_space<vmem>>, %arg3: memref<1x224xf32, #tpu.memory_space<vmem>>, %arg4: memref<14x28xf32, #tpu.memory_space<vmem>>, %arg5: memref<14x28xf32, #tpu.memory_space<vmem>>, %arg6: memref<224x224xf32, #tpu.memory_space<vmem>>, %arg7: memref<5x224x160xf32, #tpu.memory_space<vmem>>, %arg8: memref<1x160xf32, #tpu.memory_space<vmem>>, %arg9: memref<5x10xf32, #tpu.memory_space<vmem>>, %arg10: memref<5x10xf32, #tpu.memory_space<vmem>>, %arg11: memref<160x160xf32, #tpu.memory_space<vmem>>, %arg12: memref<5x160x128xf32, #tpu.memory_space<vmem>>, %arg13: memref<1x128xf32, #tpu.memory_space<vmem>>, %arg14: memref<128x128xf32, #tpu.memory_space<vmem>>, %arg15: memref<1x128xf32, #tpu.memory_space<vmem>>, %arg16: memref<128x128xf32, #tpu.memory_space<vmem>>, %arg17: memref<1x128xf32, #tpu.memory_space<vmem>>, %arg18: memref<1x1x128xf32, #tpu.memory_space<vmem>>, %arg19: memref<14x224xf32, #tpu.memory_space<vmem>>, %arg20: memref<5x160xf32, #tpu.memory_space<vmem>>) attributes {dimension_semantics = [#tpu.dimension_semantics<parallel>], iteration_bounds = array<i64: 2>, scalar_prefetch = 0 : i64, scratch_operands = 2 : i64, tpu.core_type = #tpu.core_type<tc>, window_params = [{transform_indices = @transform_0, window_bounds = array<i64: 1, 32, 128>}, {pipeline_mode = #tpu.pipeline_mode<synchronous>, transform_indices = @transform_1, window_bounds = array<i64: 5, 128, 224>}, {pipeline_mode = #tpu.pipeline_mode<synchronous>, transform_indices = @transform_2, window_bounds = array<i64: 1, 224>}, {pipeline_mode = #tpu.pipeline_mode<synchronous>, transform_indices = @transform_3, window_bounds = array<i64: 14, 28>}, {pipeline_mode = #tpu.pipeline_mode<synchronous>, transform_indices = @transform_4, window_bounds = array<i64: 14, 28>}, {pipeline_mode = #tpu.pipeline_mode<synchronous>, transform_indices = @transform_5, window_bounds = array<i64: 224, 224>}, {pipeline_mode = #tpu.pipeline_mode<synchronous>, transform_indices = @transform_6, window_bounds = array<i64: 5, 224, 160>}, {pipeline_mode = #tpu.pipeline_mode<synchronous>, transform_indices = @transform_7, window_bounds = array<i64: 1, 160>}, {pipeline_mode = #tpu.pipeline_mode<synchronous>, transform_indices = @transform_8, window_bounds = array<i64: 5, 10>}, {pipeline_mode = #tpu.pipeline_mode<synchronous>, transform_indices = @transform_9, window_bounds = array<i64: 5, 10>}, {pipeline_mode = #tpu.pipeline_mode<synchronous>, transform_indices = @transform_10, window_bounds = array<i64: 160, 160>}, {pipeline_mode = #tpu.pipeline_mode<synchronous>, transform_indices = @transform_11, window_bounds = array<i64: 5, 160, 128>}, {pipeline_mode = #tpu.pipeline_mode<synchronous>, transform_indices = @transform_12, window_bounds = array<i64: 1, 128>}, {pipeline_mode = #tpu.pipeline_mode<synchronous>, transform_indices = @transform_13, window_bounds = array<i64: 128, 128>}, {pipeline_mode = #tpu.pipeline_mode<synchronous>, transform_indices = @transform_14, window_bounds = array<i64: 1, 128>}, {pipeline_mode = #tpu.pipeline_mode<synchronous>, transform_indices = @transform_15, window_bounds = array<i64: 128, 128>}, {pipeline_mode = #tpu.pipeline_mode<synchronous>, transform_indices = @transform_16, window_bounds = array<i64: 1, 128>}, {transform_indices = @transform_17, window_bounds = array<i64: 1, 1, 128>}]} {
    %cst = arith.constant 0.000000e+00 : f32
    %0 = vector.broadcast %cst : f32 to vector<28x224xf32>
    %c0 = arith.constant 0 : index
    %c0_0 = arith.constant 0 : index
    %c0_1 = arith.constant 0 : index
    %1 = vector.load %arg1[%c0, %c0_0, %c0_1] : memref<1x32x128xf32, #tpu.memory_space<vmem>>, vector<1x28x128xf32>
    %2 = vector.shape_cast %1 : vector<1x28x128xf32> to vector<28x128xf32>
    %c0_2 = arith.constant 0 : index
    %c0_3 = arith.constant 0 : index
    %c0_4 = arith.constant 0 : index
    %3 = vector.load %arg2[%c0_2, %c0_3, %c0_4] : memref<5x128x224xf32, #tpu.memory_space<vmem>>, vector<1x128x224xf32>
    %4 = vector.shape_cast %3 : vector<1x128x224xf32> to vector<128x224xf32>
    %cst_5 = arith.constant dense<0.000000e+00> : vector<28x224xf32>
    %5 = tpu.matmul %2, %4, %cst_5 {dimension_numbers = #tpu.dot_dimension_numbers<[1], [0], [0], [1], [0, 0, 1, 1], [], []>} : vector<28x128xf32>, vector<128x224xf32>, vector<28x224xf32> -> vector<28x224xf32>
    %6 = arith.addf %0, %5 : vector<28x224xf32>
    %c0_6 = arith.constant 0 : index
    %c1 = arith.constant 1 : index
    %c0_7 = arith.constant 0 : index
    %7 = vector.load %arg1[%c0_6, %c1, %c0_7] : memref<1x32x128xf32, #tpu.memory_space<vmem>>, vector<1x28x128xf32>
    %8 = vector.shape_cast %7 : vector<1x28x128xf32> to vector<28x128xf32>
    %c1_8 = arith.constant 1 : index
    %c0_9 = arith.constant 0 : index
    %c0_10 = arith.constant 0 : index
    %9 = vector.load %arg2[%c1_8, %c0_9, %c0_10] : memref<5x128x224xf32, #tpu.memory_space<vmem>>, vector<1x128x224xf32>
    %10 = vector.shape_cast %9 : vector<1x128x224xf32> to vector<128x224xf32>
    %cst_11 = arith.constant dense<0.000000e+00> : vector<28x224xf32>
    %11 = tpu.matmul %8, %10, %cst_11 {dimension_numbers = #tpu.dot_dimension_numbers<[1], [0], [0], [1], [0, 0, 1, 1], [], []>} : vector<28x128xf32>, vector<128x224xf32>, vector<28x224xf32> -> vector<28x224xf32>
    %12 = arith.addf %6, %11 : vector<28x224xf32>
    %c0_12 = arith.constant 0 : index
    %c2 = arith.constant 2 : index
    %c0_13 = arith.constant 0 : index
    %13 = vector.load %arg1[%c0_12, %c2, %c0_13] : memref<1x32x128xf32, #tpu.memory_space<vmem>>, vector<1x28x128xf32>
    %14 = vector.shape_cast %13 : vector<1x28x128xf32> to vector<28x128xf32>
    %c2_14 = arith.constant 2 : index
    %c0_15 = arith.constant 0 : index
    %c0_16 = arith.constant 0 : index
    %15 = vector.load %arg2[%c2_14, %c0_15, %c0_16] : memref<5x128x224xf32, #tpu.memory_space<vmem>>, vector<1x128x224xf32>
    %16 = vector.shape_cast %15 : vector<1x128x224xf32> to vector<128x224xf32>
    %cst_17 = arith.constant dense<0.000000e+00> : vector<28x224xf32>
    %17 = tpu.matmul %14, %16, %cst_17 {dimension_numbers = #tpu.dot_dimension_numbers<[1], [0], [0], [1], [0, 0, 1, 1], [], []>} : vector<28x128xf32>, vector<128x224xf32>, vector<28x224xf32> -> vector<28x224xf32>
    %18 = arith.addf %12, %17 : vector<28x224xf32>
    %c0_18 = arith.constant 0 : index
    %c3 = arith.constant 3 : index
    %c0_19 = arith.constant 0 : index
    %19 = vector.load %arg1[%c0_18, %c3, %c0_19] : memref<1x32x128xf32, #tpu.memory_space<vmem>>, vector<1x28x128xf32>
    %20 = vector.shape_cast %19 : vector<1x28x128xf32> to vector<28x128xf32>
    %c3_20 = arith.constant 3 : index
    %c0_21 = arith.constant 0 : index
    %c0_22 = arith.constant 0 : index
    %21 = vector.load %arg2[%c3_20, %c0_21, %c0_22] : memref<5x128x224xf32, #tpu.memory_space<vmem>>, vector<1x128x224xf32>
    %22 = vector.shape_cast %21 : vector<1x128x224xf32> to vector<128x224xf32>
    %cst_23 = arith.constant dense<0.000000e+00> : vector<28x224xf32>
    %23 = tpu.matmul %20, %22, %cst_23 {dimension_numbers = #tpu.dot_dimension_numbers<[1], [0], [0], [1], [0, 0, 1, 1], [], []>} : vector<28x128xf32>, vector<128x224xf32>, vector<28x224xf32> -> vector<28x224xf32>
    %24 = arith.addf %18, %23 : vector<28x224xf32>
    %c0_24 = arith.constant 0 : index
    %c4 = arith.constant 4 : index
    %c0_25 = arith.constant 0 : index
    %25 = vector.load %arg1[%c0_24, %c4, %c0_25] : memref<1x32x128xf32, #tpu.memory_space<vmem>>, vector<1x28x128xf32>
    %26 = vector.shape_cast %25 : vector<1x28x128xf32> to vector<28x128xf32>
    %c4_26 = arith.constant 4 : index
    %c0_27 = arith.constant 0 : index
    %c0_28 = arith.constant 0 : index
    %27 = vector.load %arg2[%c4_26, %c0_27, %c0_28] : memref<5x128x224xf32, #tpu.memory_space<vmem>>, vector<1x128x224xf32>
    %28 = vector.shape_cast %27 : vector<1x128x224xf32> to vector<128x224xf32>
    %cst_29 = arith.constant dense<0.000000e+00> : vector<28x224xf32>
    %29 = tpu.matmul %26, %28, %cst_29 {dimension_numbers = #tpu.dot_dimension_numbers<[1], [0], [0], [1], [0, 0, 1, 1], [], []>} : vector<28x128xf32>, vector<128x224xf32>, vector<28x224xf32> -> vector<28x224xf32>
    %30 = arith.addf %24, %29 : vector<28x224xf32>
    %c0_30 = arith.constant 0 : index
    %c0_31 = arith.constant 0 : index
    %31 = vector.load %arg3[%c0_30, %c0_31] : memref<1x224xf32, #tpu.memory_space<vmem>>, vector<1x224xf32>
    %32 = vector.broadcast %31 : vector<1x224xf32> to vector<28x224xf32>
    %33 = arith.addf %30, %32 : vector<28x224xf32>
    %cst_32 = arith.constant 0.000000e+00 : f32
    %34 = vector.broadcast %cst_32 : f32 to vector<28x224xf32>
    %35 = arith.maximumf %33, %34 : vector<28x224xf32>
    %c0_33 = arith.constant 0 : index
    %c0_34 = arith.constant 0 : index
    %36 = vector.load %arg6[%c0_33, %c0_34] : memref<224x224xf32, #tpu.memory_space<vmem>>, vector<224x224xf32>
    %cst_35 = arith.constant dense<0.000000e+00> : vector<28x224xf32>
    %37 = tpu.matmul %35, %36, %cst_35 {dimension_numbers = #tpu.dot_dimension_numbers<[1], [0], [0], [1], [0, 0, 1, 1], [], []>} : vector<28x224xf32>, vector<224x224xf32>, vector<28x224xf32> -> vector<28x224xf32>
    %38 = arith.maximumf %35, %37 : vector<28x224xf32>
    %c0_36 = arith.constant 0 : index
    %c0_37 = arith.constant 0 : index
    %39 = vector.load %arg4[%c0_36, %c0_37] : memref<14x28xf32, #tpu.memory_space<vmem>>, vector<14x28xf32>
    %cst_38 = arith.constant dense<0.000000e+00> : vector<14x224xf32>
    %40 = tpu.matmul %39, %38, %cst_38 {dimension_numbers = #tpu.dot_dimension_numbers<[1], [0], [0], [1], [0, 0, 1, 1], [], []>} : vector<14x28xf32>, vector<28x224xf32>, vector<14x224xf32> -> vector<14x224xf32>
    %c0_39 = arith.constant 0 : index
    %c0_40 = arith.constant 0 : index
    %41 = vector.load %arg5[%c0_39, %c0_40] : memref<14x28xf32, #tpu.memory_space<vmem>>, vector<14x28xf32>
    %cst_41 = arith.constant dense<0.000000e+00> : vector<14x224xf32>
    %42 = tpu.matmul %41, %38, %cst_41 {dimension_numbers = #tpu.dot_dimension_numbers<[1], [0], [0], [1], [0, 0, 1, 1], [], []>} : vector<14x28xf32>, vector<28x224xf32>, vector<14x224xf32> -> vector<14x224xf32>
    %43 = arith.maximumf %40, %42 : vector<14x224xf32>
    %c0_42 = arith.constant 0 : index
    %c0_43 = arith.constant 0 : index
    %44 = vector.load %arg19[%c0_42, %c0_43] : memref<14x224xf32, #tpu.memory_space<vmem>>, vector<14x224xf32>
    tpu.vector_store %arg19[%c0_42, %c0_43], %43 {strides = array<i32>} : memref<14x224xf32, #tpu.memory_space<vmem>>, vector<14x224xf32>,
    %cst_44 = arith.constant 0.000000e+00 : f32
    %45 = vector.broadcast %cst_44 : f32 to vector<10x160xf32>
    %c0_45 = arith.constant 0 : index
    %c0_46 = arith.constant 0 : index
    %46 = vector.load %arg19[%c0_45, %c0_46] : memref<14x224xf32, #tpu.memory_space<vmem>>, vector<10x224xf32>
    %c0_47 = arith.constant 0 : index
    %c0_48 = arith.constant 0 : index
    %c0_49 = arith.constant 0 : index
    %47 = vector.load %arg7[%c0_47, %c0_48, %c0_49] : memref<5x224x160xf32, #tpu.memory_space<vmem>>, vector<1x224x160xf32>
    %48 = vector.shape_cast %47 : vector<1x224x160xf32> to vector<224x160xf32>
    %cst_50 = arith.constant dense<0.000000e+00> : vector<10x160xf32>
    %49 = tpu.matmul %46, %48, %cst_50 {dimension_numbers = #tpu.dot_dimension_numbers<[1], [0], [0], [1], [0, 0, 1, 1], [], []>} : vector<10x224xf32>, vector<224x160xf32>, vector<10x160xf32> -> vector<10x160xf32>
    %50 = arith.addf %45, %49 : vector<10x160xf32>
    %c1_51 = arith.constant 1 : index
    %c0_52 = arith.constant 0 : index
    %51 = vector.load %arg19[%c1_51, %c0_52] : memref<14x224xf32, #tpu.memory_space<vmem>>, vector<10x224xf32>
    %c1_53 = arith.constant 1 : index
    %c0_54 = arith.constant 0 : index
    %c0_55 = arith.constant 0 : index
    %52 = vector.load %arg7[%c1_53, %c0_54, %c0_55] : memref<5x224x160xf32, #tpu.memory_space<vmem>>, vector<1x224x160xf32>
    %53 = vector.shape_cast %52 : vector<1x224x160xf32> to vector<224x160xf32>
    %cst_56 = arith.constant dense<0.000000e+00> : vector<10x160xf32>
    %54 = tpu.matmul %51, %53, %cst_56 {dimension_numbers = #tpu.dot_dimension_numbers<[1], [0], [0], [1], [0, 0, 1, 1], [], []>} : vector<10x224xf32>, vector<224x160xf32>, vector<10x160xf32> -> vector<10x160xf32>
    %55 = arith.addf %50, %54 : vector<10x160xf32>
    %c2_57 = arith.constant 2 : index
    %c0_58 = arith.constant 0 : index
    %56 = vector.load %arg19[%c2_57, %c0_58] : memref<14x224xf32, #tpu.memory_space<vmem>>, vector<10x224xf32>
    %c2_59 = arith.constant 2 : index
    %c0_60 = arith.constant 0 : index
    %c0_61 = arith.constant 0 : index
    %57 = vector.load %arg7[%c2_59, %c0_60, %c0_61] : memref<5x224x160xf32, #tpu.memory_space<vmem>>, vector<1x224x160xf32>
    %58 = vector.shape_cast %57 : vector<1x224x160xf32> to vector<224x160xf32>
    %cst_62 = arith.constant dense<0.000000e+00> : vector<10x160xf32>
    %59 = tpu.matmul %56, %58, %cst_62 {dimension_numbers = #tpu.dot_dimension_numbers<[1], [0], [0], [1], [0, 0, 1, 1], [], []>} : vector<10x224xf32>, vector<224x160xf32>, vector<10x160xf32> -> vector<10x160xf32>
    %60 = arith.addf %55, %59 : vector<10x160xf32>
    %c3_63 = arith.constant 3 : index
    %c0_64 = arith.constant 0 : index
    %61 = vector.load %arg19[%c3_63, %c0_64] : memref<14x224xf32, #tpu.memory_space<vmem>>, vector<10x224xf32>
    %c3_65 = arith.constant 3 : index
    %c0_66 = arith.constant 0 : index
    %c0_67 = arith.constant 0 : index
    %62 = vector.load %arg7[%c3_65, %c0_66, %c0_67] : memref<5x224x160xf32, #tpu.memory_space<vmem>>, vector<1x224x160xf32>
    %63 = vector.shape_cast %62 : vector<1x224x160xf32> to vector<224x160xf32>
    %cst_68 = arith.constant dense<0.000000e+00> : vector<10x160xf32>
    %64 = tpu.matmul %61, %63, %cst_68 {dimension_numbers = #tpu.dot_dimension_numbers<[1], [0], [0], [1], [0, 0, 1, 1], [], []>} : vector<10x224xf32>, vector<224x160xf32>, vector<10x160xf32> -> vector<10x160xf32>
    %65 = arith.addf %60, %64 : vector<10x160xf32>
    %c4_69 = arith.constant 4 : index
    %c0_70 = arith.constant 0 : index
    %66 = vector.load %arg19[%c4_69, %c0_70] : memref<14x224xf32, #tpu.memory_space<vmem>>, vector<10x224xf32>
    %c4_71 = arith.constant 4 : index
    %c0_72 = arith.constant 0 : index
    %c0_73 = arith.constant 0 : index
    %67 = vector.load %arg7[%c4_71, %c0_72, %c0_73] : memref<5x224x160xf32, #tpu.memory_space<vmem>>, vector<1x224x160xf32>
    %68 = vector.shape_cast %67 : vector<1x224x160xf32> to vector<224x160xf32>
    %cst_74 = arith.constant dense<0.000000e+00> : vector<10x160xf32>
    %69 = tpu.matmul %66, %68, %cst_74 {dimension_numbers = #tpu.dot_dimension_numbers<[1], [0], [0], [1], [0, 0, 1, 1], [], []>} : vector<10x224xf32>, vector<224x160xf32>, vector<10x160xf32> -> vector<10x160xf32>
    %70 = arith.addf %65, %69 : vector<10x160xf32>
    %c0_75 = arith.constant 0 : index
    %c0_76 = arith.constant 0 : index
    %71 = vector.load %arg8[%c0_75, %c0_76] : memref<1x160xf32, #tpu.memory_space<vmem>>, vector<1x160xf32>
    %72 = vector.broadcast %71 : vector<1x160xf32> to vector<10x160xf32>
    %73 = arith.addf %70, %72 : vector<10x160xf32>
    %cst_77 = arith.constant 0.000000e+00 : f32
    %74 = vector.broadcast %cst_77 : f32 to vector<10x160xf32>
    %75 = arith.maximumf %73, %74 : vector<10x160xf32>
    %c0_78 = arith.constant 0 : index
    %c0_79 = arith.constant 0 : index
    %76 = vector.load %arg11[%c0_78, %c0_79] : memref<160x160xf32, #tpu.memory_space<vmem>>, vector<160x160xf32>
    %cst_80 = arith.constant dense<0.000000e+00> : vector<10x160xf32>
    %77 = tpu.matmul %75, %76, %cst_80 {dimension_numbers = #tpu.dot_dimension_numbers<[1], [0], [0], [1], [0, 0, 1, 1], [], []>} : vector<10x160xf32>, vector<160x160xf32>, vector<10x160xf32> -> vector<10x160xf32>
    %78 = arith.maximumf %75, %77 : vector<10x160xf32>
    %c0_81 = arith.constant 0 : index
    %c0_82 = arith.constant 0 : index
    %79 = vector.load %arg9[%c0_81, %c0_82] : memref<5x10xf32, #tpu.memory_space<vmem>>, vector<5x10xf32>
    %cst_83 = arith.constant dense<0.000000e+00> : vector<5x160xf32>
    %80 = tpu.matmul %79, %78, %cst_83 {dimension_numbers = #tpu.dot_dimension_numbers<[1], [0], [0], [1], [0, 0, 1, 1], [], []>} : vector<5x10xf32>, vector<10x160xf32>, vector<5x160xf32> -> vector<5x160xf32>
    %c0_84 = arith.constant 0 : index
    %c0_85 = arith.constant 0 : index
    %81 = vector.load %arg10[%c0_84, %c0_85] : memref<5x10xf32, #tpu.memory_space<vmem>>, vector<5x10xf32>
    %cst_86 = arith.constant dense<0.000000e+00> : vector<5x160xf32>
    %82 = tpu.matmul %81, %78, %cst_86 {dimension_numbers = #tpu.dot_dimension_numbers<[1], [0], [0], [1], [0, 0, 1, 1], [], []>} : vector<5x10xf32>, vector<10x160xf32>, vector<5x160xf32> -> vector<5x160xf32>
    %83 = arith.maximumf %80, %82 : vector<5x160xf32>
    %c0_87 = arith.constant 0 : index
    %c0_88 = arith.constant 0 : index
    %84 = vector.load %arg20[%c0_87, %c0_88] : memref<5x160xf32, #tpu.memory_space<vmem>>, vector<5x160xf32>
    tpu.vector_store %arg20[%c0_87, %c0_88], %83 {strides = array<i32>} : memref<5x160xf32, #tpu.memory_space<vmem>>, vector<5x160xf32>,
    %c0_89 = arith.constant 0 : index
    %c0_90 = arith.constant 0 : index
    %85 = vector.load %arg13[%c0_89, %c0_90] : memref<1x128xf32, #tpu.memory_space<vmem>>, vector<1x128xf32>
    %c0_91 = arith.constant 0 : index
    %c0_92 = arith.constant 0 : index
    %86 = vector.load %arg20[%c0_91, %c0_92] : memref<5x160xf32, #tpu.memory_space<vmem>>, vector<1x160xf32>
    %c0_93 = arith.constant 0 : index
    %c0_94 = arith.constant 0 : index
    %c0_95 = arith.constant 0 : index
    %87 = vector.load %arg12[%c0_93, %c0_94, %c0_95] : memref<5x160x128xf32, #tpu.memory_space<vmem>>, vector<1x160x128xf32>
    %88 = vector.shape_cast %87 : vector<1x160x128xf32> to vector<160x128xf32>
    %cst_96 = arith.constant dense<0.000000e+00> : vector<1x128xf32>
    %89 = tpu.matmul %86, %88, %cst_96 {dimension_numbers = #tpu.dot_dimension_numbers<[1], [0], [0], [1], [0, 0, 1, 1], [], []>} : vector<1x160xf32>, vector<160x128xf32>, vector<1x128xf32> -> vector<1x128xf32>
    %90 = arith.addf %85, %89 : vector<1x128xf32>
    %c1_97 = arith.constant 1 : index
    %c0_98 = arith.constant 0 : index
    %91 = vector.load %arg20[%c1_97, %c0_98] : memref<5x160xf32, #tpu.memory_space<vmem>>, vector<1x160xf32>
    %c1_99 = arith.constant 1 : index
    %c0_100 = arith.constant 0 : index
    %c0_101 = arith.constant 0 : index
    %92 = vector.load %arg12[%c1_99, %c0_100, %c0_101] : memref<5x160x128xf32, #tpu.memory_space<vmem>>, vector<1x160x128xf32>
    %93 = vector.shape_cast %92 : vector<1x160x128xf32> to vector<160x128xf32>
    %cst_102 = arith.constant dense<0.000000e+00> : vector<1x128xf32>
    %94 = tpu.matmul %91, %93, %cst_102 {dimension_numbers = #tpu.dot_dimension_numbers<[1], [0], [0], [1], [0, 0, 1, 1], [], []>} : vector<1x160xf32>, vector<160x128xf32>, vector<1x128xf32> -> vector<1x128xf32>
    %95 = arith.addf %90, %94 : vector<1x128xf32>
    %c2_103 = arith.constant 2 : index
    %c0_104 = arith.constant 0 : index
    %96 = vector.load %arg20[%c2_103, %c0_104] : memref<5x160xf32, #tpu.memory_space<vmem>>, vector<1x160xf32>
    %c2_105 = arith.constant 2 : index
    %c0_106 = arith.constant 0 : index
    %c0_107 = arith.constant 0 : index
    %97 = vector.load %arg12[%c2_105, %c0_106, %c0_107] : memref<5x160x128xf32, #tpu.memory_space<vmem>>, vector<1x160x128xf32>
    %98 = vector.shape_cast %97 : vector<1x160x128xf32> to vector<160x128xf32>
    %cst_108 = arith.constant dense<0.000000e+00> : vector<1x128xf32>
    %99 = tpu.matmul %96, %98, %cst_108 {dimension_numbers = #tpu.dot_dimension_numbers<[1], [0], [0], [1], [0, 0, 1, 1], [], []>} : vector<1x160xf32>, vector<160x128xf32>, vector<1x128xf32> -> vector<1x128xf32>
    %100 = arith.addf %95, %99 : vector<1x128xf32>
    %c3_109 = arith.constant 3 : index
    %c0_110 = arith.constant 0 : index
    %101 = vector.load %arg20[%c3_109, %c0_110] : memref<5x160xf32, #tpu.memory_space<vmem>>, vector<1x160xf32>
    %c3_111 = arith.constant 3 : index
    %c0_112 = arith.constant 0 : index
    %c0_113 = arith.constant 0 : index
    %102 = vector.load %arg12[%c3_111, %c0_112, %c0_113] : memref<5x160x128xf32, #tpu.memory_space<vmem>>, vector<1x160x128xf32>
    %103 = vector.shape_cast %102 : vector<1x160x128xf32> to vector<160x128xf32>
    %cst_114 = arith.constant dense<0.000000e+00> : vector<1x128xf32>
    %104 = tpu.matmul %101, %103, %cst_114 {dimension_numbers = #tpu.dot_dimension_numbers<[1], [0], [0], [1], [0, 0, 1, 1], [], []>} : vector<1x160xf32>, vector<160x128xf32>, vector<1x128xf32> -> vector<1x128xf32>
    %105 = arith.addf %100, %104 : vector<1x128xf32>
    %c4_115 = arith.constant 4 : index
    %c0_116 = arith.constant 0 : index
    %106 = vector.load %arg20[%c4_115, %c0_116] : memref<5x160xf32, #tpu.memory_space<vmem>>, vector<1x160xf32>
    %c4_117 = arith.constant 4 : index
    %c0_118 = arith.constant 0 : index
    %c0_119 = arith.constant 0 : index
    %107 = vector.load %arg12[%c4_117, %c0_118, %c0_119] : memref<5x160x128xf32, #tpu.memory_space<vmem>>, vector<1x160x128xf32>
    %108 = vector.shape_cast %107 : vector<1x160x128xf32> to vector<160x128xf32>
    %cst_120 = arith.constant dense<0.000000e+00> : vector<1x128xf32>
    %109 = tpu.matmul %106, %108, %cst_120 {dimension_numbers = #tpu.dot_dimension_numbers<[1], [0], [0], [1], [0, 0, 1, 1], [], []>} : vector<1x160xf32>, vector<160x128xf32>, vector<1x128xf32> -> vector<1x128xf32>
    %110 = arith.addf %105, %109 : vector<1x128xf32>
    %cst_121 = arith.constant 0.000000e+00 : f32
    %111 = vector.broadcast %cst_121 : f32 to vector<1x128xf32>
    %112 = arith.subf %111, %110 : vector<1x128xf32>
    %113 = math.exp %112 : vector<1x128xf32>
    %cst_122 = arith.constant 1.000000e+00 : f32
    %114 = vector.broadcast %cst_122 : f32 to vector<1x128xf32>
    %115 = arith.addf %114, %113 : vector<1x128xf32>
    %116 = tpu.reciprocal %115 {approx = true} : vector<1x128xf32> -> vector<1x128xf32>
    %c0_123 = arith.constant 0 : index
    %c0_124 = arith.constant 0 : index
    %117 = vector.load %arg14[%c0_123, %c0_124] : memref<128x128xf32, #tpu.memory_space<vmem>>, vector<128x128xf32>
    %cst_125 = arith.constant dense<0.000000e+00> : vector<1x128xf32>
    %118 = tpu.matmul %116, %117, %cst_125 {dimension_numbers = #tpu.dot_dimension_numbers<[1], [0], [0], [1], [0, 0, 1, 1], [], []>} : vector<1x128xf32>, vector<128x128xf32>, vector<1x128xf32> -> vector<1x128xf32>
    %c0_126 = arith.constant 0 : index
    %c0_127 = arith.constant 0 : index
    %119 = vector.load %arg15[%c0_126, %c0_127] : memref<1x128xf32, #tpu.memory_space<vmem>>, vector<1x128xf32>
    %120 = arith.addf %118, %119 : vector<1x128xf32>
    %cst_128 = arith.constant 0.000000e+00 : f32
    %121 = vector.broadcast %cst_128 : f32 to vector<1x128xf32>
    %122 = arith.subf %121, %120 : vector<1x128xf32>
    %123 = math.exp %122 : vector<1x128xf32>
    %cst_129 = arith.constant 1.000000e+00 : f32
    %124 = vector.broadcast %cst_129 : f32 to vector<1x128xf32>
    %125 = arith.addf %124, %123 : vector<1x128xf32>
    %126 = tpu.reciprocal %125 {approx = true} : vector<1x128xf32> -> vector<1x128xf32>
    %c0_130 = arith.constant 0 : index
    %c0_131 = arith.constant 0 : index
    %127 = vector.load %arg16[%c0_130, %c0_131] : memref<128x128xf32, #tpu.memory_space<vmem>>, vector<128x128xf32>
    %cst_132 = arith.constant dense<0.000000e+00> : vector<1x128xf32>
    %128 = tpu.matmul %126, %127, %cst_132 {dimension_numbers = #tpu.dot_dimension_numbers<[1], [0], [0], [1], [0, 0, 1, 1], [], []>} : vector<1x128xf32>, vector<128x128xf32>, vector<1x128xf32> -> vector<1x128xf32>
    %c0_133 = arith.constant 0 : index
    %c0_134 = arith.constant 0 : index
    %129 = vector.load %arg17[%c0_133, %c0_134] : memref<1x128xf32, #tpu.memory_space<vmem>>, vector<1x128xf32>
    %130 = arith.addf %128, %129 : vector<1x128xf32>
    %c0_135 = arith.constant 0 : index
    %c0_136 = arith.constant 0 : index
    %c0_137 = arith.constant 0 : index
    %131 = vector.load %arg18[%c0_135, %c0_136, %c0_137] : memref<1x1x128xf32, #tpu.memory_space<vmem>>, vector<1x1x128xf32>
    %132 = vector.shape_cast %131 : vector<1x1x128xf32> to vector<1x128xf32>
    %133 = vector.shape_cast %130 : vector<1x128xf32> to vector<1x1x128xf32>
    tpu.vector_store %arg18[%c0_135, %c0_136, %c0_137], %133 {strides = array<i32>} : memref<1x1x128xf32, #tpu.memory_space<vmem>>, vector<1x1x128xf32>,
    return
  }
  func.func @transform_0(%arg0: i32) -> (i32, i32, i32) {
    %c0_i32 = arith.constant 0 : i32
    %c0_i32_0 = arith.constant 0 : i32
    %c0_i32_1 = arith.constant 0 : i32
    return %arg0, %c0_i32, %c0_i32_0 : i32, i32, i32
  }
  func.func @transform_1(%arg0: i32) -> (i32, i32, i32) {
    %c0_i32 = arith.constant 0 : i32
    %c0_i32_0 = arith.constant 0 : i32
    %c0_i32_1 = arith.constant 0 : i32
    %c0_i32_2 = arith.constant 0 : i32
    return %c0_i32, %c0_i32_0, %c0_i32_1 : i32, i32, i32
  }
  func.func @transform_2(%arg0: i32) -> (i32, i32) {
    %c0_i32 = arith.constant 0 : i32
    %c0_i32_0 = arith.constant 0 : i32
    %c0_i32_1 = arith.constant 0 : i32
    return %c0_i32, %c0_i32_0 : i32, i32
  }
  func.func @transform_3(%arg0: i32) -> (i32, i32) {
    %c0_i32 = arith.constant 0 : i32
    %c0_i32_0 = arith.constant 0 : i32
    %c0_i32_1 = arith.constant 0 : i32
    return %c0_i32, %c0_i32_0 : i32, i32
  }
  func.func @transform_4(%arg0: i32) -> (i32, i32) {
    %c0_i32 = arith.constant 0 : i32
    %c0_i32_0 = arith.constant 0 : i32
    %c0_i32_1 = arith.constant 0 : i32
    return %c0_i32, %c0_i32_0 : i32, i32
  }
  func.func @transform_5(%arg0: i32) -> (i32, i32) {
    %c0_i32 = arith.constant 0 : i32
    %c0_i32_0 = arith.constant 0 : i32
    %c0_i32_1 = arith.constant 0 : i32
    return %c0_i32, %c0_i32_0 : i32, i32
  }
  func.func @transform_6(%arg0: i32) -> (i32, i32, i32) {
    %c0_i32 = arith.constant 0 : i32
    %c0_i32_0 = arith.constant 0 : i32
    %c0_i32_1 = arith.constant 0 : i32
    %c0_i32_2 = arith.constant 0 : i32
    return %c0_i32, %c0_i32_0, %c0_i32_1 : i32, i32, i32
  }
  func.func @transform_7(%arg0: i32) -> (i32, i32) {
    %c0_i32 = arith.constant 0 : i32
    %c0_i32_0 = arith.constant 0 : i32
    %c0_i32_1 = arith.constant 0 : i32
    return %c0_i32, %c0_i32_0 : i32, i32
  }
  func.func @transform_8(%arg0: i32) -> (i32, i32) {
    %c0_i32 = arith.constant 0 : i32
    %c0_i32_0 = arith.constant 0 : i32
    %c0_i32_1 = arith.constant 0 : i32
    return %c0_i32, %c0_i32_0 : i32, i32
  }
  func.func @transform_9(%arg0: i32) -> (i32, i32) {
    %c0_i32 = arith.constant 0 : i32
    %c0_i32_0 = arith.constant 0 : i32
    %c0_i32_1 = arith.constant 0 : i32
    return %c0_i32, %c0_i32_0 : i32, i32
  }
  func.func @transform_10(%arg0: i32) -> (i32, i32) {
    %c0_i32 = arith.constant 0 : i32
    %c0_i32_0 = arith.constant 0 : i32
    %c0_i32_1 = arith.constant 0 : i32
    return %c0_i32, %c0_i32_0 : i32, i32
  }
  func.func @transform_11(%arg0: i32) -> (i32, i32, i32) {
    %c0_i32 = arith.constant 0 : i32
    %c0_i32_0 = arith.constant 0 : i32
    %c0_i32_1 = arith.constant 0 : i32
    %c0_i32_2 = arith.constant 0 : i32
    return %c0_i32, %c0_i32_0, %c0_i32_1 : i32, i32, i32
  }
  func.func @transform_12(%arg0: i32) -> (i32, i32) {
    %c0_i32 = arith.constant 0 : i32
    %c0_i32_0 = arith.constant 0 : i32
    %c0_i32_1 = arith.constant 0 : i32
    return %c0_i32, %c0_i32_0 : i32, i32
  }
  func.func @transform_13(%arg0: i32) -> (i32, i32) {
    %c0_i32 = arith.constant 0 : i32
    %c0_i32_0 = arith.constant 0 : i32
    %c0_i32_1 = arith.constant 0 : i32
    return %c0_i32, %c0_i32_0 : i32, i32
  }
  func.func @transform_14(%arg0: i32) -> (i32, i32) {
    %c0_i32 = arith.constant 0 : i32
    %c0_i32_0 = arith.constant 0 : i32
    %c0_i32_1 = arith.constant 0 : i32
    return %c0_i32, %c0_i32_0 : i32, i32
  }
  func.func @transform_15(%arg0: i32) -> (i32, i32) {
    %c0_i32 = arith.constant 0 : i32
    %c0_i32_0 = arith.constant 0 : i32
    %c0_i32_1 = arith.constant 0 : i32
    return %c0_i32, %c0_i32_0 : i32, i32
  }
  func.func @transform_16(%arg0: i32) -> (i32, i32) {
    %c0_i32 = arith.constant 0 : i32
    %c0_i32_0 = arith.constant 0 : i32
    %c0_i32_1 = arith.constant 0 : i32
    return %c0_i32, %c0_i32_0 : i32, i32
  }
  func.func @transform_17(%arg0: i32) -> (i32, i32, i32) {
    %c0_i32 = arith.constant 0 : i32
    %c0_i32_0 = arith.constant 0 : i32
    %c0_i32_1 = arith.constant 0 : i32
    return %arg0, %c0_i32, %c0_i32_0 : i32, i32, i32
  }
}

</mosaic_0001>

<llo_original>
// kernel: net_forward.1
$region0: #{net_forward.1}
  #allocation0 [shape = 'u32[]', space=smem, size = 0x4, offset = 0x4, fixed_abs, tag = 'smem constant byte address 0x4 - core index']
  #allocation1 [shape = 'u32[72,128]{1,0:T(1,128)}', space=vmem, size = 0x9000, scoped, tag = 'internal scratch']
  #allocation2 [shape = 'f32[14,224]{1,0:T(8,128)}', space=vmem, size = 0x4000, scoped, tag = 'scratch operand']
  #allocation3 [shape = 'f32[5,160]{1,0:T(8,128)}', space=vmem, size = 0x2000, scoped, tag = 'scratch operand']
  %s0 = inlined_call_operand.vmem [shape: f32[2,32,128], index: 0, kind: input, shape index: {}]
  %s1 = inlined_call_operand.vmem [shape: f32[5,128,224], index: 1, kind: input, shape index: {}]
  %s2 = inlined_call_operand.vmem [shape: f32[1,224], index: 2, kind: input, shape index: {}]
  %s3 = inlined_call_operand.vmem [shape: f32[14,28], index: 3, kind: input, shape index: {}]
  %s4 = inlined_call_operand.vmem [shape: f32[14,28], index: 4, kind: input, shape index: {}]
  %s5 = inlined_call_operand.vmem [shape: f32[224,224], index: 5, kind: input, shape index: {}]
  %s6 = inlined_call_operand.vmem [shape: f32[5,224,160], index: 6, kind: input, shape index: {}]
  %s7 = inlined_call_operand.vmem [shape: f32[1,160], index: 7, kind: input, shape index: {}]
  %s8 = inlined_call_operand.vmem [shape: f32[5,10], index: 8, kind: input, shape index: {}]
  %s9 = inlined_call_operand.vmem [shape: f32[5,10], index: 9, kind: input, shape index: {}]
  %s10 = inlined_call_operand.vmem [shape: f32[160,160], index: 10, kind: input, shape index: {}]
  %s11 = inlined_call_operand.vmem [shape: f32[5,160,128], index: 11, kind: input, shape index: {}]
  %s12 = inlined_call_operand.vmem [shape: f32[1,128], index: 12, kind: input, shape index: {}]
  %s13 = inlined_call_operand.vmem [shape: f32[128,128], index: 13, kind: input, shape index: {}]
  %s14 = inlined_call_operand.vmem [shape: f32[1,128], index: 14, kind: input, shape index: {}]
  %s15 = inlined_call_operand.vmem [shape: f32[128,128], index: 15, kind: input, shape index: {}]
  %s16 = inlined_call_operand.vmem [shape: f32[1,128], index: 16, kind: input, shape index: {}]
  %s17 = inlined_call_operand.hbm [shape: f32[2,1,128], index: 17, kind: output, shape index: {}]
  %s18 = sld [smem:[#allocation0]]
  $region101: #{net_forward.1} parent=0
    _
  %s20 = ssub.s32 1, %s18
  %s21 = scalar_select 0, %s20, %s18
  $region1: #{net_forward.1} parent=0
    #allocation4 [shape = 'u8[1024]{0}', space=vmem, size = 0x400, scoped, tag = 'output window, operand 0']
    #allocation5 [shape = 's32[2]{0}', space=sflag, size = 0x8, scoped, tag = 'scoped memory for net_forward.1']
    %22 = vsyncpa [#allocation5], 0
    %s23 = scalar_lea.sflag [#allocation5], 1
    %24 = vsyncpa %s23, 0
    loop: start=0, step=1, limit=4
    $region2: #{net_forward.1} parent=1 // loop_pre_header
      _
    $region3: #{net_forward.1} parent=1 // loop_header
      %s26 = sphi 0, %s30
      %p27 = scmp.ge.s32.totalorder %s26, 4
      %s36 = sphi 0, %s38
      %s39 = sphi 0, %s36
      %s40 = sphi 0, %s39
      %s56 = sphi 0, %s40
      %s60 = sphi 0, %s60
      %s62 = sphi 0, %s60
      %s63 = sphi 0, %s62
      %s77 = sphi 0, %s63
      %s81 = sphi 0, %s81
      %s83 = sphi 0, %s81
      %s84 = sphi 0, %s83
      %s98 = sphi 0, %s84
      %s102 = sphi 0, %s102
      %s104 = sphi 0, %s102
      %s105 = sphi 0, %s104
      %s119 = sphi 0, %s105
      %s123 = sphi 0, %s123
      %s125 = sphi 0, %s123
      %s126 = sphi 0, %s125
      %s140 = sphi 0, %s126
      %s144 = sphi 0, %s144
      %s146 = sphi 0, %s144
      %s147 = sphi 0, %s146
      %s161 = sphi 0, %s147
      %s165 = sphi 0, %s165
      %s167 = sphi 0, %s165
      %s168 = sphi 0, %s167
      %s182 = sphi 0, %s168
      %s186 = sphi 0, %s186
      %s188 = sphi 0, %s186
      %s189 = sphi 0, %s188
      %s203 = sphi 0, %s189
      %s207 = sphi 0, %s207
      %s209 = sphi 0, %s207
      %s210 = sphi 0, %s209
      %s224 = sphi 0, %s210
      %s228 = sphi 0, %s228
      %s230 = sphi 0, %s228
      %s231 = sphi 0, %s230
      %s245 = sphi 0, %s231
      %s249 = sphi 0, %s249
      %s251 = sphi 0, %s249
      %s252 = sphi 0, %s251
      %s266 = sphi 0, %s252
      %s270 = sphi 0, %s270
      %s272 = sphi 0, %s270
      %s273 = sphi 0, %s272
      %s287 = sphi 0, %s273
      %s291 = sphi 0, %s291
      %s293 = sphi 0, %s291
      %s294 = sphi 0, %s293
      %s308 = sphi 0, %s294
      %s312 = sphi 0, %s312
      %s314 = sphi 0, %s312
      %s315 = sphi 0, %s314
      %s329 = sphi 0, %s315
      %s333 = sphi 0, %s333
      %s335 = sphi 0, %s333
      %s336 = sphi 0, %s335
      %s350 = sphi 0, %s336
      %s354 = sphi 0, %s354
      %s356 = sphi 0, %s354
      %s357 = sphi 0, %s356
      %s371 = sphi 0, %s357
      %s375 = sphi 0, %s375
      %s377 = sphi 0, %s375
      %s378 = sphi 0, %s377
      %s392 = sphi 0, %s378
      %s398 = sphi 0, %s400
      %s401 = sphi 0, %s398
      %s402 = sphi 0, %s401
      %s418 = sphi 0, %s402
    $region4: #{net_forward.1} parent=1 // loop_header_branch
      %29 = sbr.rel (%p27) target = $region8
    $region5: #{net_forward.1} parent=1 // loop_body
      %s31 = ssub.s32 %s26, 1
      %s32 = ssub.s32 %s26, 2
      %s33 = sadd.s32 %s26, 1
      %s34 = ssub.s32 %s26, %s33
      %p35 = scmp.eq.s32.totalorder %s34, 0
      %s37 = sadd.s32 %s36, 1
      %s38 = scalar_select %p35, %s36, %s37
      %p41 = pneg %p35
      %p42 = scmp.eq.s32.totalorder %s26, 1
      %p43 = por %p41, %p42
      %p44 = scmp.ne.s32.totalorder %s36, %s39
      %p45 = scmp.eq.s32.totalorder %s26, 0
      %p46 = por %p44, %p45
      %p47 = scmp.ne.s32.totalorder %s36, %s39
      %p48 = scmp.eq.s32.totalorder %s31, 1
      %p49 = por %p47, %p48
      %p50 = scmp.ne.s32.totalorder %s39, %s40
      %p51 = scmp.eq.s32.totalorder %s31, 0
      %p52 = por %p50, %p51
      %p53 = scmp.ne.s32.totalorder %s39, %s40
      %p54 = scmp.eq.s32.totalorder %s32, 1
      %p55 = por %p53, %p54
      %p57 = scmp.ne.s32.totalorder %s40, %s56
      %p58 = scmp.eq.s32.totalorder %s32, 0
      %p59 = por %p57, %p58
      %s61 = sadd.s32 %s60, 1
      %p64 = scmp.eq.s32.totalorder %s26, 1
      %p65 = scmp.ne.s32.totalorder %s60, %s62
      %p66 = scmp.eq.s32.totalorder %s26, 0
      %p67 = por %p65, %p66
      %p68 = scmp.ne.s32.totalorder %s60, %s62
      %p69 = scmp.eq.s32.totalorder %s31, 1
      %p70 = por %p68, %p69
      %p71 = scmp.ne.s32.totalorder %s62, %s63
      %p72 = scmp.eq.s32.totalorder %s31, 0
      %p73 = por %p71, %p72
      %p74 = scmp.ne.s32.totalorder %s62, %s63
      %p75 = scmp.eq.s32.totalorder %s32, 1
      %p76 = por %p74, %p75
      %p78 = scmp.ne.s32.totalorder %s63, %s77
      %p79 = scmp.eq.s32.totalorder %s32, 0
      %p80 = por %p78, %p79
      %s82 = sadd.s32 %s81, 1
      %p85 = scmp.eq.s32.totalorder %s26, 1
      %p86 = scmp.ne.s32.totalorder %s81, %s83
      %p87 = scmp.eq.s32.totalorder %s26, 0
      %p88 = por %p86, %p87
      %p89 = scmp.ne.s32.totalorder %s81, %s83
      %p90 = scmp.eq.s32.totalorder %s31, 1
      %p91 = por %p89, %p90
      %p92 = scmp.ne.s32.totalorder %s83, %s84
      %p93 = scmp.eq.s32.totalorder %s31, 0
      %p94 = por %p92, %p93
      %p95 = scmp.ne.s32.totalorder %s83, %s84
      %p96 = scmp.eq.s32.totalorder %s32, 1
      %p97 = por %p95, %p96
      %p99 = scmp.ne.s32.totalorder %s84, %s98
      %p100 = scmp.eq.s32.totalorder %s32, 0
      %p101 = por %p99, %p100
      %s103 = sadd.s32 %s102, 1
      %p106 = scmp.eq.s32.totalorder %s26, 1
      %p107 = scmp.ne.s32.totalorder %s102, %s104
      %p108 = scmp.eq.s32.totalorder %s26, 0
      %p109 = por %p107, %p108
      %p110 = scmp.ne.s32.totalorder %s102, %s104
      %p111 = scmp.eq.s32.totalorder %s31, 1
      %p112 = por %p110, %p111
      %p113 = scmp.ne.s32.totalorder %s104, %s105
      %p114 = scmp.eq.s32.totalorder %s31, 0
      %p115 = por %p113, %p114
      %p116 = scmp.ne.s32.totalorder %s104, %s105
      %p117 = scmp.eq.s32.totalorder %s32, 1
      %p118 = por %p116, %p117
      %p120 = scmp.ne.s32.totalorder %s105, %s119
      %p121 = scmp.eq.s32.totalorder %s32, 0
      %p122 = por %p120, %p121
      %s124 = sadd.s32 %s123, 1
      %p127 = scmp.eq.s32.totalorder %s26, 1
      %p128 = scmp.ne.s32.totalorder %s123, %s125
      %p129 = scmp.eq.s32.totalorder %s26, 0
      %p130 = por %p128, %p129
      %p131 = scmp.ne.s32.totalorder %s123, %s125
      %p132 = scmp.eq.s32.totalorder %s31, 1
      %p133 = por %p131, %p132
      %p134 = scmp.ne.s32.totalorder %s125, %s126
      %p135 = scmp.eq.s32.totalorder %s31, 0
      %p136 = por %p134, %p135
      %p137 = scmp.ne.s32.totalorder %s125, %s126
      %p138 = scmp.eq.s32.totalorder %s32, 1
      %p139 = por %p137, %p138
      %p141 = scmp.ne.s32.totalorder %s126, %s140
      %p142 = scmp.eq.s32.totalorder %s32, 0
      %p143 = por %p141, %p142
      %s145 = sadd.s32 %s144, 1
      %p148 = scmp.eq.s32.totalorder %s26, 1
      %p149 = scmp.ne.s32.totalorder %s144, %s146
      %p150 = scmp.eq.s32.totalorder %s26, 0
      %p151 = por %p149, %p150
      %p152 = scmp.ne.s32.totalorder %s144, %s146
      %p153 = scmp.eq.s32.totalorder %s31, 1
      %p154 = por %p152, %p153
      %p155 = scmp.ne.s32.totalorder %s146, %s147
      %p156 = scmp.eq.s32.totalorder %s31, 0
      %p157 = por %p155, %p156
      %p158 = scmp.ne.s32.totalorder %s146, %s147
      %p159 = scmp.eq.s32.totalorder %s32, 1
      %p160 = por %p158, %p159
      %p162 = scmp.ne.s32.totalorder %s147, %s161
      %p163 = scmp.eq.s32.totalorder %s32, 0
      %p164 = por %p162, %p163
      %s166 = sadd.s32 %s165, 1
      %p169 = scmp.eq.s32.totalorder %s26, 1
      %p170 = scmp.ne.s32.totalorder %s165, %s167
      %p171 = scmp.eq.s32.totalorder %s26, 0
      %p172 = por %p170, %p171
      %p173 = scmp.ne.s32.totalorder %s165, %s167
      %p174 = scmp.eq.s32.totalorder %s31, 1
      %p175 = por %p173, %p174
      %p176 = scmp.ne.s32.totalorder %s167, %s168
      %p177 = scmp.eq.s32.totalorder %s31, 0
      %p178 = por %p176, %p177
      %p179 = scmp.ne.s32.totalorder %s167, %s168
      %p180 = scmp.eq.s32.totalorder %s32, 1
      %p181 = por %p179, %p180
      %p183 = scmp.ne.s32.totalorder %s168, %s182
      %p184 = scmp.eq.s32.totalorder %s32, 0
      %p185 = por %p183, %p184
      %s187 = sadd.s32 %s186, 1
      %p190 = scmp.eq.s32.totalorder %s26, 1
      %p191 = scmp.ne.s32.totalorder %s186, %s188
      %p192 = scmp.eq.s32.totalorder %s26, 0
      %p193 = por %p191, %p192
      %p194 = scmp.ne.s32.totalorder %s186, %s188
      %p195 = scmp.eq.s32.totalorder %s31, 1
      %p196 = por %p194, %p195
      %p197 = scmp.ne.s32.totalorder %s188, %s189
      %p198 = scmp.eq.s32.totalorder %s31, 0
      %p199 = por %p197, %p198
      %p200 = scmp.ne.s32.totalorder %s188, %s189
      %p201 = scmp.eq.s32.totalorder %s32, 1
      %p202 = por %p200, %p201
      %p204 = scmp.ne.s32.totalorder %s189, %s203
      %p205 = scmp.eq.s32.totalorder %s32, 0
      %p206 = por %p204, %p205
      %s208 = sadd.s32 %s207, 1
      %p211 = scmp.eq.s32.totalorder %s26, 1
      %p212 = scmp.ne.s32.totalorder %s207, %s209
      %p213 = scmp.eq.s32.totalorder %s26, 0
      %p214 = por %p212, %p213
      %p215 = scmp.ne.s32.totalorder %s207, %s209
      %p216 = scmp.eq.s32.totalorder %s31, 1
      %p217 = por %p215, %p216
      %p218 = scmp.ne.s32.totalorder %s209, %s210
      %p219 = scmp.eq.s32.totalorder %s31, 0
      %p220 = por %p218, %p219
      %p221 = scmp.ne.s32.totalorder %s209, %s210
      %p222 = scmp.eq.s32.totalorder %s32, 1
      %p223 = por %p221, %p222
      %p225 = scmp.ne.s32.totalorder %s210, %s224
      %p226 = scmp.eq.s32.totalorder %s32, 0
      %p227 = por %p225, %p226
      %s229 = sadd.s32 %s228, 1
      %p232 = scmp.eq.s32.totalorder %s26, 1
      %p233 = scmp.ne.s32.totalorder %s228, %s230
      %p234 = scmp.eq.s32.totalorder %s26, 0
      %p235 = por %p233, %p234
      %p236 = scmp.ne.s32.totalorder %s228, %s230
      %p237 = scmp.eq.s32.totalorder %s31, 1
      %p238 = por %p236, %p237
      %p239 = scmp.ne.s32.totalorder %s230, %s231
      %p240 = scmp.eq.s32.totalorder %s31, 0
      %p241 = por %p239, %p240
      %p242 = scmp.ne.s32.totalorder %s230, %s231
      %p243 = scmp.eq.s32.totalorder %s32, 1
      %p244 = por %p242, %p243
      %p246 = scmp.ne.s32.totalorder %s231, %s245
      %p247 = scmp.eq.s32.totalorder %s32, 0
      %p248 = por %p246, %p247
      %s250 = sadd.s32 %s249, 1
      %p253 = scmp.eq.s32.totalorder %s26, 1
      %p254 = scmp.ne.s32.totalorder %s249, %s251
      %p255 = scmp.eq.s32.totalorder %s26, 0
      %p256 = por %p254, %p255
      %p257 = scmp.ne.s32.totalorder %s249, %s251
      %p258 = scmp.eq.s32.totalorder %s31, 1
      %p259 = por %p257, %p258
      %p260 = scmp.ne.s32.totalorder %s251, %s252
      %p261 = scmp.eq.s32.totalorder %s31, 0
      %p262 = por %p260, %p261
      %p263 = scmp.ne.s32.totalorder %s251, %s252
      %p264 = scmp.eq.s32.totalorder %s32, 1
      %p265 = por %p263, %p264
      %p267 = scmp.ne.s32.totalorder %s252, %s266
      %p268 = scmp.eq.s32.totalorder %s32, 0
      %p269 = por %p267, %p268
      %s271 = sadd.s32 %s270, 1
      %p274 = scmp.eq.s32.totalorder %s26, 1
      %p275 = scmp.ne.s32.totalorder %s270, %s272
      %p276 = scmp.eq.s32.totalorder %s26, 0
      %p277 = por %p275, %p276
      %p278 = scmp.ne.s32.totalorder %s270, %s272
      %p279 = scmp.eq.s32.totalorder %s31, 1
      %p280 = por %p278, %p279
      %p281 = scmp.ne.s32.totalorder %s272, %s273
      %p282 = scmp.eq.s32.totalorder %s31, 0
      %p283 = por %p281, %p282
      %p284 = scmp.ne.s32.totalorder %s272, %s273
      %p285 = scmp.eq.s32.totalorder %s32, 1
      %p286 = por %p284, %p285
      %p288 = scmp.ne.s32.totalorder %s273, %s287
      %p289 = scmp.eq.s32.totalorder %s32, 0
      %p290 = por %p288, %p289
      %s292 = sadd.s32 %s291, 1
      %p295 = scmp.eq.s32.totalorder %s26, 1
      %p296 = scmp.ne.s32.totalorder %s291, %s293
      %p297 = scmp.eq.s32.totalorder %s26, 0
      %p298 = por %p296, %p297
      %p299 = scmp.ne.s32.totalorder %s291, %s293
      %p300 = scmp.eq.s32.totalorder %s31, 1
      %p301 = por %p299, %p300
      %p302 = scmp.ne.s32.totalorder %s293, %s294
      %p303 = scmp.eq.s32.totalorder %s31, 0
      %p304 = por %p302, %p303
      %p305 = scmp.ne.s32.totalorder %s293, %s294
      %p306 = scmp.eq.s32.totalorder %s32, 1
      %p307 = por %p305, %p306
      %p309 = scmp.ne.s32.totalorder %s294, %s308
      %p310 = scmp.eq.s32.totalorder %s32, 0
      %p311 = por %p309, %p310
      %s313 = sadd.s32 %s312, 1
      %p316 = scmp.eq.s32.totalorder %s26, 1
      %p317 = scmp.ne.s32.totalorder %s312, %s314
      %p318 = scmp.eq.s32.totalorder %s26, 0
      %p319 = por %p317, %p318
      %p320 = scmp.ne.s32.totalorder %s312, %s314
      %p321 = scmp.eq.s32.totalorder %s31, 1
      %p322 = por %p320, %p321
      %p323 = scmp.ne.s32.totalorder %s314, %s315
      %p324 = scmp.eq.s32.totalorder %s31, 0
      %p325 = por %p323, %p324
      %p326 = scmp.ne.s32.totalorder %s314, %s315
      %p327 = scmp.eq.s32.totalorder %s32, 1
      %p328 = por %p326, %p327
      %p330 = scmp.ne.s32.totalorder %s315, %s329
      %p331 = scmp.eq.s32.totalorder %s32, 0
      %p332 = por %p330, %p331
      %s334 = sadd.s32 %s333, 1
      %p337 = scmp.eq.s32.totalorder %s26, 1
      %p338 = scmp.ne.s32.totalorder %s333, %s335
      %p339 = scmp.eq.s32.totalorder %s26, 0
      %p340 = por %p338, %p339
      %p341 = scmp.ne.s32.totalorder %s333, %s335
      %p342 = scmp.eq.s32.totalorder %s31, 1
      %p343 = por %p341, %p342
      %p344 = scmp.ne.s32.totalorder %s335, %s336
      %p345 = scmp.eq.s32.totalorder %s31, 0
      %p346 = por %p344, %p345
      %p347 = scmp.ne.s32.totalorder %s335, %s336
      %p348 = scmp.eq.s32.totalorder %s32, 1
      %p349 = por %p347, %p348
      %p351 = scmp.ne.s32.totalorder %s336, %s350
      %p352 = scmp.eq.s32.totalorder %s32, 0
      %p353 = por %p351, %p352
      %s355 = sadd.s32 %s354, 1
      %p358 = scmp.eq.s32.totalorder %s26, 1
      %p359 = scmp.ne.s32.totalorder %s354, %s356
      %p360 = scmp.eq.s32.totalorder %s26, 0
      %p361 = por %p359, %p360
      %p362 = scmp.ne.s32.totalorder %s354, %s356
      %p363 = scmp.eq.s32.totalorder %s31, 1
      %p364 = por %p362, %p363
      %p365 = scmp.ne.s32.totalorder %s356, %s357
      %p366 = scmp.eq.s32.totalorder %s31, 0
      %p367 = por %p365, %p366
      %p368 = scmp.ne.s32.totalorder %s356, %s357
      %p369 = scmp.eq.s32.totalorder %s32, 1
      %p370 = por %p368, %p369
      %p372 = scmp.ne.s32.totalorder %s357, %s371
      %p373 = scmp.eq.s32.totalorder %s32, 0
      %p374 = por %p372, %p373
      %s376 = sadd.s32 %s375, 1
      %p379 = scmp.eq.s32.totalorder %s26, 1
      %p380 = scmp.ne.s32.totalorder %s375, %s377
      %p381 = scmp.eq.s32.totalorder %s26, 0
      %p382 = por %p380, %p381
      %p383 = scmp.ne.s32.totalorder %s375, %s377
      %p384 = scmp.eq.s32.totalorder %s31, 1
      %p385 = por %p383, %p384
      %p386 = scmp.ne.s32.totalorder %s377, %s378
      %p387 = scmp.eq.s32.totalorder %s31, 0
      %p388 = por %p386, %p387
      %p389 = scmp.ne.s32.totalorder %s377, %s378
      %p390 = scmp.eq.s32.totalorder %s32, 1
      %p391 = por %p389, %p390
      %p393 = scmp.ne.s32.totalorder %s378, %s392
      %p394 = scmp.eq.s32.totalorder %s32, 0
      %p395 = por %p393, %p394
      %s396 = ssub.s32 %s26, %s33
      %p397 = scmp.eq.s32.totalorder %s396, 0
      %s399 = sadd.s32 %s398, 1
      %s400 = scalar_select %p397, %s398, %s399
      %p403 = pneg %p397
      %p404 = scmp.eq.s32.totalorder %s26, 1
      %p405 = por %p403, %p404
      %p406 = scmp.ne.s32.totalorder %s398, %s401
      %p407 = scmp.eq.s32.totalorder %s26, 0
      %p408 = por %p406, %p407
      %p409 = scmp.ne.s32.totalorder %s398, %s401
      %p410 = scmp.eq.s32.totalorder %s31, 1
      %p411 = por %p409, %p410
      %p412 = scmp.ne.s32.totalorder %s401, %s402
      %p413 = scmp.eq.s32.totalorder %s31, 0
      %p414 = por %p412, %p413
      %p415 = scmp.ne.s32.totalorder %s401, %s402
      %p416 = scmp.eq.s32.totalorder %s32, 1
      %p417 = por %p415, %p416
      %p419 = scmp.ne.s32.totalorder %s402, %s418
      %p420 = scmp.eq.s32.totalorder %s32, 0
      %p421 = por %p419, %p420
      %p422 = scmp.le.s32.totalorder 1, %s26
      %p423 = scmp.lt.s32.totalorder %s26, 3
      %p424 = pnand %p422, %p423
      %p425 = pneg %p424
      // Predicated region
      $region9: #{net_forward.1} parent=5 // pred_check
        _
      $region10: #{net_forward.1} parent=5 // pred_check_branch
        %427 = sbr.rel (%p424) target = $region12
      $region11: #{net_forward.1} parent=5 // pred_region
        %s428 = ssub.s32 %s26, 1
        // Predicated region
        $region13: #{net_forward.1} parent=11 // pred_check
          %p429 = pneg %p73
        $region14: #{net_forward.1} parent=11 // pred_check_branch
          %431 = sbr.rel (%p429) target = $region16
        $region15: #{net_forward.1} parent=11 // pred_region
          _
        $region16: #{net_forward.1} parent=11 // pred_fallthru
          _
        // Predicated region
        $region17: #{net_forward.1} parent=11 // pred_check
          %p432 = pneg %p94
        $region18: #{net_forward.1} parent=11 // pred_check_branch
          %434 = sbr.rel (%p432) target = $region20
        $region19: #{net_forward.1} parent=11 // pred_region
          _
        $region20: #{net_forward.1} parent=11 // pred_fallthru
          _
        // Predicated region
        $region21: #{net_forward.1} parent=11 // pred_check
          %p435 = pneg %p115
        $region22: #{net_forward.1} parent=11 // pred_check_branch
          %437 = sbr.rel (%p435) target = $region24
        $region23: #{net_forward.1} parent=11 // pred_region
          _
        $region24: #{net_forward.1} parent=11 // pred_fallthru
          _
        // Predicated region
        $region25: #{net_forward.1} parent=11 // pred_check
          %p438 = pneg %p136
        $region26: #{net_forward.1} parent=11 // pred_check_branch
          %440 = sbr.rel (%p438) target = $region28
        $region27: #{net_forward.1} parent=11 // pred_region
          _
        $region28: #{net_forward.1} parent=11 // pred_fallthru
          _
        // Predicated region
        $region29: #{net_forward.1} parent=11 // pred_check
          %p441 = pneg %p157
        $region30: #{net_forward.1} parent=11 // pred_check_branch
          %443 = sbr.rel (%p441) target = $region32
        $region31: #{net_forward.1} parent=11 // pred_region
          _
        $region32: #{net_forward.1} parent=11 // pred_fallthru
          _
        // Predicated region
        $region33: #{net_forward.1} parent=11 // pred_check
          %p444 = pneg %p178
        $region34: #{net_forward.1} parent=11 // pred_check_branch
          %446 = sbr.rel (%p444) target = $region36
        $region35: #{net_forward.1} parent=11 // pred_region
          _
        $region36: #{net_forward.1} parent=11 // pred_fallthru
          _
        // Predicated region
        $region37: #{net_forward.1} parent=11 // pred_check
          %p447 = pneg %p199
        $region38: #{net_forward.1} parent=11 // pred_check_branch
          %449 = sbr.rel (%p447) target = $region40
        $region39: #{net_forward.1} parent=11 // pred_region
          _
        $region40: #{net_forward.1} parent=11 // pred_fallthru
          _
        // Predicated region
        $region41: #{net_forward.1} parent=11 // pred_check
          %p450 = pneg %p220
        $region42: #{net_forward.1} parent=11 // pred_check_branch
          %452 = sbr.rel (%p450) target = $region44
        $region43: #{net_forward.1} parent=11 // pred_region
          _
        $region44: #{net_forward.1} parent=11 // pred_fallthru
          _
        // Predicated region
        $region45: #{net_forward.1} parent=11 // pred_check
          %p453 = pneg %p241
        $region46: #{net_forward.1} parent=11 // pred_check_branch
          %455 = sbr.rel (%p453) target = $region48
        $region47: #{net_forward.1} parent=11 // pred_region
          _
        $region48: #{net_forward.1} parent=11 // pred_fallthru
          _
        // Predicated region
        $region49: #{net_forward.1} parent=11 // pred_check
          %p456 = pneg %p262
        $region50: #{net_forward.1} parent=11 // pred_check_branch
          %458 = sbr.rel (%p456) target = $region52
        $region51: #{net_forward.1} parent=11 // pred_region
          _
        $region52: #{net_forward.1} parent=11 // pred_fallthru
          _
        // Predicated region
        $region53: #{net_forward.1} parent=11 // pred_check
          %p459 = pneg %p283
        $region54: #{net_forward.1} parent=11 // pred_check_branch
          %461 = sbr.rel (%p459) target = $region56
        $region55: #{net_forward.1} parent=11 // pred_region
          _
        $region56: #{net_forward.1} parent=11 // pred_fallthru
          _
        // Predicated region
        $region57: #{net_forward.1} parent=11 // pred_check
          %p462 = pneg %p304
        $region58: #{net_forward.1} parent=11 // pred_check_branch
          %464 = sbr.rel (%p462) target = $region60
        $region59: #{net_forward.1} parent=11 // pred_region
          _
        $region60: #{net_forward.1} parent=11 // pred_fallthru
          _
        // Predicated region
        $region61: #{net_forward.1} parent=11 // pred_check
          %p465 = pneg %p325
        $region62: #{net_forward.1} parent=11 // pred_check_branch
          %467 = sbr.rel (%p465) target = $region64
        $region63: #{net_forward.1} parent=11 // pred_region
          _
        $region64: #{net_forward.1} parent=11 // pred_fallthru
          _
        // Predicated region
        $region65: #{net_forward.1} parent=11 // pred_check
          %p468 = pneg %p346
        $region66: #{net_forward.1} parent=11 // pred_check_branch
          %470 = sbr.rel (%p468) target = $region68
        $region67: #{net_forward.1} parent=11 // pred_region
          _
        $region68: #{net_forward.1} parent=11 // pred_fallthru
          _
        // Predicated region
        $region69: #{net_forward.1} parent=11 // pred_check
          %p471 = pneg %p367
        $region70: #{net_forward.1} parent=11 // pred_check_branch
          %473 = sbr.rel (%p471) target = $region72
        $region71: #{net_forward.1} parent=11 // pred_region
          _
        $region72: #{net_forward.1} parent=11 // pred_fallthru
          _
        // Predicated region
        $region73: #{net_forward.1} parent=11 // pred_check
          %p474 = pneg %p388
        $region74: #{net_forward.1} parent=11 // pred_check_branch
          %476 = sbr.rel (%p474) target = $region76
        $region75: #{net_forward.1} parent=11 // pred_region
          _
        $region76: #{net_forward.1} parent=11 // pred_fallthru
          _
      $region12: #{net_forward.1} parent=5 // pred_fallthru
        _
      %p477 = scmp.lt.s32.totalorder %s26, 2
      // Predicated region
      $region77: #{net_forward.1} parent=5 // pred_check
        %p478 = pneg %p477
      $region78: #{net_forward.1} parent=5 // pred_check_branch
        %480 = sbr.rel (%p478) target = $region80
      $region79: #{net_forward.1} parent=5 // pred_region
        // Predicated region
        $region81: #{net_forward.1} parent=79 // pred_check
          %p481 = pneg %p46
        $region82: #{net_forward.1} parent=79 // pred_check_branch
          %483 = sbr.rel (%p481) target = $region84
        $region83: #{net_forward.1} parent=79 // pred_region
          %p484 = scmp.lt.s32.totalorder %s26, 1
          %s485 = scalar_select %p484, %s26, 1
          %s486 = smul.addr %s485, 4
          %s487 = smul.addr %s486, 8
          %s488 = scalar_lea.vmem %s0, %s487
        $region84: #{net_forward.1} parent=79 // pred_fallthru
          _
      $region80: #{net_forward.1} parent=5 // pred_fallthru
        _
      %p489 = scmp.le.s32.totalorder 1, %s26
      %p490 = scmp.lt.s32.totalorder %s26, 3
      %p491 = pnand %p489, %p490
      %p492 = pneg %p491
      // Predicated region
      $region85: #{net_forward.1} parent=5 // pred_check
        _
      $region86: #{net_forward.1} parent=5 // pred_check_branch
        %494 = sbr.rel (%p491) target = $region88
      $region87: #{net_forward.1} parent=5 // pred_region
        %s495 = ssub.s32 %s26, 1
        %p496 = scmp.lt.s32.totalorder %s31, 1
        %s497 = scalar_select %p496, %s31, 1
        %s498 = smul.addr %s497, 4
        %s499 = smul.addr %s498, 8
        %s500 = scalar_lea.vmem %s0, %s499
        %p501 = pneg %p52
        %p502 = pneg %p49
        %p503 = pneg %p73
        %p504 = pneg %p70
        %p505 = pneg %p94
        %p506 = pneg %p91
        %p507 = pneg %p115
        %p508 = pneg %p112
        %p509 = pneg %p136
        %p510 = pneg %p133
        %p511 = pneg %p157
        %p512 = pneg %p154
        %p513 = pneg %p178
        %p514 = pneg %p175
        %p515 = pneg %p199
        %p516 = pneg %p196
        %p517 = pneg %p220
        %p518 = pneg %p217
        %p519 = pneg %p241
        %p520 = pneg %p238
        %p521 = pneg %p262
        %p522 = pneg %p259
        %p523 = pneg %p283
        %p524 = pneg %p280
        %p525 = pneg %p304
        %p526 = pneg %p301
        %p527 = pneg %p325
        %p528 = pneg %p322
        %p529 = pneg %p346
        %p530 = pneg %p343
        %p531 = pneg %p367
        %p532 = pneg %p364
        %p533 = pneg %p388
        %p534 = pneg %p385
        %p535 = pneg %p414
        %p536 = pneg %p411
        %s537 = sand.u32 %s401, 1
        %s538 = scalar_lea.sflag [#allocation5], %s537
        %s539 = sand.u32 %s401, 1
        %s540 = scalar_lea.vmem [#allocation4], %s539
        %p541 = scmp.lt.s32.totalorder %s31, 1
        %s542 = scalar_select %p541, %s31, 1
        %s543 = smul.addr %s542, 4
        %s544 = smul.addr %s543, 8
        %s545 = scalar_lea.vmem %s0, %s544
        %v546 = vld [vmem:[%s545] sm:$0xff]
        %v547 = vld [vmem:[%s545 + $0x8] sm:$0xff]
        %v548 = vld [vmem:[%s545 + $0x10] sm:$0xff]
        %v549 = vld [vmem:[%s545 + $0x18] sm:$0xf]
        %v550 = vld [vmem:[%s1] sm:$0xff]
        %v551 = vld [vmem:[%s1 + $0x8] sm:$0xff]
        %v552 = vld [vmem:[%s1 + $0x10] sm:$0xff]
        %v553 = vld [vmem:[%s1 + $0x18] sm:$0xff]
        %v554 = vld [vmem:[%s1 + $0x20] sm:$0xff]
        %v555 = vld [vmem:[%s1 + $0x28] sm:$0xff]
        %v556 = vld [vmem:[%s1 + $0x30] sm:$0xff]
        %v557 = vld [vmem:[%s1 + $0x38] sm:$0xff]
        %v558 = vld [vmem:[%s1 + $0x40] sm:$0xff]
        %v559 = vld [vmem:[%s1 + $0x48] sm:$0xff]
        %v560 = vld [vmem:[%s1 + $0x50] sm:$0xff]
        %v561 = vld [vmem:[%s1 + $0x58] sm:$0xff]
        %v562 = vld [vmem:[%s1 + $0x60] sm:$0xff]
        %v563 = vld [vmem:[%s1 + $0x68] sm:$0xff]
        %v564 = vld [vmem:[%s1 + $0x70] sm:$0xff]
        %v565 = vld [vmem:[%s1 + $0x78] sm:$0xff]
        %v566 = vld [vmem:[%s1 + $0x80] sm:$0xff]
        %v567 = vld [vmem:[%s1 + $0x88] sm:$0xff]
        %v568 = vld [vmem:[%s1 + $0x90] sm:$0xff]
        %v569 = vld [vmem:[%s1 + $0x98] sm:$0xff]
        %v570 = vld [vmem:[%s1 + $0xa0] sm:$0xff]
        %v571 = vld [vmem:[%s1 + $0xa8] sm:$0xff]
        %v572 = vld [vmem:[%s1 + $0xb0] sm:$0xff]
        %v573 = vld [vmem:[%s1 + $0xb8] sm:$0xff]
        %v574 = vld [vmem:[%s1 + $0xc0] sm:$0xff]
        %v575 = vld [vmem:[%s1 + $0xc8] sm:$0xff]
        %v576 = vld [vmem:[%s1 + $0xd0] sm:$0xff]
        %v577 = vld [vmem:[%s1 + $0xd8] sm:$0xff]
        %v578 = vld [vmem:[%s1 + $0xe0] sm:$0xff]
        %v579 = vld [vmem:[%s1 + $0xe8] sm:$0xff]
        %v580 = vld [vmem:[%s1 + $0xf0] sm:$0xff]
        %v581 = vld [vmem:[%s1 + $0xf8] sm:$0xff]
        %v582 = vld [vmem:[%s545 + $0x1] sm:$0xff]
        %v583 = vld [vmem:[%s545 + $0x9] sm:$0xff]
        %v584 = vld [vmem:[%s545 + $0x11] sm:$0xff]
        %v585 = vld [vmem:[%s545 + $0x19] sm:$0xf]
        %s586 = scalar_lea.vmem %s1, 256
        %v587 = vld [vmem:[%s586] sm:$0xff]
        %v588 = vld [vmem:[%s586 + $0x8] sm:$0xff]
        %v589 = vld [vmem:[%s586 + $0x10] sm:$0xff]
        %v590 = vld [vmem:[%s586 + $0x18] sm:$0xff]
        %v591 = vld [vmem:[%s586 + $0x20] sm:$0xff]
        %v592 = vld [vmem:[%s586 + $0x28] sm:$0xff]
        %v593 = vld [vmem:[%s586 + $0x30] sm:$0xff]
        %v594 = vld [vmem:[%s586 + $0x38] sm:$0xff]
        %v595 = vld [vmem:[%s586 + $0x40] sm:$0xff]
        %v596 = vld [vmem:[%s586 + $0x48] sm:$0xff]
        %v597 = vld [vmem:[%s586 + $0x50] sm:$0xff]
        %v598 = vld [vmem:[%s586 + $0x58] sm:$0xff]
        %v599 = vld [vmem:[%s586 + $0x60] sm:$0xff]
        %v600 = vld [vmem:[%s586 + $0x68] sm:$0xff]
        %v601 = vld [vmem:[%s586 + $0x70] sm:$0xff]
        %v602 = vld [vmem:[%s586 + $0x78] sm:$0xff]
        %v603 = vld [vmem:[%s586 + $0x80] sm:$0xff]
        %v604 = vld [vmem:[%s586 + $0x88] sm:$0xff]
        %v605 = vld [vmem:[%s586 + $0x90] sm:$0xff]
        %v606 = vld [vmem:[%s586 + $0x98] sm:$0xff]
        %v607 = vld [vmem:[%s586 + $0xa0] sm:$0xff]
        %v608 = vld [vmem:[%s586 + $0xa8] sm:$0xff]
        %v609 = vld [vmem:[%s586 + $0xb0] sm:$0xff]
        %v610 = vld [vmem:[%s586 + $0xb8] sm:$0xff]
        %v611 = vld [vmem:[%s586 + $0xc0] sm:$0xff]
        %v612 = vld [vmem:[%s586 + $0xc8] sm:$0xff]
        %v613 = vld [vmem:[%s586 + $0xd0] sm:$0xff]
        %v614 = vld [vmem:[%s586 + $0xd8] sm:$0xff]
        %v615 = vld [vmem:[%s586 + $0xe0] sm:$0xff]
        %v616 = vld [vmem:[%s586 + $0xe8] sm:$0xff]
        %v617 = vld [vmem:[%s586 + $0xf0] sm:$0xff]
        %v618 = vld [vmem:[%s586 + $0xf8] sm:$0xff]
        %619 = vmatpush.msra.mxu0 %v617
        %620 = vmatpush.msra.mxu0 %v615
        %621 = vmatpush.msra.mxu0 %v613
        %622 = vmatpush.msra.mxu0 %v611
        %623 = vmatpush.msra.mxu0 %v609
        %624 = vmatpush.msra.mxu0 %v607
        %625 = vmatpush.msra.mxu0 %v605
        %626 = vmatpush.msra.mxu0 %v603
        %627 = vmatpush.msra.mxu0 %v601
        %628 = vmatpush.msra.mxu0 %v599
        %629 = vmatpush.msra.mxu0 %v597
        %630 = vmatpush.msra.mxu0 %v595
        %631 = vmatpush.msra.mxu0 %v593
        %632 = vmatpush.msra.mxu0 %v591
        %633 = vmatpush.msra.mxu0 %v589
        %634 = vmatpush.msra.mxu0 %v587
        %635 = vmatmul.f32.gmra.mxu0 %v582
        %v636 = vpop.f32.mrf.mxu0
        %v637 = vadd.f32 0.0, %v636
        %638 = vmatmul.f32.gmra.mxu0 %v583
        %v639 = vpop.f32.mrf.mxu0
        %v640 = vadd.f32 0.0, %v639
        %641 = vmatmul.f32.gmra.mxu0 %v584
        %v642 = vpop.f32.mrf.mxu0
        %v643 = vadd.f32 0.0, %v642
        %644 = vmatmul.f32.gmra.mxu0 %v585
        %v645 = vpop.f32.mrf.mxu0
        %v646 = vadd.f32 0.0, %v645
        %647 = vdwg.mxu0
        %648 = vmatpush.msra.mxu0 %v618
        %649 = vmatpush.msra.mxu0 %v616
        %650 = vmatpush.msra.mxu0 %v614
        %651 = vmatpush.msra.mxu0 %v612
        %652 = vmatpush.msra.mxu0 %v610
        %653 = vmatpush.msra.mxu0 %v608
        %654 = vmatpush.msra.mxu0 %v606
        %655 = vmatpush.msra.mxu0 %v604
        %656 = vmatpush.msra.mxu0 %v602
        %657 = vmatpush.msra.mxu0 %v600
        %658 = vmatpush.msra.mxu0 %v598
        %659 = vmatpush.msra.mxu0 %v596
        %660 = vmatpush.msra.mxu0 %v594
        %661 = vmatpush.msra.mxu0 %v592
        %662 = vmatpush.msra.mxu0 %v590
        %663 = vmatpush.msra.mxu0 %v588
        %664 = vmatmul.f32.gmra.mxu0 %v582
        %v665 = vpop.f32.mrf.mxu0
        %v666 = vadd.f32 0.0, %v665
        %667 = vmatmul.f32.gmra.mxu0 %v583
        %v668 = vpop.f32.mrf.mxu0
        %v669 = vadd.f32 0.0, %v668
        %670 = vmatmul.f32.gmra.mxu0 %v584
        %v671 = vpop.f32.mrf.mxu0
        %v672 = vadd.f32 0.0, %v671
        %673 = vmatmul.f32.gmra.mxu0 %v585
        %v674 = vpop.f32.mrf.mxu0
        %v675 = vadd.f32 0.0, %v674
        %676 = vdwg.mxu0
        %677 = vmatpush.msra.mxu0 %v580
        %678 = vmatpush.msra.mxu0 %v578
        %679 = vmatpush.msra.mxu0 %v576
        %680 = vmatpush.msra.mxu0 %v574
        %681 = vmatpush.msra.mxu0 %v572
        %682 = vmatpush.msra.mxu0 %v570
        %683 = vmatpush.msra.mxu0 %v568
        %684 = vmatpush.msra.mxu0 %v566
        %685 = vmatpush.msra.mxu0 %v564
        %686 = vmatpush.msra.mxu0 %v562
        %687 = vmatpush.msra.mxu0 %v560
        %688 = vmatpush.msra.mxu0 %v558
        %689 = vmatpush.msra.mxu0 %v556
        %690 = vmatpush.msra.mxu0 %v554
        %691 = vmatpush.msra.mxu0 %v552
        %692 = vmatpush.msra.mxu0 %v550
        %693 = vmatmul.f32.gmra.mxu0 %v546
        %v694 = vpop.f32.mrf.mxu0
        %v695 = vadd.f32 %v637, %v694
        %696 = vmatmul.f32.gmra.mxu0 %v547
        %v697 = vpop.f32.mrf.mxu0
        %v698 = vadd.f32 %v640, %v697
        %699 = vmatmul.f32.gmra.mxu0 %v548
        %v700 = vpop.f32.mrf.mxu0
        %v701 = vadd.f32 %v643, %v700
        %702 = vmatmul.f32.gmra.mxu0 %v549
        %v703 = vpop.f32.mrf.mxu0
        %v704 = vadd.f32 %v646, %v703
        %705 = vdwg.mxu0
        %706 = vmatpush.msra.mxu0 %v581
        %707 = vmatpush.msra.mxu0 %v579
        %708 = vmatpush.msra.mxu0 %v577
        %709 = vmatpush.msra.mxu0 %v575
        %710 = vmatpush.msra.mxu0 %v573
        %711 = vmatpush.msra.mxu0 %v571
        %712 = vmatpush.msra.mxu0 %v569
        %713 = vmatpush.msra.mxu0 %v567
        %714 = vmatpush.msra.mxu0 %v565
        %715 = vmatpush.msra.mxu0 %v563
        %716 = vmatpush.msra.mxu0 %v561
        %717 = vmatpush.msra.mxu0 %v559
        %718 = vmatpush.msra.mxu0 %v557
        %719 = vmatpush.msra.mxu0 %v555
        %720 = vmatpush.msra.mxu0 %v553
        %721 = vmatpush.msra.mxu0 %v551
        %722 = vmatmul.f32.gmra.mxu0 %v546
        %v723 = vpop.f32.mrf.mxu0
        %v724 = vadd.f32 %v666, %v723
        %725 = vmatmul.f32.gmra.mxu0 %v547
        %v726 = vpop.f32.mrf.mxu0
        %v727 = vadd.f32 %v669, %v726
        %728 = vmatmul.f32.gmra.mxu0 %v548
        %v729 = vpop.f32.mrf.mxu0
        %v730 = vadd.f32 %v672, %v729
        %731 = vmatmul.f32.gmra.mxu0 %v549
        %v732 = vpop.f32.mrf.mxu0
        %v733 = vadd.f32 %v675, %v732
        %734 = vdwg.mxu0
        %v735 = vld [vmem:[%s545 + $0x2] sm:$0xff]
        %v736 = vld [vmem:[%s545 + $0xa] sm:$0xff]
        %v737 = vld [vmem:[%s545 + $0x12] sm:$0xff]
        %v738 = vld [vmem:[%s545 + $0x1a] sm:$0xf]
        %s739 = scalar_lea.vmem %s1, 512
        %v740 = vld [vmem:[%s739] sm:$0xff]
        %v741 = vld [vmem:[%s739 + $0x8] sm:$0xff]
        %v742 = vld [vmem:[%s739 + $0x10] sm:$0xff]
        %v743 = vld [vmem:[%s739 + $0x18] sm:$0xff]
        %v744 = vld [vmem:[%s739 + $0x20] sm:$0xff]
        %v745 = vld [vmem:[%s739 + $0x28] sm:$0xff]
        %v746 = vld [vmem:[%s739 + $0x30] sm:$0xff]
        %v747 = vld [vmem:[%s739 + $0x38] sm:$0xff]
        %v748 = vld [vmem:[%s739 + $0x40] sm:$0xff]
        %v749 = vld [vmem:[%s739 + $0x48] sm:$0xff]
        %v750 = vld [vmem:[%s739 + $0x50] sm:$0xff]
        %v751 = vld [vmem:[%s739 + $0x58] sm:$0xff]
        %v752 = vld [vmem:[%s739 + $0x60] sm:$0xff]
        %v753 = vld [vmem:[%s739 + $0x68] sm:$0xff]
        %v754 = vld [vmem:[%s739 + $0x70] sm:$0xff]
        %v755 = vld [vmem:[%s739 + $0x78] sm:$0xff]
        %v756 = vld [vmem:[%s739 + $0x80] sm:$0xff]
        %v757 = vld [vmem:[%s739 + $0x88] sm:$0xff]
        %v758 = vld [vmem:[%s739 + $0x90] sm:$0xff]
        %v759 = vld [vmem:[%s739 + $0x98] sm:$0xff]
        %v760 = vld [vmem:[%s739 + $0xa0] sm:$0xff]
        %v761 = vld [vmem:[%s739 + $0xa8] sm:$0xff]
        %v762 = vld [vmem:[%s739 + $0xb0] sm:$0xff]
        %v763 = vld [vmem:[%s739 + $0xb8] sm:$0xff]
        %v764 = vld [vmem:[%s739 + $0xc0] sm:$0xff]
        %v765 = vld [vmem:[%s739 + $0xc8] sm:$0xff]
        %v766 = vld [vmem:[%s739 + $0xd0] sm:$0xff]
        %v767 = vld [vmem:[%s739 + $0xd8] sm:$0xff]
        %v768 = vld [vmem:[%s739 + $0xe0] sm:$0xff]
        %v769 = vld [vmem:[%s739 + $0xe8] sm:$0xff]
        %v770 = vld [vmem:[%s739 + $0xf0] sm:$0xff]
        %v771 = vld [vmem:[%s739 + $0xf8] sm:$0xff]
        %772 = vmatpush.msra.mxu0 %v770
        %773 = vmatpush.msra.mxu0 %v768
        %774 = vmatpush.msra.mxu0 %v766
        %775 = vmatpush.msra.mxu0 %v764
        %776 = vmatpush.msra.mxu0 %v762
        %777 = vmatpush.msra.mxu0 %v760
        %778 = vmatpush.msra.mxu0 %v758
        %779 = vmatpush.msra.mxu0 %v756
        %780 = vmatpush.msra.mxu0 %v754
        %781 = vmatpush.msra.mxu0 %v752
        %782 = vmatpush.msra.mxu0 %v750
        %783 = vmatpush.msra.mxu0 %v748
        %784 = vmatpush.msra.mxu0 %v746
        %785 = vmatpush.msra.mxu0 %v744
        %786 = vmatpush.msra.mxu0 %v742
        %787 = vmatpush.msra.mxu0 %v740
        %788 = vmatmul.f32.gmra.mxu0 %v735
        %v789 = vpop.f32.mrf.mxu0
        %v790 = vadd.f32 0.0, %v789
        %791 = vmatmul.f32.gmra.mxu0 %v736
        %v792 = vpop.f32.mrf.mxu0
        %v793 = vadd.f32 0.0, %v792
        %794 = vmatmul.f32.gmra.mxu0 %v737
        %v795 = vpop.f32.mrf.mxu0
        %v796 = vadd.f32 0.0, %v795
        %797 = vmatmul.f32.gmra.mxu0 %v738
        %v798 = vpop.f32.mrf.mxu0
        %v799 = vadd.f32 0.0, %v798
        %800 = vdwg.mxu0
        %801 = vmatpush.msra.mxu0 %v771
        %802 = vmatpush.msra.mxu0 %v769
        %803 = vmatpush.msra.mxu0 %v767
        %804 = vmatpush.msra.mxu0 %v765
        %805 = vmatpush.msra.mxu0 %v763
        %806 = vmatpush.msra.mxu0 %v761
        %807 = vmatpush.msra.mxu0 %v759
        %808 = vmatpush.msra.mxu0 %v757
        %809 = vmatpush.msra.mxu0 %v755
        %810 = vmatpush.msra.mxu0 %v753
        %811 = vmatpush.msra.mxu0 %v751
        %812 = vmatpush.msra.mxu0 %v749
        %813 = vmatpush.msra.mxu0 %v747
        %814 = vmatpush.msra.mxu0 %v745
        %815 = vmatpush.msra.mxu0 %v743
        %816 = vmatpush.msra.mxu0 %v741
        %817 = vmatmul.f32.gmra.mxu0 %v735
        %v818 = vpop.f32.mrf.mxu0
        %v819 = vadd.f32 0.0, %v818
        %820 = vmatmul.f32.gmra.mxu0 %v736
        %v821 = vpop.f32.mrf.mxu0
        %v822 = vadd.f32 0.0, %v821
        %823 = vmatmul.f32.gmra.mxu0 %v737
        %v824 = vpop.f32.mrf.mxu0
        %v825 = vadd.f32 0.0, %v824
        %826 = vmatmul.f32.gmra.mxu0 %v738
        %v827 = vpop.f32.mrf.mxu0
        %v828 = vadd.f32 0.0, %v827
        %829 = vdwg.mxu0
        %v830 = vadd.f32 %v695, %v790
        %v831 = vadd.f32 %v724, %v819
        %v832 = vadd.f32 %v698, %v793
        %v833 = vadd.f32 %v727, %v822
        %v834 = vadd.f32 %v701, %v796
        %v835 = vadd.f32 %v730, %v825
        %v836 = vadd.f32 %v704, %v799
        %v837 = vadd.f32 %v733, %v828
        %v838 = vld [vmem:[%s545 + $0x3] sm:$0xff]
        %v839 = vld [vmem:[%s545 + $0xb] sm:$0xff]
        %v840 = vld [vmem:[%s545 + $0x13] sm:$0xff]
        %v841 = vld [vmem:[%s545 + $0x1b] sm:$0xf]
        %s842 = scalar_lea.vmem %s1, 768
        %v843 = vld [vmem:[%s842] sm:$0xff]
        %v844 = vld [vmem:[%s842 + $0x8] sm:$0xff]
        %v845 = vld [vmem:[%s842 + $0x10] sm:$0xff]
        %v846 = vld [vmem:[%s842 + $0x18] sm:$0xff]
        %v847 = vld [vmem:[%s842 + $0x20] sm:$0xff]
        %v848 = vld [vmem:[%s842 + $0x28] sm:$0xff]
        %v849 = vld [vmem:[%s842 + $0x30] sm:$0xff]
        %v850 = vld [vmem:[%s842 + $0x38] sm:$0xff]
        %v851 = vld [vmem:[%s842 + $0x40] sm:$0xff]
        %v852 = vld [vmem:[%s842 + $0x48] sm:$0xff]
        %v853 = vld [vmem:[%s842 + $0x50] sm:$0xff]
        %v854 = vld [vmem:[%s842 + $0x58] sm:$0xff]
        %v855 = vld [vmem:[%s842 + $0x60] sm:$0xff]
        %v856 = vld [vmem:[%s842 + $0x68] sm:$0xff]
        %v857 = vld [vmem:[%s842 + $0x70] sm:$0xff]
        %v858 = vld [vmem:[%s842 + $0x78] sm:$0xff]
        %v859 = vld [vmem:[%s842 + $0x80] sm:$0xff]
        %v860 = vld [vmem:[%s842 + $0x88] sm:$0xff]
        %v861 = vld [vmem:[%s842 + $0x90] sm:$0xff]
        %v862 = vld [vmem:[%s842 + $0x98] sm:$0xff]
        %v863 = vld [vmem:[%s842 + $0xa0] sm:$0xff]
        %v864 = vld [vmem:[%s842 + $0xa8] sm:$0xff]
        %v865 = vld [vmem:[%s842 + $0xb0] sm:$0xff]
        %v866 = vld [vmem:[%s842 + $0xb8] sm:$0xff]
        %v867 = vld [vmem:[%s842 + $0xc0] sm:$0xff]
        %v868 = vld [vmem:[%s842 + $0xc8] sm:$0xff]
        %v869 = vld [vmem:[%s842 + $0xd0] sm:$0xff]
        %v870 = vld [vmem:[%s842 + $0xd8] sm:$0xff]
        %v871 = vld [vmem:[%s842 + $0xe0] sm:$0xff]
        %v872 = vld [vmem:[%s842 + $0xe8] sm:$0xff]
        %v873 = vld [vmem:[%s842 + $0xf0] sm:$0xff]
        %v874 = vld [vmem:[%s842 + $0xf8] sm:$0xff]
        %875 = vmatpush.msra.mxu0 %v873
        %876 = vmatpush.msra.mxu0 %v871
        %877 = vmatpush.msra.mxu0 %v869
        %878 = vmatpush.msra.mxu0 %v867
        %879 = vmatpush.msra.mxu0 %v865
        %880 = vmatpush.msra.mxu0 %v863
        %881 = vmatpush.msra.mxu0 %v861
        %882 = vmatpush.msra.mxu0 %v859
        %883 = vmatpush.msra.mxu0 %v857
        %884 = vmatpush.msra.mxu0 %v855
        %885 = vmatpush.msra.mxu0 %v853
        %886 = vmatpush.msra.mxu0 %v851
        %887 = vmatpush.msra.mxu0 %v849
        %888 = vmatpush.msra.mxu0 %v847
        %889 = vmatpush.msra.mxu0 %v845
        %890 = vmatpush.msra.mxu0 %v843
        %891 = vmatmul.f32.gmra.mxu0 %v838
        %v892 = vpop.f32.mrf.mxu0
        %v893 = vadd.f32 0.0, %v892
        %894 = vmatmul.f32.gmra.mxu0 %v839
        %v895 = vpop.f32.mrf.mxu0
        %v896 = vadd.f32 0.0, %v895
        %897 = vmatmul.f32.gmra.mxu0 %v840
        %v898 = vpop.f32.mrf.mxu0
        %v899 = vadd.f32 0.0, %v898
        %900 = vmatmul.f32.gmra.mxu0 %v841
        %v901 = vpop.f32.mrf.mxu0
        %v902 = vadd.f32 0.0, %v901
        %903 = vdwg.mxu0
        %904 = vmatpush.msra.mxu0 %v874
        %905 = vmatpush.msra.mxu0 %v872
        %906 = vmatpush.msra.mxu0 %v870
        %907 = vmatpush.msra.mxu0 %v868
        %908 = vmatpush.msra.mxu0 %v866
        %909 = vmatpush.msra.mxu0 %v864
        %910 = vmatpush.msra.mxu0 %v862
        %911 = vmatpush.msra.mxu0 %v860
        %912 = vmatpush.msra.mxu0 %v858
        %913 = vmatpush.msra.mxu0 %v856
        %914 = vmatpush.msra.mxu0 %v854
        %915 = vmatpush.msra.mxu0 %v852
        %916 = vmatpush.msra.mxu0 %v850
        %917 = vmatpush.msra.mxu0 %v848
        %918 = vmatpush.msra.mxu0 %v846
        %919 = vmatpush.msra.mxu0 %v844
        %920 = vmatmul.f32.gmra.mxu0 %v838
        %v921 = vpop.f32.mrf.mxu0
        %v922 = vadd.f32 0.0, %v921
        %923 = vmatmul.f32.gmra.mxu0 %v839
        %v924 = vpop.f32.mrf.mxu0
        %v925 = vadd.f32 0.0, %v924
        %926 = vmatmul.f32.gmra.mxu0 %v840
        %v927 = vpop.f32.mrf.mxu0
        %v928 = vadd.f32 0.0, %v927
        %929 = vmatmul.f32.gmra.mxu0 %v841
        %v930 = vpop.f32.mrf.mxu0
        %v931 = vadd.f32 0.0, %v930
        %932 = vdwg.mxu0
        %v933 = vadd.f32 %v830, %v893
        %v934 = vadd.f32 %v831, %v922
        %v935 = vadd.f32 %v832, %v896
        %v936 = vadd.f32 %v833, %v925
        %v937 = vadd.f32 %v834, %v899
        %v938 = vadd.f32 %v835, %v928
        %v939 = vadd.f32 %v836, %v902
        %v940 = vadd.f32 %v837, %v931
        %v941 = vld [vmem:[%s545 + $0x4] sm:$0xff]
        %v942 = vld [vmem:[%s545 + $0xc] sm:$0xff]
        %v943 = vld [vmem:[%s545 + $0x14] sm:$0xff]
        %v944 = vld [vmem:[%s545 + $0x1c] sm:$0xf]
        %s945 = scalar_lea.vmem %s1, 1024
        %v946 = vld [vmem:[%s945] sm:$0xff]
        %v947 = vld [vmem:[%s945 + $0x8] sm:$0xff]
        %v948 = vld [vmem:[%s945 + $0x10] sm:$0xff]
        %v949 = vld [vmem:[%s945 + $0x18] sm:$0xff]
        %v950 = vld [vmem:[%s945 + $0x20] sm:$0xff]
        %v951 = vld [vmem:[%s945 + $0x28] sm:$0xff]
        %v952 = vld [vmem:[%s945 + $0x30] sm:$0xff]
        %v953 = vld [vmem:[%s945 + $0x38] sm:$0xff]
        %v954 = vld [vmem:[%s945 + $0x40] sm:$0xff]
        %v955 = vld [vmem:[%s945 + $0x48] sm:$0xff]
        %v956 = vld [vmem:[%s945 + $0x50] sm:$0xff]
        %v957 = vld [vmem:[%s945 + $0x58] sm:$0xff]
        %v958 = vld [vmem:[%s945 + $0x60] sm:$0xff]
        %v959 = vld [vmem:[%s945 + $0x68] sm:$0xff]
        %v960 = vld [vmem:[%s945 + $0x70] sm:$0xff]
        %v961 = vld [vmem:[%s945 + $0x78] sm:$0xff]
        %v962 = vld [vmem:[%s945 + $0x80] sm:$0xff]
        %v963 = vld [vmem:[%s945 + $0x88] sm:$0xff]
        %v964 = vld [vmem:[%s945 + $0x90] sm:$0xff]
        %v965 = vld [vmem:[%s945 + $0x98] sm:$0xff]
        %v966 = vld [vmem:[%s945 + $0xa0] sm:$0xff]
        %v967 = vld [vmem:[%s945 + $0xa8] sm:$0xff]
        %v968 = vld [vmem:[%s945 + $0xb0] sm:$0xff]
        %v969 = vld [vmem:[%s945 + $0xb8] sm:$0xff]
        %v970 = vld [vmem:[%s945 + $0xc0] sm:$0xff]
        %v971 = vld [vmem:[%s945 + $0xc8] sm:$0xff]
        %v972 = vld [vmem:[%s945 + $0xd0] sm:$0xff]
        %v973 = vld [vmem:[%s945 + $0xd8] sm:$0xff]
        %v974 = vld [vmem:[%s945 + $0xe0] sm:$0xff]
        %v975 = vld [vmem:[%s945 + $0xe8] sm:$0xff]
        %v976 = vld [vmem:[%s945 + $0xf0] sm:$0xff]
        %v977 = vld [vmem:[%s945 + $0xf8] sm:$0xff]
        %978 = vmatpush.msra.mxu0 %v976
        %979 = vmatpush.msra.mxu0 %v974
        %980 = vmatpush.msra.mxu0 %v972
        %981 = vmatpush.msra.mxu0 %v970
        %982 = vmatpush.msra.mxu0 %v968
        %983 = vmatpush.msra.mxu0 %v966
        %984 = vmatpush.msra.mxu0 %v964
        %985 = vmatpush.msra.mxu0 %v962
        %986 = vmatpush.msra.mxu0 %v960
        %987 = vmatpush.msra.mxu0 %v958
        %988 = vmatpush.msra.mxu0 %v956
        %989 = vmatpush.msra.mxu0 %v954
        %990 = vmatpush.msra.mxu0 %v952
        %991 = vmatpush.msra.mxu0 %v950
        %992 = vmatpush.msra.mxu0 %v948
        %993 = vmatpush.msra.mxu0 %v946
        %994 = vmatmul.f32.gmra.mxu0 %v941
        %v995 = vpop.f32.mrf.mxu0
        %v996 = vadd.f32 0.0, %v995
        %997 = vmatmul.f32.gmra.mxu0 %v942
        %v998 = vpop.f32.mrf.mxu0
        %v999 = vadd.f32 0.0, %v998
        %1000 = vmatmul.f32.gmra.mxu0 %v943
        %v1001 = vpop.f32.mrf.mxu0
        %v1002 = vadd.f32 0.0, %v1001
        %1003 = vmatmul.f32.gmra.mxu0 %v944
        %v1004 = vpop.f32.mrf.mxu0
        %v1005 = vadd.f32 0.0, %v1004
        %1006 = vdwg.mxu0
        %1007 = vmatpush.msra.mxu0 %v977
        %1008 = vmatpush.msra.mxu0 %v975
        %1009 = vmatpush.msra.mxu0 %v973
        %1010 = vmatpush.msra.mxu0 %v971
        %1011 = vmatpush.msra.mxu0 %v969
        %1012 = vmatpush.msra.mxu0 %v967
        %1013 = vmatpush.msra.mxu0 %v965
        %1014 = vmatpush.msra.mxu0 %v963
        %1015 = vmatpush.msra.mxu0 %v961
        %1016 = vmatpush.msra.mxu0 %v959
        %1017 = vmatpush.msra.mxu0 %v957
        %1018 = vmatpush.msra.mxu0 %v955
        %1019 = vmatpush.msra.mxu0 %v953
        %1020 = vmatpush.msra.mxu0 %v951
        %1021 = vmatpush.msra.mxu0 %v949
        %1022 = vmatpush.msra.mxu0 %v947
        %1023 = vmatmul.f32.gmra.mxu0 %v941
        %v1024 = vpop.f32.mrf.mxu0
        %v1025 = vadd.f32 0.0, %v1024
        %1026 = vmatmul.f32.gmra.mxu0 %v942
        %v1027 = vpop.f32.mrf.mxu0
        %v1028 = vadd.f32 0.0, %v1027
        %1029 = vmatmul.f32.gmra.mxu0 %v943
        %v1030 = vpop.f32.mrf.mxu0
        %v1031 = vadd.f32 0.0, %v1030
        %1032 = vmatmul.f32.gmra.mxu0 %v944
        %v1033 = vpop.f32.mrf.mxu0
        %v1034 = vadd.f32 0.0, %v1033
        %1035 = vdwg.mxu0
        %v1036 = vadd.f32 %v933, %v996
        %v1037 = vadd.f32 %v934, %v1025
        %v1038 = vadd.f32 %v935, %v999
        %v1039 = vadd.f32 %v936, %v1028
        %v1040 = vadd.f32 %v937, %v1002
        %v1041 = vadd.f32 %v938, %v1031
        %v1042 = vadd.f32 %v939, %v1005
        %v1043 = vadd.f32 %v940, %v1034
        %v1044 = vld [vmem:[%s2] sm:$0x3]
        %v1046 = vperm.slane %v1044, 0
        %v1047 = vperm.slane %v1044, 1
        %v1050 = vadd.f32 %v1036, %v1046
        %v1051 = vadd.f32 %v1037, %v1047
        %v1052 = vadd.f32 %v1038, %v1046
        %v1053 = vadd.f32 %v1039, %v1047
        %v1054 = vadd.f32 %v1040, %v1046
        %v1055 = vadd.f32 %v1041, %v1047
        %v1056 = vadd.f32 %v1042, %v1046
        %v1057 = vadd.f32 %v1043, %v1047
        %v1058 = vmax.f32 %v1050, 0.0
        %v1059 = vmax.f32 %v1051, 0.0
        %v1060 = vmax.f32 %v1052, 0.0
        %v1061 = vmax.f32 %v1053, 0.0
        %v1062 = vmax.f32 %v1054, 0.0
        %v1063 = vmax.f32 %v1055, 0.0
        %v1064 = vmax.f32 %v1056, 0.0
        %v1065 = vmax.f32 %v1057, 0.0
        %v1066 = vld [vmem:[%s5] sm:$0xff]
        %v1067 = vld [vmem:[%s5 + $0x8] sm:$0xff]
        %v1068 = vld [vmem:[%s5 + $0x10] sm:$0xff]
        %v1069 = vld [vmem:[%s5 + $0x18] sm:$0xff]
        %v1070 = vld [vmem:[%s5 + $0x20] sm:$0xff]
        %v1071 = vld [vmem:[%s5 + $0x28] sm:$0xff]
        %v1072 = vld [vmem:[%s5 + $0x30] sm:$0xff]
        %v1073 = vld [vmem:[%s5 + $0x38] sm:$0xff]
        %v1074 = vld [vmem:[%s5 + $0x40] sm:$0xff]
        %v1075 = vld [vmem:[%s5 + $0x48] sm:$0xff]
        %v1076 = vld [vmem:[%s5 + $0x50] sm:$0xff]
        %v1077 = vld [vmem:[%s5 + $0x58] sm:$0xff]
        %v1078 = vld [vmem:[%s5 + $0x60] sm:$0xff]
        %v1079 = vld [vmem:[%s5 + $0x68] sm:$0xff]
        %v1080 = vld [vmem:[%s5 + $0x70] sm:$0xff]
        %v1081 = vld [vmem:[%s5 + $0x78] sm:$0xff]
        %v1082 = vld [vmem:[%s5 + $0x80] sm:$0xff]
        %v1083 = vld [vmem:[%s5 + $0x88] sm:$0xff]
        %v1084 = vld [vmem:[%s5 + $0x90] sm:$0xff]
        %v1085 = vld [vmem:[%s5 + $0x98] sm:$0xff]
        %v1086 = vld [vmem:[%s5 + $0xa0] sm:$0xff]
        %v1087 = vld [vmem:[%s5 + $0xa8] sm:$0xff]
        %v1088 = vld [vmem:[%s5 + $0xb0] sm:$0xff]
        %v1089 = vld [vmem:[%s5 + $0xb8] sm:$0xff]
        %v1090 = vld [vmem:[%s5 + $0xc0] sm:$0xff]
        %v1091 = vld [vmem:[%s5 + $0xc8] sm:$0xff]
        %v1092 = vld [vmem:[%s5 + $0xd0] sm:$0xff]
        %v1093 = vld [vmem:[%s5 + $0xd8] sm:$0xff]
        %v1094 = vld [vmem:[%s5 + $0xe0] sm:$0xff]
        %v1095 = vld [vmem:[%s5 + $0xe8] sm:$0xff]
        %v1096 = vld [vmem:[%s5 + $0xf0] sm:$0xff]
        %v1097 = vld [vmem:[%s5 + $0xf8] sm:$0xff]
        %v1098 = vld [vmem:[%s5 + $0x100] sm:$0xff]
        %v1099 = vld [vmem:[%s5 + $0x108] sm:$0xff]
        %v1100 = vld [vmem:[%s5 + $0x110] sm:$0xff]
        %v1101 = vld [vmem:[%s5 + $0x118] sm:$0xff]
        %v1102 = vld [vmem:[%s5 + $0x120] sm:$0xff]
        %v1103 = vld [vmem:[%s5 + $0x128] sm:$0xff]
        %v1104 = vld [vmem:[%s5 + $0x130] sm:$0xff]
        %v1105 = vld [vmem:[%s5 + $0x138] sm:$0xff]
        %v1106 = vld [vmem:[%s5 + $0x140] sm:$0xff]
        %v1107 = vld [vmem:[%s5 + $0x148] sm:$0xff]
        %v1108 = vld [vmem:[%s5 + $0x150] sm:$0xff]
        %v1109 = vld [vmem:[%s5 + $0x158] sm:$0xff]
        %v1110 = vld [vmem:[%s5 + $0x160] sm:$0xff]
        %v1111 = vld [vmem:[%s5 + $0x168] sm:$0xff]
        %v1112 = vld [vmem:[%s5 + $0x170] sm:$0xff]
        %v1113 = vld [vmem:[%s5 + $0x178] sm:$0xff]
        %v1114 = vld [vmem:[%s5 + $0x180] sm:$0xff]
        %v1115 = vld [vmem:[%s5 + $0x188] sm:$0xff]
        %v1116 = vld [vmem:[%s5 + $0x190] sm:$0xff]
        %v1117 = vld [vmem:[%s5 + $0x198] sm:$0xff]
        %v1118 = vld [vmem:[%s5 + $0x1a0] sm:$0xff]
        %v1119 = vld [vmem:[%s5 + $0x1a8] sm:$0xff]
        %v1120 = vld [vmem:[%s5 + $0x1b0] sm:$0xff]
        %v1121 = vld [vmem:[%s5 + $0x1b8] sm:$0xff]
        %vm1122 = vcmask 785408
        %v1124 = vsel %vm1122, %v1059, 0
        %v1127 = vsel %vm1122, %v1061, 0
        %v1130 = vsel %vm1122, %v1063, 0
        %v1133 = vsel %vm1122, %v1065, 0
        %1135 = vmatpush.msra.mxu0 %v1096
        %1136 = vmatpush.msra.mxu0 %v1094
        %1137 = vmatpush.msra.mxu0 %v1092
        %1138 = vmatpush.msra.mxu0 %v1090
        %1139 = vmatpush.msra.mxu0 %v1088
        %1140 = vmatpush.msra.mxu0 %v1086
        %1141 = vmatpush.msra.mxu0 %v1084
        %1142 = vmatpush.msra.mxu0 %v1082
        %1143 = vmatpush.msra.mxu0 %v1080
        %1144 = vmatpush.msra.mxu0 %v1078
        %1145 = vmatpush.msra.mxu0 %v1076
        %1146 = vmatpush.msra.mxu0 %v1074
        %1147 = vmatpush.msra.mxu0 %v1072
        %1148 = vmatpush.msra.mxu0 %v1070
        %1149 = vmatpush.msra.mxu0 %v1068
        %1150 = vmatpush.msra.mxu0 %v1066
        %1151 = vmatmul.f32.gmra.mxu0 %v1058
        %v1152 = vpop.f32.mrf.mxu0
        %v1153 = vadd.f32 0.0, %v1152
        %1154 = vmatmul.f32.gmra.mxu0 %v1060
        %v1155 = vpop.f32.mrf.mxu0
        %v1156 = vadd.f32 0.0, %v1155
        %1157 = vmatmul.f32.gmra.mxu0 %v1062
        %v1158 = vpop.f32.mrf.mxu0
        %v1159 = vadd.f32 0.0, %v1158
        %1160 = vmatmul.f32.gmra.mxu0 %v1064
        %v1161 = vpop.f32.mrf.mxu0
        %v1162 = vadd.f32 0.0, %v1161
        %1163 = vdwg.mxu0
        %1164 = vmatpush.msra.mxu0 0.0
        %1165 = vmatpush.msra.mxu0 0.0
        %1166 = vmatpush.msra.mxu0 0.0
        %1167 = vmatpush.msra.mxu0 0.0
        %1168 = vmatpush.msra.mxu0 %v1120
        %1169 = vmatpush.msra.mxu0 %v1118
        %1170 = vmatpush.msra.mxu0 %v1116
        %1171 = vmatpush.msra.mxu0 %v1114
        %1172 = vmatpush.msra.mxu0 %v1112
        %1173 = vmatpush.msra.mxu0 %v1110
        %1174 = vmatpush.msra.mxu0 %v1108
        %1175 = vmatpush.msra.mxu0 %v1106
        %1176 = vmatpush.msra.mxu0 %v1104
        %1177 = vmatpush.msra.mxu0 %v1102
        %1178 = vmatpush.msra.mxu0 %v1100
        %1179 = vmatpush.msra.mxu0 %v1098
        %1180 = vmatmul.f32.gmra.mxu0 %v1124
        %v1181 = vpop.f32.mrf.mxu0
        %v1182 = vadd.f32 %v1153, %v1181
        %1183 = vmatmul.f32.gmra.mxu0 %v1127
        %v1184 = vpop.f32.mrf.mxu0
        %v1185 = vadd.f32 %v1156, %v1184
        %1186 = vmatmul.f32.gmra.mxu0 %v1130
        %v1187 = vpop.f32.mrf.mxu0
        %v1188 = vadd.f32 %v1159, %v1187
        %1189 = vmatmul.f32.gmra.mxu0 %v1133
        %v1190 = vpop.f32.mrf.mxu0
        %v1191 = vadd.f32 %v1162, %v1190
        %1192 = vdwg.mxu0
        %1193 = vmatpush.msra.mxu0 %v1097
        %1194 = vmatpush.msra.mxu0 %v1095
        %1195 = vmatpush.msra.mxu0 %v1093
        %1196 = vmatpush.msra.mxu0 %v1091
        %1197 = vmatpush.msra.mxu0 %v1089
        %1198 = vmatpush.msra.mxu0 %v1087
        %1199 = vmatpush.msra.mxu0 %v1085
        %1200 = vmatpush.msra.mxu0 %v1083
        %1201 = vmatpush.msra.mxu0 %v1081
        %1202 = vmatpush.msra.mxu0 %v1079
        %1203 = vmatpush.msra.mxu0 %v1077
        %1204 = vmatpush.msra.mxu0 %v1075
        %1205 = vmatpush.msra.mxu0 %v1073
        %1206 = vmatpush.msra.mxu0 %v1071
        %1207 = vmatpush.msra.mxu0 %v1069
        %1208 = vmatpush.msra.mxu0 %v1067
        %1209 = vmatmul.f32.gmra.mxu0 %v1058
        %v1210 = vpop.f32.mrf.mxu0
        %v1211 = vadd.f32 0.0, %v1210
        %1212 = vmatmul.f32.gmra.mxu0 %v1060
        %v1213 = vpop.f32.mrf.mxu0
        %v1214 = vadd.f32 0.0, %v1213
        %1215 = vmatmul.f32.gmra.mxu0 %v1062
        %v1216 = vpop.f32.mrf.mxu0
        %v1217 = vadd.f32 0.0, %v1216
        %1218 = vmatmul.f32.gmra.mxu0 %v1064
        %v1219 = vpop.f32.mrf.mxu0
        %v1220 = vadd.f32 0.0, %v1219
        %1221 = vdwg.mxu0
        %1222 = vmatpush.msra.mxu0 0.0
        %1223 = vmatpush.msra.mxu0 0.0
        %1224 = vmatpush.msra.mxu0 0.0
        %1225 = vmatpush.msra.mxu0 0.0
        %1226 = vmatpush.msra.mxu0 %v1121
        %1227 = vmatpush.msra.mxu0 %v1119
        %1228 = vmatpush.msra.mxu0 %v1117
        %1229 = vmatpush.msra.mxu0 %v1115
        %1230 = vmatpush.msra.mxu0 %v1113
        %1231 = vmatpush.msra.mxu0 %v1111
        %1232 = vmatpush.msra.mxu0 %v1109
        %1233 = vmatpush.msra.mxu0 %v1107
        %1234 = vmatpush.msra.mxu0 %v1105
        %1235 = vmatpush.msra.mxu0 %v1103
        %1236 = vmatpush.msra.mxu0 %v1101
        %1237 = vmatpush.msra.mxu0 %v1099
        %1238 = vmatmul.f32.gmra.mxu0 %v1124
        %v1239 = vpop.f32.mrf.mxu0
        %v1240 = vadd.f32 %v1211, %v1239
        %1241 = vmatmul.f32.gmra.mxu0 %v1127
        %v1242 = vpop.f32.mrf.mxu0
        %v1243 = vadd.f32 %v1214, %v1242
        %1244 = vmatmul.f32.gmra.mxu0 %v1130
        %v1245 = vpop.f32.mrf.mxu0
        %v1246 = vadd.f32 %v1217, %v1245
        %1247 = vmatmul.f32.gmra.mxu0 %v1133
        %v1248 = vpop.f32.mrf.mxu0
        %v1249 = vadd.f32 %v1220, %v1248
        %1250 = vdwg.mxu0
        %v1251 = vmax.f32 %v1058, %v1182
        %v1252 = vmax.f32 %v1059, %v1240
        %v1253 = vmax.f32 %v1060, %v1185
        %v1254 = vmax.f32 %v1061, %v1243
        %v1255 = vmax.f32 %v1062, %v1188
        %v1256 = vmax.f32 %v1063, %v1246
        %v1257 = vmax.f32 %v1064, %v1191
        %v1258 = vmax.f32 %v1065, %v1249
        %v1259 = vld [vmem:[%s3] sm:$0xff]
        %v1260 = vld [vmem:[%s3 + $0x8] sm:$0x3f]
        %vm1261 = vcmask 228352
        %v1263 = vsel %vm1261, %v1259, 0
        %v1266 = vsel %vm1261, %v1260, 0
        %vm1268 = vcmask 1043456
        %v1270 = vsel %vm1268, %v1257, 0
        %v1273 = vsel %vm1268, %v1258, 0
        %1275 = vmatpush.msra.mxu0 0.0
        %1276 = vmatpush.msra.mxu0 0.0
        %1277 = vmatpush.msra.mxu0 0.0
        %1278 = vmatpush.msra.mxu0 0.0
        %1279 = vmatpush.msra.mxu0 0.0
        %1280 = vmatpush.msra.mxu0 0.0
        %1281 = vmatpush.msra.mxu0 0.0
        %1282 = vmatpush.msra.mxu0 0.0
        %1283 = vmatpush.msra.mxu0 0.0
        %1284 = vmatpush.msra.mxu0 0.0
        %1285 = vmatpush.msra.mxu0 0.0
        %1286 = vmatpush.msra.mxu0 0.0
        %1287 = vmatpush.msra.mxu0 %v1270
        %1288 = vmatpush.msra.mxu0 %v1255
        %1289 = vmatpush.msra.mxu0 %v1253
        %1290 = vmatpush.msra.mxu0 %v1251
        %1291 = vmatmul.f32.gmra.mxu0 %v1263
        %v1292 = vpop.f32.mrf.mxu0
        %v1293 = vadd.f32 0.0, %v1292
        %1294 = vmatmul.f32.gmra.mxu0 %v1266
        %v1295 = vpop.f32.mrf.mxu0
        %v1296 = vadd.f32 0.0, %v1295
        %1297 = vdwg.mxu0
        %1298 = vmatpush.msra.mxu0 0.0
        %1299 = vmatpush.msra.mxu0 0.0
        %1300 = vmatpush.msra.mxu0 0.0
        %1301 = vmatpush.msra.mxu0 0.0
        %1302 = vmatpush.msra.mxu0 0.0
        %1303 = vmatpush.msra.mxu0 0.0
        %1304 = vmatpush.msra.mxu0 0.0
        %1305 = vmatpush.msra.mxu0 0.0
        %1306 = vmatpush.msra.mxu0 0.0
        %1307 = vmatpush.msra.mxu0 0.0
        %1308 = vmatpush.msra.mxu0 0.0
        %1309 = vmatpush.msra.mxu0 0.0
        %1310 = vmatpush.msra.mxu0 %v1273
        %1311 = vmatpush.msra.mxu0 %v1256
        %1312 = vmatpush.msra.mxu0 %v1254
        %1313 = vmatpush.msra.mxu0 %v1252
        %1314 = vmatmul.f32.gmra.mxu0 %v1263
        %v1315 = vpop.f32.mrf.mxu0
        %v1316 = vadd.f32 0.0, %v1315
        %1317 = vmatmul.f32.gmra.mxu0 %v1266
        %v1318 = vpop.f32.mrf.mxu0
        %v1319 = vadd.f32 0.0, %v1318
        %1320 = vdwg.mxu0
        %v1321 = vld [vmem:[%s4] sm:$0xff]
        %v1322 = vld [vmem:[%s4 + $0x8] sm:$0x3f]
        %v1324 = vsel %vm1261, %v1321, 0
        %v1327 = vsel %vm1261, %v1322, 0
        %1329 = vmatpush.msra.mxu0 0.0
        %1330 = vmatpush.msra.mxu0 0.0
        %1331 = vmatpush.msra.mxu0 0.0
        %1332 = vmatpush.msra.mxu0 0.0
        %1333 = vmatpush.msra.mxu0 0.0
        %1334 = vmatpush.msra.mxu0 0.0
        %1335 = vmatpush.msra.mxu0 0.0
        %1336 = vmatpush.msra.mxu0 0.0
        %1337 = vmatpush.msra.mxu0 0.0
        %1338 = vmatpush.msra.mxu0 0.0
        %1339 = vmatpush.msra.mxu0 0.0
        %1340 = vmatpush.msra.mxu0 0.0
        %1341 = vmatpush.msra.mxu0 %v1270
        %1342 = vmatpush.msra.mxu0 %v1255
        %1343 = vmatpush.msra.mxu0 %v1253
        %1344 = vmatpush.msra.mxu0 %v1251
        %1345 = vmatmul.f32.gmra.mxu0 %v1324
        %v1346 = vpop.f32.mrf.mxu0
        %v1347 = vadd.f32 0.0, %v1346
        %1348 = vmatmul.f32.gmra.mxu0 %v1327
        %v1349 = vpop.f32.mrf.mxu0
        %v1350 = vadd.f32 0.0, %v1349
        %1351 = vdwg.mxu0
        %1352 = vmatpush.msra.mxu0 0.0
        %1353 = vmatpush.msra.mxu0 0.0
        %1354 = vmatpush.msra.mxu0 0.0
        %1355 = vmatpush.msra.mxu0 0.0
        %1356 = vmatpush.msra.mxu0 0.0
        %1357 = vmatpush.msra.mxu0 0.0
        %1358 = vmatpush.msra.mxu0 0.0
        %1359 = vmatpush.msra.mxu0 0.0
        %1360 = vmatpush.msra.mxu0 0.0
        %1361 = vmatpush.msra.mxu0 0.0
        %1362 = vmatpush.msra.mxu0 0.0
        %1363 = vmatpush.msra.mxu0 0.0
        %1364 = vmatpush.msra.mxu0 %v1273
        %1365 = vmatpush.msra.mxu0 %v1256
        %1366 = vmatpush.msra.mxu0 %v1254
        %1367 = vmatpush.msra.mxu0 %v1252
        %1368 = vmatmul.f32.gmra.mxu0 %v1324
        %v1369 = vpop.f32.mrf.mxu0
        %v1370 = vadd.f32 0.0, %v1369
        %1371 = vmatmul.f32.gmra.mxu0 %v1327
        %v1372 = vpop.f32.mrf.mxu0
        %v1373 = vadd.f32 0.0, %v1372
        %1374 = vdwg.mxu0
        %v1375 = vmax.f32 %v1293, %v1347
        %v1376 = vmax.f32 %v1316, %v1370
        %v1377 = vmax.f32 %v1296, %v1350
        %v1378 = vmax.f32 %v1319, %v1373
        %1379 = vst [vmem:[#allocation2] sm:$0xff] %v1375
        %1380 = vst.msk [vmem:[#allocation2 + $0x8] sm:$0xff] %vm1122, %v1376
        %1381 = vst [vmem:[#allocation2 + $0x10] sm:$0x3f] %v1377
        %vm1382 = vcmask 783360
        %1383 = vst.msk [vmem:[#allocation2 + $0x18] sm:$0x3f] %vm1382, %v1378
        %v1384 = vld [vmem:[#allocation2] sm:$0xff]
        %v1385 = vld [vmem:[#allocation2 + $0x8] sm:$0xff]
        %v1386 = vld [vmem:[#allocation2 + $0x10] sm:$0x3]
        %v1387 = vld [vmem:[#allocation2 + $0x18] sm:$0x3]
        %v1388 = vld [vmem:[%s6] sm:$0xff]
        %v1389 = vld [vmem:[%s6 + $0x8] sm:$0xff]
        %v1390 = vld [vmem:[%s6 + $0x10] sm:$0xff]
        %v1391 = vld [vmem:[%s6 + $0x18] sm:$0xff]
        %v1392 = vld [vmem:[%s6 + $0x20] sm:$0xff]
        %v1393 = vld [vmem:[%s6 + $0x28] sm:$0xff]
        %v1394 = vld [vmem:[%s6 + $0x30] sm:$0xff]
        %v1395 = vld [vmem:[%s6 + $0x38] sm:$0xff]
        %v1396 = vld [vmem:[%s6 + $0x40] sm:$0xff]
        %v1397 = vld [vmem:[%s6 + $0x48] sm:$0xff]
        %v1398 = vld [vmem:[%s6 + $0x50] sm:$0xff]
        %v1399 = vld [vmem:[%s6 + $0x58] sm:$0xff]
        %v1400 = vld [vmem:[%s6 + $0x60] sm:$0xff]
        %v1401 = vld [vmem:[%s6 + $0x68] sm:$0xff]
        %v1402 = vld [vmem:[%s6 + $0x70] sm:$0xff]
        %v1403 = vld [vmem:[%s6 + $0x78] sm:$0xff]
        %v1404 = vld [vmem:[%s6 + $0x80] sm:$0xff]
        %v1405 = vld [vmem:[%s6 + $0x88] sm:$0xff]
        %v1406 = vld [vmem:[%s6 + $0x90] sm:$0xff]
        %v1407 = vld [vmem:[%s6 + $0x98] sm:$0xff]
        %v1408 = vld [vmem:[%s6 + $0xa0] sm:$0xff]
        %v1409 = vld [vmem:[%s6 + $0xa8] sm:$0xff]
        %v1410 = vld [vmem:[%s6 + $0xb0] sm:$0xff]
        %v1411 = vld [vmem:[%s6 + $0xb8] sm:$0xff]
        %v1412 = vld [vmem:[%s6 + $0xc0] sm:$0xff]
        %v1413 = vld [vmem:[%s6 + $0xc8] sm:$0xff]
        %v1414 = vld [vmem:[%s6 + $0xd0] sm:$0xff]
        %v1415 = vld [vmem:[%s6 + $0xd8] sm:$0xff]
        %v1416 = vld [vmem:[%s6 + $0xe0] sm:$0xff]
        %v1417 = vld [vmem:[%s6 + $0xe8] sm:$0xff]
        %v1418 = vld [vmem:[%s6 + $0xf0] sm:$0xff]
        %v1419 = vld [vmem:[%s6 + $0xf8] sm:$0xff]
        %v1420 = vld [vmem:[%s6 + $0x100] sm:$0xff]
        %v1421 = vld [vmem:[%s6 + $0x108] sm:$0xff]
        %v1422 = vld [vmem:[%s6 + $0x110] sm:$0xff]
        %v1423 = vld [vmem:[%s6 + $0x118] sm:$0xff]
        %v1424 = vld [vmem:[%s6 + $0x120] sm:$0xff]
        %v1425 = vld [vmem:[%s6 + $0x128] sm:$0xff]
        %v1426 = vld [vmem:[%s6 + $0x130] sm:$0xff]
        %v1427 = vld [vmem:[%s6 + $0x138] sm:$0xff]
        %v1428 = vld [vmem:[%s6 + $0x140] sm:$0xff]
        %v1429 = vld [vmem:[%s6 + $0x148] sm:$0xff]
        %v1430 = vld [vmem:[%s6 + $0x150] sm:$0xff]
        %v1431 = vld [vmem:[%s6 + $0x158] sm:$0xff]
        %v1432 = vld [vmem:[%s6 + $0x160] sm:$0xff]
        %v1433 = vld [vmem:[%s6 + $0x168] sm:$0xff]
        %v1434 = vld [vmem:[%s6 + $0x170] sm:$0xff]
        %v1435 = vld [vmem:[%s6 + $0x178] sm:$0xff]
        %v1436 = vld [vmem:[%s6 + $0x180] sm:$0xff]
        %v1437 = vld [vmem:[%s6 + $0x188] sm:$0xff]
        %v1438 = vld [vmem:[%s6 + $0x190] sm:$0xff]
        %v1439 = vld [vmem:[%s6 + $0x198] sm:$0xff]
        %v1440 = vld [vmem:[%s6 + $0x1a0] sm:$0xff]
        %v1441 = vld [vmem:[%s6 + $0x1a8] sm:$0xff]
        %v1442 = vld [vmem:[%s6 + $0x1b0] sm:$0xff]
        %v1443 = vld [vmem:[%s6 + $0x1b8] sm:$0xff]
        %v1444 = vld [vmem:[#allocation2] sm:$0xfe]
        %v1445 = vld [vmem:[#allocation2 + $0x8] sm:$0xfe]
        %v1446 = vld [vmem:[#allocation2 + $0x10] sm:$0x7]
        %v1447 = vld [vmem:[#allocation2 + $0x18] sm:$0x7]
        %s1448 = scalar_lea.vmem %s6, 448
        %v1449 = vld [vmem:[%s1448] sm:$0xff]
        %v1450 = vld [vmem:[%s1448 + $0x8] sm:$0xff]
        %v1451 = vld [vmem:[%s1448 + $0x10] sm:$0xff]
        %v1452 = vld [vmem:[%s1448 + $0x18] sm:$0xff]
        %v1453 = vld [vmem:[%s1448 + $0x20] sm:$0xff]
        %v1454 = vld [vmem:[%s1448 + $0x28] sm:$0xff]
        %v1455 = vld [vmem:[%s1448 + $0x30] sm:$0xff]
        %v1456 = vld [vmem:[%s1448 + $0x38] sm:$0xff]
        %v1457 = vld [vmem:[%s1448 + $0x40] sm:$0xff]
        %v1458 = vld [vmem:[%s1448 + $0x48] sm:$0xff]
        %v1459 = vld [vmem:[%s1448 + $0x50] sm:$0xff]
        %v1460 = vld [vmem:[%s1448 + $0x58] sm:$0xff]
        %v1461 = vld [vmem:[%s1448 + $0x60] sm:$0xff]
        %v1462 = vld [vmem:[%s1448 + $0x68] sm:$0xff]
        %v1463 = vld [vmem:[%s1448 + $0x70] sm:$0xff]
        %v1464 = vld [vmem:[%s1448 + $0x78] sm:$0xff]
        %v1465 = vld [vmem:[%s1448 + $0x80] sm:$0xff]
        %v1466 = vld [vmem:[%s1448 + $0x88] sm:$0xff]
        %v1467 = vld [vmem:[%s1448 + $0x90] sm:$0xff]
        %v1468 = vld [vmem:[%s1448 + $0x98] sm:$0xff]
        %v1469 = vld [vmem:[%s1448 + $0xa0] sm:$0xff]
        %v1470 = vld [vmem:[%s1448 + $0xa8] sm:$0xff]
        %v1471 = vld [vmem:[%s1448 + $0xb0] sm:$0xff]
        %v1472 = vld [vmem:[%s1448 + $0xb8] sm:$0xff]
        %v1473 = vld [vmem:[%s1448 + $0xc0] sm:$0xff]
        %v1474 = vld [vmem:[%s1448 + $0xc8] sm:$0xff]
        %v1475 = vld [vmem:[%s1448 + $0xd0] sm:$0xff]
        %v1476 = vld [vmem:[%s1448 + $0xd8] sm:$0xff]
        %v1477 = vld [vmem:[%s1448 + $0xe0] sm:$0xff]
        %v1478 = vld [vmem:[%s1448 + $0xe8] sm:$0xff]
        %v1479 = vld [vmem:[%s1448 + $0xf0] sm:$0xff]
        %v1480 = vld [vmem:[%s1448 + $0xf8] sm:$0xff]
        %v1481 = vld [vmem:[%s1448 + $0x100] sm:$0xff]
        %v1482 = vld [vmem:[%s1448 + $0x108] sm:$0xff]
        %v1483 = vld [vmem:[%s1448 + $0x110] sm:$0xff]
        %v1484 = vld [vmem:[%s1448 + $0x118] sm:$0xff]
        %v1485 = vld [vmem:[%s1448 + $0x120] sm:$0xff]
        %v1486 = vld [vmem:[%s1448 + $0x128] sm:$0xff]
        %v1487 = vld [vmem:[%s1448 + $0x130] sm:$0xff]
        %v1488 = vld [vmem:[%s1448 + $0x138] sm:$0xff]
        %v1489 = vld [vmem:[%s1448 + $0x140] sm:$0xff]
        %v1490 = vld [vmem:[%s1448 + $0x148] sm:$0xff]
        %v1491 = vld [vmem:[%s1448 + $0x150] sm:$0xff]
        %v1492 = vld [vmem:[%s1448 + $0x158] sm:$0xff]
        %v1493 = vld [vmem:[%s1448 + $0x160] sm:$0xff]
        %v1494 = vld [vmem:[%s1448 + $0x168] sm:$0xff]
        %v1495 = vld [vmem:[%s1448 + $0x170] sm:$0xff]
        %v1496 = vld [vmem:[%s1448 + $0x178] sm:$0xff]
        %v1497 = vld [vmem:[%s1448 + $0x180] sm:$0xff]
        %v1498 = vld [vmem:[%s1448 + $0x188] sm:$0xff]
        %v1499 = vld [vmem:[%s1448 + $0x190] sm:$0xff]
        %v1500 = vld [vmem:[%s1448 + $0x198] sm:$0xff]
        %v1501 = vld [vmem:[%s1448 + $0x1a0] sm:$0xff]
        %v1502 = vld [vmem:[%s1448 + $0x1a8] sm:$0xff]
        %v1503 = vld [vmem:[%s1448 + $0x1b0] sm:$0xff]
        %v1504 = vld [vmem:[%s1448 + $0x1b8] sm:$0xff]
        %vm1509 = vcmask 1046528
        %v1510 = vrot.slane %v1444, 1
        %v1511 = vrot.slane %v1446, 1
        %v1512 = vsel %vm1509, %v1510, %v1511
        %v1513 = vrot.slane %v1445, 1
        %v1514 = vrot.slane %v1447, 1
        %v1515 = vsel %vm1509, %v1513, %v1514
        %v1518 = vsel %vm1122, %v1515, 0
        %v1520 = vsel %vm1122, %v1514, 0
        %1522 = vmatpush.msra.mxu0 %v1479
        %1523 = vmatpush.msra.mxu0 %v1477
        %1524 = vmatpush.msra.mxu0 %v1475
        %1525 = vmatpush.msra.mxu0 %v1473
        %1526 = vmatpush.msra.mxu0 %v1471
        %1527 = vmatpush.msra.mxu0 %v1469
        %1528 = vmatpush.msra.mxu0 %v1467
        %1529 = vmatpush.msra.mxu0 %v1465
        %1530 = vmatpush.msra.mxu0 %v1463
        %1531 = vmatpush.msra.mxu0 %v1461
        %1532 = vmatpush.msra.mxu0 %v1459
        %1533 = vmatpush.msra.mxu0 %v1457
        %1534 = vmatpush.msra.mxu0 %v1455
        %1535 = vmatpush.msra.mxu0 %v1453
        %1536 = vmatpush.msra.mxu0 %v1451
        %1537 = vmatpush.msra.mxu0 %v1449
        %1538 = vmatmul.f32.gmra.mxu0 %v1512
        %v1539 = vpop.f32.mrf.mxu0
        %v1540 = vadd.f32 0.0, %v1539
        %1541 = vmatmul.f32.gmra.mxu0 %v1511
        %v1542 = vpop.f32.mrf.mxu0
        %v1543 = vadd.f32 0.0, %v1542
        %1544 = vdwg.mxu0
        %1545 = vmatpush.msra.mxu0 0.0
        %1546 = vmatpush.msra.mxu0 0.0
        %1547 = vmatpush.msra.mxu0 0.0
        %1548 = vmatpush.msra.mxu0 0.0
        %1549 = vmatpush.msra.mxu0 %v1503
        %1550 = vmatpush.msra.mxu0 %v1501
        %1551 = vmatpush.msra.mxu0 %v1499
        %1552 = vmatpush.msra.mxu0 %v1497
        %1553 = vmatpush.msra.mxu0 %v1495
        %1554 = vmatpush.msra.mxu0 %v1493
        %1555 = vmatpush.msra.mxu0 %v1491
        %1556 = vmatpush.msra.mxu0 %v1489
        %1557 = vmatpush.msra.mxu0 %v1487
        %1558 = vmatpush.msra.mxu0 %v1485
        %1559 = vmatpush.msra.mxu0 %v1483
        %1560 = vmatpush.msra.mxu0 %v1481
        %1561 = vmatmul.f32.gmra.mxu0 %v1518
        %v1562 = vpop.f32.mrf.mxu0
        %v1563 = vadd.f32 %v1540, %v1562
        %1564 = vmatmul.f32.gmra.mxu0 %v1520
        %v1565 = vpop.f32.mrf.mxu0
        %v1566 = vadd.f32 %v1543, %v1565
        %1567 = vdwg.mxu0
        %1568 = vmatpush.msra.mxu0 %v1480
        %1569 = vmatpush.msra.mxu0 %v1478
        %1570 = vmatpush.msra.mxu0 %v1476
        %1571 = vmatpush.msra.mxu0 %v1474
        %1572 = vmatpush.msra.mxu0 %v1472
        %1573 = vmatpush.msra.mxu0 %v1470
        %1574 = vmatpush.msra.mxu0 %v1468
        %1575 = vmatpush.msra.mxu0 %v1466
        %1576 = vmatpush.msra.mxu0 %v1464
        %1577 = vmatpush.msra.mxu0 %v1462
        %1578 = vmatpush.msra.mxu0 %v1460
        %1579 = vmatpush.msra.mxu0 %v1458
        %1580 = vmatpush.msra.mxu0 %v1456
        %1581 = vmatpush.msra.mxu0 %v1454
        %1582 = vmatpush.msra.mxu0 %v1452
        %1583 = vmatpush.msra.mxu0 %v1450
        %1584 = vmatmul.f32.gmra.mxu0 %v1512
        %v1585 = vpop.f32.mrf.mxu0
        %v1586 = vadd.f32 0.0, %v1585
        %1587 = vmatmul.f32.gmra.mxu0 %v1511
        %v1588 = vpop.f32.mrf.mxu0
        %v1589 = vadd.f32 0.0, %v1588
        %1590 = vdwg.mxu0
        %1591 = vmatpush.msra.mxu0 0.0
        %1592 = vmatpush.msra.mxu0 0.0
        %1593 = vmatpush.msra.mxu0 0.0
        %1594 = vmatpush.msra.mxu0 0.0
        %1595 = vmatpush.msra.mxu0 %v1504
        %1596 = vmatpush.msra.mxu0 %v1502
        %1597 = vmatpush.msra.mxu0 %v1500
        %1598 = vmatpush.msra.mxu0 %v1498
        %1599 = vmatpush.msra.mxu0 %v1496
        %1600 = vmatpush.msra.mxu0 %v1494
        %1601 = vmatpush.msra.mxu0 %v1492
        %1602 = vmatpush.msra.mxu0 %v1490
        %1603 = vmatpush.msra.mxu0 %v1488
        %1604 = vmatpush.msra.mxu0 %v1486
        %1605 = vmatpush.msra.mxu0 %v1484
        %1606 = vmatpush.msra.mxu0 %v1482
        %1607 = vmatmul.f32.gmra.mxu0 %v1518
        %v1608 = vpop.f32.mrf.mxu0
        %v1609 = vadd.f32 %v1586, %v1608
        %1610 = vmatmul.f32.gmra.mxu0 %v1520
        %v1611 = vpop.f32.mrf.mxu0
        %v1612 = vadd.f32 %v1589, %v1611
        %1613 = vdwg.mxu0
        %v1615 = vsel %vm1122, %v1385, 0
        %v1618 = vsel %vm1122, %v1387, 0
        %1620 = vmatpush.msra.mxu0 %v1418
        %1621 = vmatpush.msra.mxu0 %v1416
        %1622 = vmatpush.msra.mxu0 %v1414
        %1623 = vmatpush.msra.mxu0 %v1412
        %1624 = vmatpush.msra.mxu0 %v1410
        %1625 = vmatpush.msra.mxu0 %v1408
        %1626 = vmatpush.msra.mxu0 %v1406
        %1627 = vmatpush.msra.mxu0 %v1404
        %1628 = vmatpush.msra.mxu0 %v1402
        %1629 = vmatpush.msra.mxu0 %v1400
        %1630 = vmatpush.msra.mxu0 %v1398
        %1631 = vmatpush.msra.mxu0 %v1396
        %1632 = vmatpush.msra.mxu0 %v1394
        %1633 = vmatpush.msra.mxu0 %v1392
        %1634 = vmatpush.msra.mxu0 %v1390
        %1635 = vmatpush.msra.mxu0 %v1388
        %1636 = vmatmul.f32.gmra.mxu0 %v1384
        %v1637 = vpop.f32.mrf.mxu0
        %v1638 = vadd.f32 %v1563, %v1637
        %1639 = vmatmul.f32.gmra.mxu0 %v1386
        %v1640 = vpop.f32.mrf.mxu0
        %v1641 = vadd.f32 %v1566, %v1640
        %1642 = vdwg.mxu0
        %1643 = vmatpush.msra.mxu0 0.0
        %1644 = vmatpush.msra.mxu0 0.0
        %1645 = vmatpush.msra.mxu0 0.0
        %1646 = vmatpush.msra.mxu0 0.0
        %1647 = vmatpush.msra.mxu0 %v1442
        %1648 = vmatpush.msra.mxu0 %v1440
        %1649 = vmatpush.msra.mxu0 %v1438
        %1650 = vmatpush.msra.mxu0 %v1436
        %1651 = vmatpush.msra.mxu0 %v1434
        %1652 = vmatpush.msra.mxu0 %v1432
        %1653 = vmatpush.msra.mxu0 %v1430
        %1654 = vmatpush.msra.mxu0 %v1428
        %1655 = vmatpush.msra.mxu0 %v1426
        %1656 = vmatpush.msra.mxu0 %v1424
        %1657 = vmatpush.msra.mxu0 %v1422
        %1658 = vmatpush.msra.mxu0 %v1420
        %1659 = vmatmul.f32.gmra.mxu0 %v1615
        %v1660 = vpop.f32.mrf.mxu0
        %v1661 = vadd.f32 %v1638, %v1660
        %1662 = vmatmul.f32.gmra.mxu0 %v1618
        %v1663 = vpop.f32.mrf.mxu0
        %v1664 = vadd.f32 %v1641, %v1663
        %1665 = vdwg.mxu0
        %1666 = vmatpush.msra.mxu0 %v1419
        %1667 = vmatpush.msra.mxu0 %v1417
        %1668 = vmatpush.msra.mxu0 %v1415
        %1669 = vmatpush.msra.mxu0 %v1413
        %1670 = vmatpush.msra.mxu0 %v1411
        %1671 = vmatpush.msra.mxu0 %v1409
        %1672 = vmatpush.msra.mxu0 %v1407
        %1673 = vmatpush.msra.mxu0 %v1405
        %1674 = vmatpush.msra.mxu0 %v1403
        %1675 = vmatpush.msra.mxu0 %v1401
        %1676 = vmatpush.msra.mxu0 %v1399
        %1677 = vmatpush.msra.mxu0 %v1397
        %1678 = vmatpush.msra.mxu0 %v1395
        %1679 = vmatpush.msra.mxu0 %v1393
        %1680 = vmatpush.msra.mxu0 %v1391
        %1681 = vmatpush.msra.mxu0 %v1389
        %1682 = vmatmul.f32.gmra.mxu0 %v1384
        %v1683 = vpop.f32.mrf.mxu0
        %v1684 = vadd.f32 %v1609, %v1683
        %1685 = vmatmul.f32.gmra.mxu0 %v1386
        %v1686 = vpop.f32.mrf.mxu0
        %v1687 = vadd.f32 %v1612, %v1686
        %1688 = vdwg.mxu0
        %1689 = vmatpush.msra.mxu0 0.0
        %1690 = vmatpush.msra.mxu0 0.0
        %1691 = vmatpush.msra.mxu0 0.0
        %1692 = vmatpush.msra.mxu0 0.0
        %1693 = vmatpush.msra.mxu0 %v1443
        %1694 = vmatpush.msra.mxu0 %v1441
        %1695 = vmatpush.msra.mxu0 %v1439
        %1696 = vmatpush.msra.mxu0 %v1437
        %1697 = vmatpush.msra.mxu0 %v1435
        %1698 = vmatpush.msra.mxu0 %v1433
        %1699 = vmatpush.msra.mxu0 %v1431
        %1700 = vmatpush.msra.mxu0 %v1429
        %1701 = vmatpush.msra.mxu0 %v1427
        %1702 = vmatpush.msra.mxu0 %v1425
        %1703 = vmatpush.msra.mxu0 %v1423
        %1704 = vmatpush.msra.mxu0 %v1421
        %1705 = vmatmul.f32.gmra.mxu0 %v1615
        %v1706 = vpop.f32.mrf.mxu0
        %v1707 = vadd.f32 %v1684, %v1706
        %1708 = vmatmul.f32.gmra.mxu0 %v1618
        %v1709 = vpop.f32.mrf.mxu0
        %v1710 = vadd.f32 %v1687, %v1709
        %1711 = vdwg.mxu0
        %v1712 = vld [vmem:[#allocation2] sm:$0xfc]
        %v1713 = vld [vmem:[#allocation2 + $0x8] sm:$0xfc]
        %v1714 = vld [vmem:[#allocation2 + $0x10] sm:$0xf]
        %v1715 = vld [vmem:[#allocation2 + $0x18] sm:$0xf]
        %s1716 = scalar_lea.vmem %s6, 896
        %v1717 = vld [vmem:[%s1716] sm:$0xff]
        %v1718 = vld [vmem:[%s1716 + $0x8] sm:$0xff]
        %v1719 = vld [vmem:[%s1716 + $0x10] sm:$0xff]
        %v1720 = vld [vmem:[%s1716 + $0x18] sm:$0xff]
        %v1721 = vld [vmem:[%s1716 + $0x20] sm:$0xff]
        %v1722 = vld [vmem:[%s1716 + $0x28] sm:$0xff]
        %v1723 = vld [vmem:[%s1716 + $0x30] sm:$0xff]
        %v1724 = vld [vmem:[%s1716 + $0x38] sm:$0xff]
        %v1725 = vld [vmem:[%s1716 + $0x40] sm:$0xff]
        %v1726 = vld [vmem:[%s1716 + $0x48] sm:$0xff]
        %v1727 = vld [vmem:[%s1716 + $0x50] sm:$0xff]
        %v1728 = vld [vmem:[%s1716 + $0x58] sm:$0xff]
        %v1729 = vld [vmem:[%s1716 + $0x60] sm:$0xff]
        %v1730 = vld [vmem:[%s1716 + $0x68] sm:$0xff]
        %v1731 = vld [vmem:[%s1716 + $0x70] sm:$0xff]
        %v1732 = vld [vmem:[%s1716 + $0x78] sm:$0xff]
        %v1733 = vld [vmem:[%s1716 + $0x80] sm:$0xff]
        %v1734 = vld [vmem:[%s1716 + $0x88] sm:$0xff]
        %v1735 = vld [vmem:[%s1716 + $0x90] sm:$0xff]
        %v1736 = vld [vmem:[%s1716 + $0x98] sm:$0xff]
        %v1737 = vld [vmem:[%s1716 + $0xa0] sm:$0xff]
        %v1738 = vld [vmem:[%s1716 + $0xa8] sm:$0xff]
        %v1739 = vld [vmem:[%s1716 + $0xb0] sm:$0xff]
        %v1740 = vld [vmem:[%s1716 + $0xb8] sm:$0xff]
        %v1741 = vld [vmem:[%s1716 + $0xc0] sm:$0xff]
        %v1742 = vld [vmem:[%s1716 + $0xc8] sm:$0xff]
        %v1743 = vld [vmem:[%s1716 + $0xd0] sm:$0xff]
        %v1744 = vld [vmem:[%s1716 + $0xd8] sm:$0xff]
        %v1745 = vld [vmem:[%s1716 + $0xe0] sm:$0xff]
        %v1746 = vld [vmem:[%s1716 + $0xe8] sm:$0xff]
        %v1747 = vld [vmem:[%s1716 + $0xf0] sm:$0xff]
        %v1748 = vld [vmem:[%s1716 + $0xf8] sm:$0xff]
        %v1749 = vld [vmem:[%s1716 + $0x100] sm:$0xff]
        %v1750 = vld [vmem:[%s1716 + $0x108] sm:$0xff]
        %v1751 = vld [vmem:[%s1716 + $0x110] sm:$0xff]
        %v1752 = vld [vmem:[%s1716 + $0x118] sm:$0xff]
        %v1753 = vld [vmem:[%s1716 + $0x120] sm:$0xff]
        %v1754 = vld [vmem:[%s1716 + $0x128] sm:$0xff]
        %v1755 = vld [vmem:[%s1716 + $0x130] sm:$0xff]
        %v1756 = vld [vmem:[%s1716 + $0x138] sm:$0xff]
        %v1757 = vld [vmem:[%s1716 + $0x140] sm:$0xff]
        %v1758 = vld [vmem:[%s1716 + $0x148] sm:$0xff]
        %v1759 = vld [vmem:[%s1716 + $0x150] sm:$0xff]
        %v1760 = vld [vmem:[%s1716 + $0x158] sm:$0xff]
        %v1761 = vld [vmem:[%s1716 + $0x160] sm:$0xff]
        %v1762 = vld [vmem:[%s1716 + $0x168] sm:$0xff]
        %v1763 = vld [vmem:[%s1716 + $0x170] sm:$0xff]
        %v1764 = vld [vmem:[%s1716 + $0x178] sm:$0xff]
        %v1765 = vld [vmem:[%s1716 + $0x180] sm:$0xff]
        %v1766 = vld [vmem:[%s1716 + $0x188] sm:$0xff]
        %v1767 = vld [vmem:[%s1716 + $0x190] sm:$0xff]
        %v1768 = vld [vmem:[%s1716 + $0x198] sm:$0xff]
        %v1769 = vld [vmem:[%s1716 + $0x1a0] sm:$0xff]
        %v1770 = vld [vmem:[%s1716 + $0x1a8] sm:$0xff]
        %v1771 = vld [vmem:[%s1716 + $0x1b0] sm:$0xff]
        %v1772 = vld [vmem:[%s1716 + $0x1b8] sm:$0xff]
        %vm1777 = vcmask 1045504
        %v1778 = vrot.slane %v1712, 2
        %v1779 = vrot.slane %v1714, 2
        %v1780 = vsel %vm1777, %v1778, %v1779
        %v1781 = vrot.slane %v1713, 2
        %v1782 = vrot.slane %v1715, 2
        %v1783 = vsel %vm1777, %v1781, %v1782
        %v1786 = vsel %vm1122, %v1783, 0
        %v1788 = vsel %vm1122, %v1782, 0
        %1790 = vmatpush.msra.mxu0 %v1747
        %1791 = vmatpush.msra.mxu0 %v1745
        %1792 = vmatpush.msra.mxu0 %v1743
        %1793 = vmatpush.msra.mxu0 %v1741
        %1794 = vmatpush.msra.mxu0 %v1739
        %1795 = vmatpush.msra.mxu0 %v1737
        %1796 = vmatpush.msra.mxu0 %v1735
        %1797 = vmatpush.msra.mxu0 %v1733
        %1798 = vmatpush.msra.mxu0 %v1731
        %1799 = vmatpush.msra.mxu0 %v1729
        %1800 = vmatpush.msra.mxu0 %v1727
        %1801 = vmatpush.msra.mxu0 %v1725
        %1802 = vmatpush.msra.mxu0 %v1723
        %1803 = vmatpush.msra.mxu0 %v1721
        %1804 = vmatpush.msra.mxu0 %v1719
        %1805 = vmatpush.msra.mxu0 %v1717
        %1806 = vmatmul.f32.gmra.mxu0 %v1780
        %v1807 = vpop.f32.mrf.mxu0
        %v1808 = vadd.f32 0.0, %v1807
        %1809 = vmatmul.f32.gmra.mxu0 %v1779
        %v1810 = vpop.f32.mrf.mxu0
        %v1811 = vadd.f32 0.0, %v1810
        %1812 = vdwg.mxu0
        %1813 = vmatpush.msra.mxu0 0.0
        %1814 = vmatpush.msra.mxu0 0.0
        %1815 = vmatpush.msra.mxu0 0.0
        %1816 = vmatpush.msra.mxu0 0.0
        %1817 = vmatpush.msra.mxu0 %v1771
        %1818 = vmatpush.msra.mxu0 %v1769
        %1819 = vmatpush.msra.mxu0 %v1767
        %1820 = vmatpush.msra.mxu0 %v1765
        %1821 = vmatpush.msra.mxu0 %v1763
        %1822 = vmatpush.msra.mxu0 %v1761
        %1823 = vmatpush.msra.mxu0 %v1759
        %1824 = vmatpush.msra.mxu0 %v1757
        %1825 = vmatpush.msra.mxu0 %v1755
        %1826 = vmatpush.msra.mxu0 %v1753
        %1827 = vmatpush.msra.mxu0 %v1751
        %1828 = vmatpush.msra.mxu0 %v1749
        %1829 = vmatmul.f32.gmra.mxu0 %v1786
        %v1830 = vpop.f32.mrf.mxu0
        %v1831 = vadd.f32 %v1808, %v1830
        %1832 = vmatmul.f32.gmra.mxu0 %v1788
        %v1833 = vpop.f32.mrf.mxu0
        %v1834 = vadd.f32 %v1811, %v1833
        %1835 = vdwg.mxu0
        %1836 = vmatpush.msra.mxu0 %v1748
        %1837 = vmatpush.msra.mxu0 %v1746
        %1838 = vmatpush.msra.mxu0 %v1744
        %1839 = vmatpush.msra.mxu0 %v1742
        %1840 = vmatpush.msra.mxu0 %v1740
        %1841 = vmatpush.msra.mxu0 %v1738
        %1842 = vmatpush.msra.mxu0 %v1736
        %1843 = vmatpush.msra.mxu0 %v1734
        %1844 = vmatpush.msra.mxu0 %v1732
        %1845 = vmatpush.msra.mxu0 %v1730
        %1846 = vmatpush.msra.mxu0 %v1728
        %1847 = vmatpush.msra.mxu0 %v1726
        %1848 = vmatpush.msra.mxu0 %v1724
        %1849 = vmatpush.msra.mxu0 %v1722
        %1850 = vmatpush.msra.mxu0 %v1720
        %1851 = vmatpush.msra.mxu0 %v1718
        %1852 = vmatmul.f32.gmra.mxu0 %v1780
        %v1853 = vpop.f32.mrf.mxu0
        %v1854 = vadd.f32 0.0, %v1853
        %1855 = vmatmul.f32.gmra.mxu0 %v1779
        %v1856 = vpop.f32.mrf.mxu0
        %v1857 = vadd.f32 0.0, %v1856
        %1858 = vdwg.mxu0
        %1859 = vmatpush.msra.mxu0 0.0
        %1860 = vmatpush.msra.mxu0 0.0
        %1861 = vmatpush.msra.mxu0 0.0
        %1862 = vmatpush.msra.mxu0 0.0
        %1863 = vmatpush.msra.mxu0 %v1772
        %1864 = vmatpush.msra.mxu0 %v1770
        %1865 = vmatpush.msra.mxu0 %v1768
        %1866 = vmatpush.msra.mxu0 %v1766
        %1867 = vmatpush.msra.mxu0 %v1764
        %1868 = vmatpush.msra.mxu0 %v1762
        %1869 = vmatpush.msra.mxu0 %v1760
        %1870 = vmatpush.msra.mxu0 %v1758
        %1871 = vmatpush.msra.mxu0 %v1756
        %1872 = vmatpush.msra.mxu0 %v1754
        %1873 = vmatpush.msra.mxu0 %v1752
        %1874 = vmatpush.msra.mxu0 %v1750
        %1875 = vmatmul.f32.gmra.mxu0 %v1786
        %v1876 = vpop.f32.mrf.mxu0
        %v1877 = vadd.f32 %v1854, %v1876
        %1878 = vmatmul.f32.gmra.mxu0 %v1788
        %v1879 = vpop.f32.mrf.mxu0
        %v1880 = vadd.f32 %v1857, %v1879
        %1881 = vdwg.mxu0
        %v1882 = vadd.f32 %v1661, %v1831
        %v1883 = vadd.f32 %v1707, %v1877
        %v1884 = vadd.f32 %v1664, %v1834
        %v1885 = vadd.f32 %v1710, %v1880
        %v1886 = vld [vmem:[#allocation2] sm:$0xf8]
        %v1887 = vld [vmem:[#allocation2 + $0x8] sm:$0xf8]
        %v1888 = vld [vmem:[#allocation2 + $0x10] sm:$0x1f]
        %v1889 = vld [vmem:[#allocation2 + $0x18] sm:$0x1f]
        %s1890 = scalar_lea.vmem %s6, 1344
        %v1891 = vld [vmem:[%s1890] sm:$0xff]
        %v1892 = vld [vmem:[%s1890 + $0x8] sm:$0xff]
        %v1893 = vld [vmem:[%s1890 + $0x10] sm:$0xff]
        %v1894 = vld [vmem:[%s1890 + $0x18] sm:$0xff]
        %v1895 = vld [vmem:[%s1890 + $0x20] sm:$0xff]
        %v1896 = vld [vmem:[%s1890 + $0x28] sm:$0xff]
        %v1897 = vld [vmem:[%s1890 + $0x30] sm:$0xff]
        %v1898 = vld [vmem:[%s1890 + $0x38] sm:$0xff]
        %v1899 = vld [vmem:[%s1890 + $0x40] sm:$0xff]
        %v1900 = vld [vmem:[%s1890 + $0x48] sm:$0xff]
        %v1901 = vld [vmem:[%s1890 + $0x50] sm:$0xff]
        %v1902 = vld [vmem:[%s1890 + $0x58] sm:$0xff]
        %v1903 = vld [vmem:[%s1890 + $0x60] sm:$0xff]
        %v1904 = vld [vmem:[%s1890 + $0x68] sm:$0xff]
        %v1905 = vld [vmem:[%s1890 + $0x70] sm:$0xff]
        %v1906 = vld [vmem:[%s1890 + $0x78] sm:$0xff]
        %v1907 = vld [vmem:[%s1890 + $0x80] sm:$0xff]
        %v1908 = vld [vmem:[%s1890 + $0x88] sm:$0xff]
        %v1909 = vld [vmem:[%s1890 + $0x90] sm:$0xff]
        %v1910 = vld [vmem:[%s1890 + $0x98] sm:$0xff]
        %v1911 = vld [vmem:[%s1890 + $0xa0] sm:$0xff]
        %v1912 = vld [vmem:[%s1890 + $0xa8] sm:$0xff]
        %v1913 = vld [vmem:[%s1890 + $0xb0] sm:$0xff]
        %v1914 = vld [vmem:[%s1890 + $0xb8] sm:$0xff]
        %v1915 = vld [vmem:[%s1890 + $0xc0] sm:$0xff]
        %v1916 = vld [vmem:[%s1890 + $0xc8] sm:$0xff]
        %v1917 = vld [vmem:[%s1890 + $0xd0] sm:$0xff]
        %v1918 = vld [vmem:[%s1890 + $0xd8] sm:$0xff]
        %v1919 = vld [vmem:[%s1890 + $0xe0] sm:$0xff]
        %v1920 = vld [vmem:[%s1890 + $0xe8] sm:$0xff]
        %v1921 = vld [vmem:[%s1890 + $0xf0] sm:$0xff]
        %v1922 = vld [vmem:[%s1890 + $0xf8] sm:$0xff]
        %v1923 = vld [vmem:[%s1890 + $0x100] sm:$0xff]
        %v1924 = vld [vmem:[%s1890 + $0x108] sm:$0xff]
        %v1925 = vld [vmem:[%s1890 + $0x110] sm:$0xff]
        %v1926 = vld [vmem:[%s1890 + $0x118] sm:$0xff]
        %v1927 = vld [vmem:[%s1890 + $0x120] sm:$0xff]
        %v1928 = vld [vmem:[%s1890 + $0x128] sm:$0xff]
        %v1929 = vld [vmem:[%s1890 + $0x130] sm:$0xff]
        %v1930 = vld [vmem:[%s1890 + $0x138] sm:$0xff]
        %v1931 = vld [vmem:[%s1890 + $0x140] sm:$0xff]
        %v1932 = vld [vmem:[%s1890 + $0x148] sm:$0xff]
        %v1933 = vld [vmem:[%s1890 + $0x150] sm:$0xff]
        %v1934 = vld [vmem:[%s1890 + $0x158] sm:$0xff]
        %v1935 = vld [vmem:[%s1890 + $0x160] sm:$0xff]
        %v1936 = vld [vmem:[%s1890 + $0x168] sm:$0xff]
        %v1937 = vld [vmem:[%s1890 + $0x170] sm:$0xff]
        %v1938 = vld [vmem:[%s1890 + $0x178] sm:$0xff]
        %v1939 = vld [vmem:[%s1890 + $0x180] sm:$0xff]
        %v1940 = vld [vmem:[%s1890 + $0x188] sm:$0xff]
        %v1941 = vld [vmem:[%s1890 + $0x190] sm:$0xff]
        %v1942 = vld [vmem:[%s1890 + $0x198] sm:$0xff]
        %v1943 = vld [vmem:[%s1890 + $0x1a0] sm:$0xff]
        %v1944 = vld [vmem:[%s1890 + $0x1a8] sm:$0xff]
        %v1945 = vld [vmem:[%s1890 + $0x1b0] sm:$0xff]
        %v1946 = vld [vmem:[%s1890 + $0x1b8] sm:$0xff]
        %vm1951 = vcmask 1044480
        %v1952 = vrot.slane %v1886, 3
        %v1953 = vrot.slane %v1888, 3
        %v1954 = vsel %vm1951, %v1952, %v1953
        %v1955 = vrot.slane %v1887, 3
        %v1956 = vrot.slane %v1889, 3
        %v1957 = vsel %vm1951, %v1955, %v1956
        %v1960 = vsel %vm1122, %v1957, 0
        %v1962 = vsel %vm1122, %v1956, 0
        %1964 = vmatpush.msra.mxu0 %v1921
        %1965 = vmatpush.msra.mxu0 %v1919
        %1966 = vmatpush.msra.mxu0 %v1917
        %1967 = vmatpush.msra.mxu0 %v1915
        %1968 = vmatpush.msra.mxu0 %v1913
        %1969 = vmatpush.msra.mxu0 %v1911
        %1970 = vmatpush.msra.mxu0 %v1909
        %1971 = vmatpush.msra.mxu0 %v1907
        %1972 = vmatpush.msra.mxu0 %v1905
        %1973 = vmatpush.msra.mxu0 %v1903
        %1974 = vmatpush.msra.mxu0 %v1901
        %1975 = vmatpush.msra.mxu0 %v1899
        %1976 = vmatpush.msra.mxu0 %v1897
        %1977 = vmatpush.msra.mxu0 %v1895
        %1978 = vmatpush.msra.mxu0 %v1893
        %1979 = vmatpush.msra.mxu0 %v1891
        %1980 = vmatmul.f32.gmra.mxu0 %v1954
        %v1981 = vpop.f32.mrf.mxu0
        %v1982 = vadd.f32 0.0, %v1981
        %1983 = vmatmul.f32.gmra.mxu0 %v1953
        %v1984 = vpop.f32.mrf.mxu0
        %v1985 = vadd.f32 0.0, %v1984
        %1986 = vdwg.mxu0
        %1987 = vmatpush.msra.mxu0 0.0
        %1988 = vmatpush.msra.mxu0 0.0
        %1989 = vmatpush.msra.mxu0 0.0
        %1990 = vmatpush.msra.mxu0 0.0
        %1991 = vmatpush.msra.mxu0 %v1945
        %1992 = vmatpush.msra.mxu0 %v1943
        %1993 = vmatpush.msra.mxu0 %v1941
        %1994 = vmatpush.msra.mxu0 %v1939
        %1995 = vmatpush.msra.mxu0 %v1937
        %1996 = vmatpush.msra.mxu0 %v1935
        %1997 = vmatpush.msra.mxu0 %v1933
        %1998 = vmatpush.msra.mxu0 %v1931
        %1999 = vmatpush.msra.mxu0 %v1929
        %2000 = vmatpush.msra.mxu0 %v1927
        %2001 = vmatpush.msra.mxu0 %v1925
        %2002 = vmatpush.msra.mxu0 %v1923
        %2003 = vmatmul.f32.gmra.mxu0 %v1960
        %v2004 = vpop.f32.mrf.mxu0
        %v2005 = vadd.f32 %v1982, %v2004
        %2006 = vmatmul.f32.gmra.mxu0 %v1962
        %v2007 = vpop.f32.mrf.mxu0
        %v2008 = vadd.f32 %v1985, %v2007
        %2009 = vdwg.mxu0
        %2010 = vmatpush.msra.mxu0 %v1922
        %2011 = vmatpush.msra.mxu0 %v1920
        %2012 = vmatpush.msra.mxu0 %v1918
        %2013 = vmatpush.msra.mxu0 %v1916
        %2014 = vmatpush.msra.mxu0 %v1914
        %2015 = vmatpush.msra.mxu0 %v1912
        %2016 = vmatpush.msra.mxu0 %v1910
        %2017 = vmatpush.msra.mxu0 %v1908
        %2018 = vmatpush.msra.mxu0 %v1906
        %2019 = vmatpush.msra.mxu0 %v1904
        %2020 = vmatpush.msra.mxu0 %v1902
        %2021 = vmatpush.msra.mxu0 %v1900
        %2022 = vmatpush.msra.mxu0 %v1898
        %2023 = vmatpush.msra.mxu0 %v1896
        %2024 = vmatpush.msra.mxu0 %v1894
        %2025 = vmatpush.msra.mxu0 %v1892
        %2026 = vmatmul.f32.gmra.mxu0 %v1954
        %v2027 = vpop.f32.mrf.mxu0
        %v2028 = vadd.f32 0.0, %v2027
        %2029 = vmatmul.f32.gmra.mxu0 %v1953
        %v2030 = vpop.f32.mrf.mxu0
        %v2031 = vadd.f32 0.0, %v2030
        %2032 = vdwg.mxu0
        %2033 = vmatpush.msra.mxu0 0.0
        %2034 = vmatpush.msra.mxu0 0.0
        %2035 = vmatpush.msra.mxu0 0.0
        %2036 = vmatpush.msra.mxu0 0.0
        %2037 = vmatpush.msra.mxu0 %v1946
        %2038 = vmatpush.msra.mxu0 %v1944
        %2039 = vmatpush.msra.mxu0 %v1942
        %2040 = vmatpush.msra.mxu0 %v1940
        %2041 = vmatpush.msra.mxu0 %v1938
        %2042 = vmatpush.msra.mxu0 %v1936
        %2043 = vmatpush.msra.mxu0 %v1934
        %2044 = vmatpush.msra.mxu0 %v1932
        %2045 = vmatpush.msra.mxu0 %v1930
        %2046 = vmatpush.msra.mxu0 %v1928
        %2047 = vmatpush.msra.mxu0 %v1926
        %2048 = vmatpush.msra.mxu0 %v1924
        %2049 = vmatmul.f32.gmra.mxu0 %v1960
        %v2050 = vpop.f32.mrf.mxu0
        %v2051 = vadd.f32 %v2028, %v2050
        %2052 = vmatmul.f32.gmra.mxu0 %v1962
        %v2053 = vpop.f32.mrf.mxu0
        %v2054 = vadd.f32 %v2031, %v2053
        %2055 = vdwg.mxu0
        %v2056 = vadd.f32 %v1882, %v2005
        %v2057 = vadd.f32 %v1883, %v2051
        %v2058 = vadd.f32 %v1884, %v2008
        %v2059 = vadd.f32 %v1885, %v2054
        %v2060 = vld [vmem:[#allocation2] sm:$0xf0]
        %v2061 = vld [vmem:[#allocation2 + $0x8] sm:$0xf0]
        %v2062 = vld [vmem:[#allocation2 + $0x10] sm:$0x3f]
        %v2063 = vld [vmem:[#allocation2 + $0x18] sm:$0x3f]
        %s2064 = scalar_lea.vmem %s6, 1792
        %v2065 = vld [vmem:[%s2064] sm:$0xff]
        %v2066 = vld [vmem:[%s2064 + $0x8] sm:$0xff]
        %v2067 = vld [vmem:[%s2064 + $0x10] sm:$0xff]
        %v2068 = vld [vmem:[%s2064 + $0x18] sm:$0xff]
        %v2069 = vld [vmem:[%s2064 + $0x20] sm:$0xff]
        %v2070 = vld [vmem:[%s2064 + $0x28] sm:$0xff]
        %v2071 = vld [vmem:[%s2064 + $0x30] sm:$0xff]
        %v2072 = vld [vmem:[%s2064 + $0x38] sm:$0xff]
        %v2073 = vld [vmem:[%s2064 + $0x40] sm:$0xff]
        %v2074 = vld [vmem:[%s2064 + $0x48] sm:$0xff]
        %v2075 = vld [vmem:[%s2064 + $0x50] sm:$0xff]
        %v2076 = vld [vmem:[%s2064 + $0x58] sm:$0xff]
        %v2077 = vld [vmem:[%s2064 + $0x60] sm:$0xff]
        %v2078 = vld [vmem:[%s2064 + $0x68] sm:$0xff]
        %v2079 = vld [vmem:[%s2064 + $0x70] sm:$0xff]
        %v2080 = vld [vmem:[%s2064 + $0x78] sm:$0xff]
        %v2081 = vld [vmem:[%s2064 + $0x80] sm:$0xff]
        %v2082 = vld [vmem:[%s2064 + $0x88] sm:$0xff]
        %v2083 = vld [vmem:[%s2064 + $0x90] sm:$0xff]
        %v2084 = vld [vmem:[%s2064 + $0x98] sm:$0xff]
        %v2085 = vld [vmem:[%s2064 + $0xa0] sm:$0xff]
        %v2086 = vld [vmem:[%s2064 + $0xa8] sm:$0xff]
        %v2087 = vld [vmem:[%s2064 + $0xb0] sm:$0xff]
        %v2088 = vld [vmem:[%s2064 + $0xb8] sm:$0xff]
        %v2089 = vld [vmem:[%s2064 + $0xc0] sm:$0xff]
        %v2090 = vld [vmem:[%s2064 + $0xc8] sm:$0xff]
        %v2091 = vld [vmem:[%s2064 + $0xd0] sm:$0xff]
        %v2092 = vld [vmem:[%s2064 + $0xd8] sm:$0xff]
        %v2093 = vld [vmem:[%s2064 + $0xe0] sm:$0xff]
        %v2094 = vld [vmem:[%s2064 + $0xe8] sm:$0xff]
        %v2095 = vld [vmem:[%s2064 + $0xf0] sm:$0xff]
        %v2096 = vld [vmem:[%s2064 + $0xf8] sm:$0xff]
        %v2097 = vld [vmem:[%s2064 + $0x100] sm:$0xff]
        %v2098 = vld [vmem:[%s2064 + $0x108] sm:$0xff]
        %v2099 = vld [vmem:[%s2064 + $0x110] sm:$0xff]
        %v2100 = vld [vmem:[%s2064 + $0x118] sm:$0xff]
        %v2101 = vld [vmem:[%s2064 + $0x120] sm:$0xff]
        %v2102 = vld [vmem:[%s2064 + $0x128] sm:$0xff]
        %v2103 = vld [vmem:[%s2064 + $0x130] sm:$0xff]
        %v2104 = vld [vmem:[%s2064 + $0x138] sm:$0xff]
        %v2105 = vld [vmem:[%s2064 + $0x140] sm:$0xff]
        %v2106 = vld [vmem:[%s2064 + $0x148] sm:$0xff]
        %v2107 = vld [vmem:[%s2064 + $0x150] sm:$0xff]
        %v2108 = vld [vmem:[%s2064 + $0x158] sm:$0xff]
        %v2109 = vld [vmem:[%s2064 + $0x160] sm:$0xff]
        %v2110 = vld [vmem:[%s2064 + $0x168] sm:$0xff]
        %v2111 = vld [vmem:[%s2064 + $0x170] sm:$0xff]
        %v2112 = vld [vmem:[%s2064 + $0x178] sm:$0xff]
        %v2113 = vld [vmem:[%s2064 + $0x180] sm:$0xff]
        %v2114 = vld [vmem:[%s2064 + $0x188] sm:$0xff]
        %v2115 = vld [vmem:[%s2064 + $0x190] sm:$0xff]
        %v2116 = vld [vmem:[%s2064 + $0x198] sm:$0xff]
        %v2117 = vld [vmem:[%s2064 + $0x1a0] sm:$0xff]
        %v2118 = vld [vmem:[%s2064 + $0x1a8] sm:$0xff]
        %v2119 = vld [vmem:[%s2064 + $0x1b0] sm:$0xff]
        %v2120 = vld [vmem:[%s2064 + $0x1b8] sm:$0xff]
        %v2125 = vrot.slane %v2060, 4
        %v2126 = vrot.slane %v2062, 4
        %v2127 = vsel %vm1268, %v2125, %v2126
        %v2128 = vrot.slane %v2061, 4
        %v2129 = vrot.slane %v2063, 4
        %v2130 = vsel %vm1268, %v2128, %v2129
        %v2133 = vsel %vm1122, %v2130, 0
        %v2135 = vsel %vm1122, %v2129, 0
        %2137 = vmatpush.msra.mxu0 %v2095
        %2138 = vmatpush.msra.mxu0 %v2093
        %2139 = vmatpush.msra.mxu0 %v2091
        %2140 = vmatpush.msra.mxu0 %v2089
        %2141 = vmatpush.msra.mxu0 %v2087
        %2142 = vmatpush.msra.mxu0 %v2085
        %2143 = vmatpush.msra.mxu0 %v2083
        %2144 = vmatpush.msra.mxu0 %v2081
        %2145 = vmatpush.msra.mxu0 %v2079
        %2146 = vmatpush.msra.mxu0 %v2077
        %2147 = vmatpush.msra.mxu0 %v2075
        %2148 = vmatpush.msra.mxu0 %v2073
        %2149 = vmatpush.msra.mxu0 %v2071
        %2150 = vmatpush.msra.mxu0 %v2069
        %2151 = vmatpush.msra.mxu0 %v2067
        %2152 = vmatpush.msra.mxu0 %v2065
        %2153 = vmatmul.f32.gmra.mxu0 %v2127
        %v2154 = vpop.f32.mrf.mxu0
        %v2155 = vadd.f32 0.0, %v2154
        %2156 = vmatmul.f32.gmra.mxu0 %v2126
        %v2157 = vpop.f32.mrf.mxu0
        %v2158 = vadd.f32 0.0, %v2157
        %2159 = vdwg.mxu0
        %2160 = vmatpush.msra.mxu0 0.0
        %2161 = vmatpush.msra.mxu0 0.0
        %2162 = vmatpush.msra.mxu0 0.0
        %2163 = vmatpush.msra.mxu0 0.0
        %2164 = vmatpush.msra.mxu0 %v2119
        %2165 = vmatpush.msra.mxu0 %v2117
        %2166 = vmatpush.msra.mxu0 %v2115
        %2167 = vmatpush.msra.mxu0 %v2113
        %2168 = vmatpush.msra.mxu0 %v2111
        %2169 = vmatpush.msra.mxu0 %v2109
        %2170 = vmatpush.msra.mxu0 %v2107
        %2171 = vmatpush.msra.mxu0 %v2105
        %2172 = vmatpush.msra.mxu0 %v2103
        %2173 = vmatpush.msra.mxu0 %v2101
        %2174 = vmatpush.msra.mxu0 %v2099
        %2175 = vmatpush.msra.mxu0 %v2097
        %2176 = vmatmul.f32.gmra.mxu0 %v2133
        %v2177 = vpop.f32.mrf.mxu0
        %v2178 = vadd.f32 %v2155, %v2177
        %2179 = vmatmul.f32.gmra.mxu0 %v2135
        %v2180 = vpop.f32.mrf.mxu0
        %v2181 = vadd.f32 %v2158, %v2180
        %2182 = vdwg.mxu0
        %2183 = vmatpush.msra.mxu0 %v2096
        %2184 = vmatpush.msra.mxu0 %v2094
        %2185 = vmatpush.msra.mxu0 %v2092
        %2186 = vmatpush.msra.mxu0 %v2090
        %2187 = vmatpush.msra.mxu0 %v2088
        %2188 = vmatpush.msra.mxu0 %v2086
        %2189 = vmatpush.msra.mxu0 %v2084
        %2190 = vmatpush.msra.mxu0 %v2082
        %2191 = vmatpush.msra.mxu0 %v2080
        %2192 = vmatpush.msra.mxu0 %v2078
        %2193 = vmatpush.msra.mxu0 %v2076
        %2194 = vmatpush.msra.mxu0 %v2074
        %2195 = vmatpush.msra.mxu0 %v2072
        %2196 = vmatpush.msra.mxu0 %v2070
        %2197 = vmatpush.msra.mxu0 %v2068
        %2198 = vmatpush.msra.mxu0 %v2066
        %2199 = vmatmul.f32.gmra.mxu0 %v2127
        %v2200 = vpop.f32.mrf.mxu0
        %v2201 = vadd.f32 0.0, %v2200
        %2202 = vmatmul.f32.gmra.mxu0 %v2126
        %v2203 = vpop.f32.mrf.mxu0
        %v2204 = vadd.f32 0.0, %v2203
        %2205 = vdwg.mxu0
        %2206 = vmatpush.msra.mxu0 0.0
        %2207 = vmatpush.msra.mxu0 0.0
        %2208 = vmatpush.msra.mxu0 0.0
        %2209 = vmatpush.msra.mxu0 0.0
        %2210 = vmatpush.msra.mxu0 %v2120
        %2211 = vmatpush.msra.mxu0 %v2118
        %2212 = vmatpush.msra.mxu0 %v2116
        %2213 = vmatpush.msra.mxu0 %v2114
        %2214 = vmatpush.msra.mxu0 %v2112
        %2215 = vmatpush.msra.mxu0 %v2110
        %2216 = vmatpush.msra.mxu0 %v2108
        %2217 = vmatpush.msra.mxu0 %v2106
        %2218 = vmatpush.msra.mxu0 %v2104
        %2219 = vmatpush.msra.mxu0 %v2102
        %2220 = vmatpush.msra.mxu0 %v2100
        %2221 = vmatpush.msra.mxu0 %v2098
        %2222 = vmatmul.f32.gmra.mxu0 %v2133
        %v2223 = vpop.f32.mrf.mxu0
        %v2224 = vadd.f32 %v2201, %v2223
        %2225 = vmatmul.f32.gmra.mxu0 %v2135
        %v2226 = vpop.f32.mrf.mxu0
        %v2227 = vadd.f32 %v2204, %v2226
        %2228 = vdwg.mxu0
        %v2229 = vadd.f32 %v2056, %v2178
        %v2230 = vadd.f32 %v2057, %v2224
        %v2231 = vadd.f32 %v2058, %v2181
        %v2232 = vadd.f32 %v2059, %v2227
        %v2233 = vld [vmem:[%s7] sm:$0x3]
        %v2235 = vperm.slane %v2233, 0
        %v2236 = vperm.slane %v2233, 1
        %v2239 = vadd.f32 %v2229, %v2235
        %v2240 = vadd.f32 %v2230, %v2236
        %v2241 = vadd.f32 %v2231, %v2235
        %v2242 = vadd.f32 %v2232, %v2236
        %v2243 = vmax.f32 %v2239, 0.0
        %v2244 = vmax.f32 %v2240, 0.0
        %v2245 = vmax.f32 %v2241, 0.0
        %v2246 = vmax.f32 %v2242, 0.0
        %v2247 = vld [vmem:[%s10] sm:$0xff]
        %v2248 = vld [vmem:[%s10 + $0x8] sm:$0xff]
        %v2249 = vld [vmem:[%s10 + $0x10] sm:$0xff]
        %v2250 = vld [vmem:[%s10 + $0x18] sm:$0xff]
        %v2251 = vld [vmem:[%s10 + $0x20] sm:$0xff]
        %v2252 = vld [vmem:[%s10 + $0x28] sm:$0xff]
        %v2253 = vld [vmem:[%s10 + $0x30] sm:$0xff]
        %v2254 = vld [vmem:[%s10 + $0x38] sm:$0xff]
        %v2255 = vld [vmem:[%s10 + $0x40] sm:$0xff]
        %v2256 = vld [vmem:[%s10 + $0x48] sm:$0xff]
        %v2257 = vld [vmem:[%s10 + $0x50] sm:$0xff]
        %v2258 = vld [vmem:[%s10 + $0x58] sm:$0xff]
        %v2259 = vld [vmem:[%s10 + $0x60] sm:$0xff]
        %v2260 = vld [vmem:[%s10 + $0x68] sm:$0xff]
        %v2261 = vld [vmem:[%s10 + $0x70] sm:$0xff]
        %v2262 = vld [vmem:[%s10 + $0x78] sm:$0xff]
        %v2263 = vld [vmem:[%s10 + $0x80] sm:$0xff]
        %v2264 = vld [vmem:[%s10 + $0x88] sm:$0xff]
        %v2265 = vld [vmem:[%s10 + $0x90] sm:$0xff]
        %v2266 = vld [vmem:[%s10 + $0x98] sm:$0xff]
        %v2267 = vld [vmem:[%s10 + $0xa0] sm:$0xff]
        %v2268 = vld [vmem:[%s10 + $0xa8] sm:$0xff]
        %v2269 = vld [vmem:[%s10 + $0xb0] sm:$0xff]
        %v2270 = vld [vmem:[%s10 + $0xb8] sm:$0xff]
        %v2271 = vld [vmem:[%s10 + $0xc0] sm:$0xff]
        %v2272 = vld [vmem:[%s10 + $0xc8] sm:$0xff]
        %v2273 = vld [vmem:[%s10 + $0xd0] sm:$0xff]
        %v2274 = vld [vmem:[%s10 + $0xd8] sm:$0xff]
        %v2275 = vld [vmem:[%s10 + $0xe0] sm:$0xff]
        %v2276 = vld [vmem:[%s10 + $0xe8] sm:$0xff]
        %v2277 = vld [vmem:[%s10 + $0xf0] sm:$0xff]
        %v2278 = vld [vmem:[%s10 + $0xf8] sm:$0xff]
        %v2279 = vld [vmem:[%s10 + $0x100] sm:$0xff]
        %v2280 = vld [vmem:[%s10 + $0x108] sm:$0xff]
        %v2281 = vld [vmem:[%s10 + $0x110] sm:$0xff]
        %v2282 = vld [vmem:[%s10 + $0x118] sm:$0xff]
        %v2283 = vld [vmem:[%s10 + $0x120] sm:$0xff]
        %v2284 = vld [vmem:[%s10 + $0x128] sm:$0xff]
        %v2285 = vld [vmem:[%s10 + $0x130] sm:$0xff]
        %v2286 = vld [vmem:[%s10 + $0x138] sm:$0xff]
        %vm2287 = vcmask 261120
        %v2289 = vsel %vm2287, %v2244, 0
        %v2292 = vsel %vm2287, %v2246, 0
        %2294 = vmatpush.msra.mxu0 %v2277
        %2295 = vmatpush.msra.mxu0 %v2275
        %2296 = vmatpush.msra.mxu0 %v2273
        %2297 = vmatpush.msra.mxu0 %v2271
        %2298 = vmatpush.msra.mxu0 %v2269
        %2299 = vmatpush.msra.mxu0 %v2267
        %2300 = vmatpush.msra.mxu0 %v2265
        %2301 = vmatpush.msra.mxu0 %v2263
        %2302 = vmatpush.msra.mxu0 %v2261
        %2303 = vmatpush.msra.mxu0 %v2259
        %2304 = vmatpush.msra.mxu0 %v2257
        %2305 = vmatpush.msra.mxu0 %v2255
        %2306 = vmatpush.msra.mxu0 %v2253
        %2307 = vmatpush.msra.mxu0 %v2251
        %2308 = vmatpush.msra.mxu0 %v2249
        %2309 = vmatpush.msra.mxu0 %v2247
        %2310 = vmatmul.f32.gmra.mxu0 %v2243
        %v2311 = vpop.f32.mrf.mxu0
        %v2312 = vadd.f32 0.0, %v2311
        %2313 = vmatmul.f32.gmra.mxu0 %v2245
        %v2314 = vpop.f32.mrf.mxu0
        %v2315 = vadd.f32 0.0, %v2314
        %2316 = vdwg.mxu0
        %2317 = vmatpush.msra.mxu0 0.0
        %2318 = vmatpush.msra.mxu0 0.0
        %2319 = vmatpush.msra.mxu0 0.0
        %2320 = vmatpush.msra.mxu0 0.0
        %2321 = vmatpush.msra.mxu0 0.0
        %2322 = vmatpush.msra.mxu0 0.0
        %2323 = vmatpush.msra.mxu0 0.0
        %2324 = vmatpush.msra.mxu0 0.0
        %2325 = vmatpush.msra.mxu0 0.0
        %2326 = vmatpush.msra.mxu0 0.0
        %2327 = vmatpush.msra.mxu0 0.0
        %2328 = vmatpush.msra.mxu0 0.0
        %2329 = vmatpush.msra.mxu0 %v2285
        %2330 = vmatpush.msra.mxu0 %v2283
        %2331 = vmatpush.msra.mxu0 %v2281
        %2332 = vmatpush.msra.mxu0 %v2279
        %2333 = vmatmul.f32.gmra.mxu0 %v2289
        %v2334 = vpop.f32.mrf.mxu0
        %v2335 = vadd.f32 %v2312, %v2334
        %2336 = vmatmul.f32.gmra.mxu0 %v2292
        %v2337 = vpop.f32.mrf.mxu0
        %v2338 = vadd.f32 %v2315, %v2337
        %2339 = vdwg.mxu0
        %2340 = vmatpush.msra.mxu0 %v2278
        %2341 = vmatpush.msra.mxu0 %v2276
        %2342 = vmatpush.msra.mxu0 %v2274
        %2343 = vmatpush.msra.mxu0 %v2272
        %2344 = vmatpush.msra.mxu0 %v2270
        %2345 = vmatpush.msra.mxu0 %v2268
        %2346 = vmatpush.msra.mxu0 %v2266
        %2347 = vmatpush.msra.mxu0 %v2264
        %2348 = vmatpush.msra.mxu0 %v2262
        %2349 = vmatpush.msra.mxu0 %v2260
        %2350 = vmatpush.msra.mxu0 %v2258
        %2351 = vmatpush.msra.mxu0 %v2256
        %2352 = vmatpush.msra.mxu0 %v2254
        %2353 = vmatpush.msra.mxu0 %v2252
        %2354 = vmatpush.msra.mxu0 %v2250
        %2355 = vmatpush.msra.mxu0 %v2248
        %2356 = vmatmul.f32.gmra.mxu0 %v2243
        %v2357 = vpop.f32.mrf.mxu0
        %v2358 = vadd.f32 0.0, %v2357
        %2359 = vmatmul.f32.gmra.mxu0 %v2245
        %v2360 = vpop.f32.mrf.mxu0
        %v2361 = vadd.f32 0.0, %v2360
        %2362 = vdwg.mxu0
        %2363 = vmatpush.msra.mxu0 0.0
        %2364 = vmatpush.msra.mxu0 0.0
        %2365 = vmatpush.msra.mxu0 0.0
        %2366 = vmatpush.msra.mxu0 0.0
        %2367 = vmatpush.msra.mxu0 0.0
        %2368 = vmatpush.msra.mxu0 0.0
        %2369 = vmatpush.msra.mxu0 0.0
        %2370 = vmatpush.msra.mxu0 0.0
        %2371 = vmatpush.msra.mxu0 0.0
        %2372 = vmatpush.msra.mxu0 0.0
        %2373 = vmatpush.msra.mxu0 0.0
        %2374 = vmatpush.msra.mxu0 0.0
        %2375 = vmatpush.msra.mxu0 %v2286
        %2376 = vmatpush.msra.mxu0 %v2284
        %2377 = vmatpush.msra.mxu0 %v2282
        %2378 = vmatpush.msra.mxu0 %v2280
        %2379 = vmatmul.f32.gmra.mxu0 %v2289
        %v2380 = vpop.f32.mrf.mxu0
        %v2381 = vadd.f32 %v2358, %v2380
        %2382 = vmatmul.f32.gmra.mxu0 %v2292
        %v2383 = vpop.f32.mrf.mxu0
        %v2384 = vadd.f32 %v2361, %v2383
        %2385 = vdwg.mxu0
        %v2386 = vmax.f32 %v2243, %v2335
        %v2387 = vmax.f32 %v2244, %v2381
        %v2388 = vmax.f32 %v2245, %v2338
        %v2389 = vmax.f32 %v2246, %v2384
        %v2390 = vld [vmem:[%s8] sm:$0x1f]
        %vm2391 = vcmask 80896
        %v2393 = vsel %vm2391, %v2390, 0
        %vm2395 = vcmask 1041408
        %v2397 = vsel %vm2395, %v2388, 0
        %v2400 = vsel %vm2395, %v2389, 0
        %2402 = vmatpush.msra.mxu0 0.0
        %2403 = vmatpush.msra.mxu0 0.0
        %2404 = vmatpush.msra.mxu0 0.0
        %2405 = vmatpush.msra.mxu0 0.0
        %2406 = vmatpush.msra.mxu0 0.0
        %2407 = vmatpush.msra.mxu0 0.0
        %2408 = vmatpush.msra.mxu0 0.0
        %2409 = vmatpush.msra.mxu0 0.0
        %2410 = vmatpush.msra.mxu0 0.0
        %2411 = vmatpush.msra.mxu0 0.0
        %2412 = vmatpush.msra.mxu0 0.0
        %2413 = vmatpush.msra.mxu0 0.0
        %2414 = vmatpush.msra.mxu0 0.0
        %2415 = vmatpush.msra.mxu0 0.0
        %2416 = vmatpush.msra.mxu0 %v2397
        %2417 = vmatpush.msra.mxu0 %v2386
        %2418 = vmatmul.f32.gmra.mxu0 %v2393
        %v2419 = vpop.f32.mrf.mxu0
        %v2420 = vadd.f32 0.0, %v2419
        %2421 = vdwg.mxu0
        %2422 = vmatpush.msra.mxu0 0.0
        %2423 = vmatpush.msra.mxu0 0.0
        %2424 = vmatpush.msra.mxu0 0.0
        %2425 = vmatpush.msra.mxu0 0.0
        %2426 = vmatpush.msra.mxu0 0.0
        %2427 = vmatpush.msra.mxu0 0.0
        %2428 = vmatpush.msra.mxu0 0.0
        %2429 = vmatpush.msra.mxu0 0.0
        %2430 = vmatpush.msra.mxu0 0.0
        %2431 = vmatpush.msra.mxu0 0.0
        %2432 = vmatpush.msra.mxu0 0.0
        %2433 = vmatpush.msra.mxu0 0.0
        %2434 = vmatpush.msra.mxu0 0.0
        %2435 = vmatpush.msra.mxu0 0.0
        %2436 = vmatpush.msra.mxu0 %v2400
        %2437 = vmatpush.msra.mxu0 %v2387
        %2438 = vmatmul.f32.gmra.mxu0 %v2393
        %v2439 = vpop.f32.mrf.mxu0
        %v2440 = vadd.f32 0.0, %v2439
        %2441 = vdwg.mxu0
        %v2442 = vld [vmem:[%s9] sm:$0x1f]
        %v2444 = vsel %vm2391, %v2442, 0
        %2446 = vmatpush.msra.mxu0 0.0
        %2447 = vmatpush.msra.mxu0 0.0
        %2448 = vmatpush.msra.mxu0 0.0
        %2449 = vmatpush.msra.mxu0 0.0
        %2450 = vmatpush.msra.mxu0 0.0
        %2451 = vmatpush.msra.mxu0 0.0
        %2452 = vmatpush.msra.mxu0 0.0
        %2453 = vmatpush.msra.mxu0 0.0
        %2454 = vmatpush.msra.mxu0 0.0
        %2455 = vmatpush.msra.mxu0 0.0
        %2456 = vmatpush.msra.mxu0 0.0
        %2457 = vmatpush.msra.mxu0 0.0
        %2458 = vmatpush.msra.mxu0 0.0
        %2459 = vmatpush.msra.mxu0 0.0
        %2460 = vmatpush.msra.mxu0 %v2397
        %2461 = vmatpush.msra.mxu0 %v2386
        %2462 = vmatmul.f32.gmra.mxu0 %v2444
        %v2463 = vpop.f32.mrf.mxu0
        %v2464 = vadd.f32 0.0, %v2463
        %2465 = vdwg.mxu0
        %2466 = vmatpush.msra.mxu0 0.0
        %2467 = vmatpush.msra.mxu0 0.0
        %2468 = vmatpush.msra.mxu0 0.0
        %2469 = vmatpush.msra.mxu0 0.0
        %2470 = vmatpush.msra.mxu0 0.0
        %2471 = vmatpush.msra.mxu0 0.0
        %2472 = vmatpush.msra.mxu0 0.0
        %2473 = vmatpush.msra.mxu0 0.0
        %2474 = vmatpush.msra.mxu0 0.0
        %2475 = vmatpush.msra.mxu0 0.0
        %2476 = vmatpush.msra.mxu0 0.0
        %2477 = vmatpush.msra.mxu0 0.0
        %2478 = vmatpush.msra.mxu0 0.0
        %2479 = vmatpush.msra.mxu0 0.0
        %2480 = vmatpush.msra.mxu0 %v2400
        %2481 = vmatpush.msra.mxu0 %v2387
        %2482 = vmatmul.f32.gmra.mxu0 %v2444
        %v2483 = vpop.f32.mrf.mxu0
        %v2484 = vadd.f32 0.0, %v2483
        %2485 = vdwg.mxu0
        %v2486 = vmax.f32 %v2420, %v2464
        %v2487 = vmax.f32 %v2440, %v2484
        %2488 = vst [vmem:[#allocation3] sm:$0x1f] %v2486
        %vm2489 = vcmask 258048
        %2490 = vst.msk [vmem:[#allocation3 + $0x8] sm:$0x1f] %vm2489, %v2487
        %v2491 = vld [vmem:[%s12] sm:$0x1]
        %v2492 = vld [vmem:[#allocation3] ss:$8 sm:$0x3]
        %v2493 = vld [vmem:[%s11] sm:$0xff]
        %v2494 = vld [vmem:[%s11 + $0x8] sm:$0xff]
        %v2495 = vld [vmem:[%s11 + $0x10] sm:$0xff]
        %v2496 = vld [vmem:[%s11 + $0x18] sm:$0xff]
        %v2497 = vld [vmem:[%s11 + $0x20] sm:$0xff]
        %v2498 = vld [vmem:[%s11 + $0x28] sm:$0xff]
        %v2499 = vld [vmem:[%s11 + $0x30] sm:$0xff]
        %v2500 = vld [vmem:[%s11 + $0x38] sm:$0xff]
        %v2501 = vld [vmem:[%s11 + $0x40] sm:$0xff]
        %v2502 = vld [vmem:[%s11 + $0x48] sm:$0xff]
        %v2503 = vld [vmem:[%s11 + $0x50] sm:$0xff]
        %v2504 = vld [vmem:[%s11 + $0x58] sm:$0xff]
        %v2505 = vld [vmem:[%s11 + $0x60] sm:$0xff]
        %v2506 = vld [vmem:[%s11 + $0x68] sm:$0xff]
        %v2507 = vld [vmem:[%s11 + $0x70] sm:$0xff]
        %v2508 = vld [vmem:[%s11 + $0x78] sm:$0xff]
        %v2509 = vld [vmem:[%s11 + $0x80] sm:$0xff]
        %v2510 = vld [vmem:[%s11 + $0x88] sm:$0xff]
        %v2511 = vld [vmem:[%s11 + $0x90] sm:$0xff]
        %v2512 = vld [vmem:[%s11 + $0x98] sm:$0xff]
        %v2514 = vperm.slane %v2492, 0
        %v2515 = vperm.slane %v2492, 1
        %v2517 = vsel %vm2287, %v2515, 0
        %2519 = vmatpush.msra.mxu0 %v2508
        %2520 = vmatpush.msra.mxu0 %v2507
        %2521 = vmatpush.msra.mxu0 %v2506
        %2522 = vmatpush.msra.mxu0 %v2505
        %2523 = vmatpush.msra.mxu0 %v2504
        %2524 = vmatpush.msra.mxu0 %v2503
        %2525 = vmatpush.msra.mxu0 %v2502
        %2526 = vmatpush.msra.mxu0 %v2501
        %2527 = vmatpush.msra.mxu0 %v2500
        %2528 = vmatpush.msra.mxu0 %v2499
        %2529 = vmatpush.msra.mxu0 %v2498
        %2530 = vmatpush.msra.mxu0 %v2497
        %2531 = vmatpush.msra.mxu0 %v2496
        %2532 = vmatpush.msra.mxu0 %v2495
        %2533 = vmatpush.msra.mxu0 %v2494
        %2534 = vmatpush.msra.mxu0 %v2493
        %2535 = vmatmul.f32.gmra.mxu0 %v2514
        %v2536 = vpop.f32.mrf.mxu0
        %v2537 = vadd.f32 0.0, %v2536
        %2538 = vdwg.mxu0
        %2539 = vmatpush.msra.mxu0 0.0
        %2540 = vmatpush.msra.mxu0 0.0
        %2541 = vmatpush.msra.mxu0 0.0
        %2542 = vmatpush.msra.mxu0 0.0
        %2543 = vmatpush.msra.mxu0 0.0
        %2544 = vmatpush.msra.mxu0 0.0
        %2545 = vmatpush.msra.mxu0 0.0
        %2546 = vmatpush.msra.mxu0 0.0
        %2547 = vmatpush.msra.mxu0 0.0
        %2548 = vmatpush.msra.mxu0 0.0
        %2549 = vmatpush.msra.mxu0 0.0
        %2550 = vmatpush.msra.mxu0 0.0
        %2551 = vmatpush.msra.mxu0 %v2512
        %2552 = vmatpush.msra.mxu0 %v2511
        %2553 = vmatpush.msra.mxu0 %v2510
        %2554 = vmatpush.msra.mxu0 %v2509
        %2555 = vmatmul.f32.gmra.mxu0 %v2517
        %v2556 = vpop.f32.mrf.mxu0
        %v2557 = vadd.f32 %v2537, %v2556
        %2558 = vdwg.mxu0
        %v2559 = vadd.f32 %v2491, %v2557
        %s2560 = scalar_lea.vmem [#allocation3], 1
        %v2561 = vld [vmem:[%s2560] ss:$8 sm:$0x3]
        %s2562 = scalar_lea.vmem %s11, 160
        %v2563 = vld [vmem:[%s2562] sm:$0xff]
        %v2564 = vld [vmem:[%s2562 + $0x8] sm:$0xff]
        %v2565 = vld [vmem:[%s2562 + $0x10] sm:$0xff]
        %v2566 = vld [vmem:[%s2562 + $0x18] sm:$0xff]
        %v2567 = vld [vmem:[%s2562 + $0x20] sm:$0xff]
        %v2568 = vld [vmem:[%s2562 + $0x28] sm:$0xff]
        %v2569 = vld [vmem:[%s2562 + $0x30] sm:$0xff]
        %v2570 = vld [vmem:[%s2562 + $0x38] sm:$0xff]
        %v2571 = vld [vmem:[%s2562 + $0x40] sm:$0xff]
        %v2572 = vld [vmem:[%s2562 + $0x48] sm:$0xff]
        %v2573 = vld [vmem:[%s2562 + $0x50] sm:$0xff]
        %v2574 = vld [vmem:[%s2562 + $0x58] sm:$0xff]
        %v2575 = vld [vmem:[%s2562 + $0x60] sm:$0xff]
        %v2576 = vld [vmem:[%s2562 + $0x68] sm:$0xff]
        %v2577 = vld [vmem:[%s2562 + $0x70] sm:$0xff]
        %v2578 = vld [vmem:[%s2562 + $0x78] sm:$0xff]
        %v2579 = vld [vmem:[%s2562 + $0x80] sm:$0xff]
        %v2580 = vld [vmem:[%s2562 + $0x88] sm:$0xff]
        %v2581 = vld [vmem:[%s2562 + $0x90] sm:$0xff]
        %v2582 = vld [vmem:[%s2562 + $0x98] sm:$0xff]
        %v2584 = vperm.slane %v2561, 0
        %v2585 = vperm.slane %v2561, 1
        %v2587 = vsel %vm2287, %v2585, 0
        %2589 = vmatpush.msra.mxu0 %v2578
        %2590 = vmatpush.msra.mxu0 %v2577
        %2591 = vmatpush.msra.mxu0 %v2576
        %2592 = vmatpush.msra.mxu0 %v2575
        %2593 = vmatpush.msra.mxu0 %v2574
        %2594 = vmatpush.msra.mxu0 %v2573
        %2595 = vmatpush.msra.mxu0 %v2572
        %2596 = vmatpush.msra.mxu0 %v2571
        %2597 = vmatpush.msra.mxu0 %v2570
        %2598 = vmatpush.msra.mxu0 %v2569
        %2599 = vmatpush.msra.mxu0 %v2568
        %2600 = vmatpush.msra.mxu0 %v2567
        %2601 = vmatpush.msra.mxu0 %v2566
        %2602 = vmatpush.msra.mxu0 %v2565
        %2603 = vmatpush.msra.mxu0 %v2564
        %2604 = vmatpush.msra.mxu0 %v2563
        %2605 = vmatmul.f32.gmra.mxu0 %v2584
        %v2606 = vpop.f32.mrf.mxu0
        %v2607 = vadd.f32 0.0, %v2606
        %2608 = vdwg.mxu0
        %2609 = vmatpush.msra.mxu0 0.0
        %2610 = vmatpush.msra.mxu0 0.0
        %2611 = vmatpush.msra.mxu0 0.0
        %2612 = vmatpush.msra.mxu0 0.0
        %2613 = vmatpush.msra.mxu0 0.0
        %2614 = vmatpush.msra.mxu0 0.0
        %2615 = vmatpush.msra.mxu0 0.0
        %2616 = vmatpush.msra.mxu0 0.0
        %2617 = vmatpush.msra.mxu0 0.0
        %2618 = vmatpush.msra.mxu0 0.0
        %2619 = vmatpush.msra.mxu0 0.0
        %2620 = vmatpush.msra.mxu0 0.0
        %2621 = vmatpush.msra.mxu0 %v2582
        %2622 = vmatpush.msra.mxu0 %v2581
        %2623 = vmatpush.msra.mxu0 %v2580
        %2624 = vmatpush.msra.mxu0 %v2579
        %2625 = vmatmul.f32.gmra.mxu0 %v2587
        %v2626 = vpop.f32.mrf.mxu0
        %v2627 = vadd.f32 %v2607, %v2626
        %2628 = vdwg.mxu0
        %v2629 = vadd.f32 %v2559, %v2627
        %s2630 = scalar_lea.vmem [#allocation3], 2
        %v2631 = vld [vmem:[%s2630] ss:$8 sm:$0x3]
        %s2632 = scalar_lea.vmem %s11, 320
        %v2633 = vld [vmem:[%s2632] sm:$0xff]
        %v2634 = vld [vmem:[%s2632 + $0x8] sm:$0xff]
        %v2635 = vld [vmem:[%s2632 + $0x10] sm:$0xff]
        %v2636 = vld [vmem:[%s2632 + $0x18] sm:$0xff]
        %v2637 = vld [vmem:[%s2632 + $0x20] sm:$0xff]
        %v2638 = vld [vmem:[%s2632 + $0x28] sm:$0xff]
        %v2639 = vld [vmem:[%s2632 + $0x30] sm:$0xff]
        %v2640 = vld [vmem:[%s2632 + $0x38] sm:$0xff]
        %v2641 = vld [vmem:[%s2632 + $0x40] sm:$0xff]
        %v2642 = vld [vmem:[%s2632 + $0x48] sm:$0xff]
        %v2643 = vld [vmem:[%s2632 + $0x50] sm:$0xff]
        %v2644 = vld [vmem:[%s2632 + $0x58] sm:$0xff]
        %v2645 = vld [vmem:[%s2632 + $0x60] sm:$0xff]
        %v2646 = vld [vmem:[%s2632 + $0x68] sm:$0xff]
        %v2647 = vld [vmem:[%s2632 + $0x70] sm:$0xff]
        %v2648 = vld [vmem:[%s2632 + $0x78] sm:$0xff]
        %v2649 = vld [vmem:[%s2632 + $0x80] sm:$0xff]
        %v2650 = vld [vmem:[%s2632 + $0x88] sm:$0xff]
        %v2651 = vld [vmem:[%s2632 + $0x90] sm:$0xff]
        %v2652 = vld [vmem:[%s2632 + $0x98] sm:$0xff]
        %v2654 = vperm.slane %v2631, 0
        %v2655 = vperm.slane %v2631, 1
        %v2657 = vsel %vm2287, %v2655, 0
        %2659 = vmatpush.msra.mxu0 %v2648
        %2660 = vmatpush.msra.mxu0 %v2647
        %2661 = vmatpush.msra.mxu0 %v2646
        %2662 = vmatpush.msra.mxu0 %v2645
        %2663 = vmatpush.msra.mxu0 %v2644
        %2664 = vmatpush.msra.mxu0 %v2643
        %2665 = vmatpush.msra.mxu0 %v2642
        %2666 = vmatpush.msra.mxu0 %v2641
        %2667 = vmatpush.msra.mxu0 %v2640
        %2668 = vmatpush.msra.mxu0 %v2639
        %2669 = vmatpush.msra.mxu0 %v2638
        %2670 = vmatpush.msra.mxu0 %v2637
        %2671 = vmatpush.msra.mxu0 %v2636
        %2672 = vmatpush.msra.mxu0 %v2635
        %2673 = vmatpush.msra.mxu0 %v2634
        %2674 = vmatpush.msra.mxu0 %v2633
        %2675 = vmatmul.f32.gmra.mxu0 %v2654
        %v2676 = vpop.f32.mrf.mxu0
        %v2677 = vadd.f32 0.0, %v2676
        %2678 = vdwg.mxu0
        %2679 = vmatpush.msra.mxu0 0.0
        %2680 = vmatpush.msra.mxu0 0.0
        %2681 = vmatpush.msra.mxu0 0.0
        %2682 = vmatpush.msra.mxu0 0.0
        %2683 = vmatpush.msra.mxu0 0.0
        %2684 = vmatpush.msra.mxu0 0.0
        %2685 = vmatpush.msra.mxu0 0.0
        %2686 = vmatpush.msra.mxu0 0.0
        %2687 = vmatpush.msra.mxu0 0.0
        %2688 = vmatpush.msra.mxu0 0.0
        %2689 = vmatpush.msra.mxu0 0.0
        %2690 = vmatpush.msra.mxu0 0.0
        %2691 = vmatpush.msra.mxu0 %v2652
        %2692 = vmatpush.msra.mxu0 %v2651
        %2693 = vmatpush.msra.mxu0 %v2650
        %2694 = vmatpush.msra.mxu0 %v2649
        %2695 = vmatmul.f32.gmra.mxu0 %v2657
        %v2696 = vpop.f32.mrf.mxu0
        %v2697 = vadd.f32 %v2677, %v2696
        %2698 = vdwg.mxu0
        %v2699 = vadd.f32 %v2629, %v2697
        %s2700 = scalar_lea.vmem [#allocation3], 3
        %v2701 = vld [vmem:[%s2700] ss:$8 sm:$0x3]
        %s2702 = scalar_lea.vmem %s11, 480
        %v2703 = vld [vmem:[%s2702] sm:$0xff]
        %v2704 = vld [vmem:[%s2702 + $0x8] sm:$0xff]
        %v2705 = vld [vmem:[%s2702 + $0x10] sm:$0xff]
        %v2706 = vld [vmem:[%s2702 + $0x18] sm:$0xff]
        %v2707 = vld [vmem:[%s2702 + $0x20] sm:$0xff]
        %v2708 = vld [vmem:[%s2702 + $0x28] sm:$0xff]
        %v2709 = vld [vmem:[%s2702 + $0x30] sm:$0xff]
        %v2710 = vld [vmem:[%s2702 + $0x38] sm:$0xff]
        %v2711 = vld [vmem:[%s2702 + $0x40] sm:$0xff]
        %v2712 = vld [vmem:[%s2702 + $0x48] sm:$0xff]
        %v2713 = vld [vmem:[%s2702 + $0x50] sm:$0xff]
        %v2714 = vld [vmem:[%s2702 + $0x58] sm:$0xff]
        %v2715 = vld [vmem:[%s2702 + $0x60] sm:$0xff]
        %v2716 = vld [vmem:[%s2702 + $0x68] sm:$0xff]
        %v2717 = vld [vmem:[%s2702 + $0x70] sm:$0xff]
        %v2718 = vld [vmem:[%s2702 + $0x78] sm:$0xff]
        %v2719 = vld [vmem:[%s2702 + $0x80] sm:$0xff]
        %v2720 = vld [vmem:[%s2702 + $0x88] sm:$0xff]
        %v2721 = vld [vmem:[%s2702 + $0x90] sm:$0xff]
        %v2722 = vld [vmem:[%s2702 + $0x98] sm:$0xff]
        %v2724 = vperm.slane %v2701, 0
        %v2725 = vperm.slane %v2701, 1
        %v2727 = vsel %vm2287, %v2725, 0
        %2729 = vmatpush.msra.mxu0 %v2718
        %2730 = vmatpush.msra.mxu0 %v2717
        %2731 = vmatpush.msra.mxu0 %v2716
        %2732 = vmatpush.msra.mxu0 %v2715
        %2733 = vmatpush.msra.mxu0 %v2714
        %2734 = vmatpush.msra.mxu0 %v2713
        %2735 = vmatpush.msra.mxu0 %v2712
        %2736 = vmatpush.msra.mxu0 %v2711
        %2737 = vmatpush.msra.mxu0 %v2710
        %2738 = vmatpush.msra.mxu0 %v2709
        %2739 = vmatpush.msra.mxu0 %v2708
        %2740 = vmatpush.msra.mxu0 %v2707
        %2741 = vmatpush.msra.mxu0 %v2706
        %2742 = vmatpush.msra.mxu0 %v2705
        %2743 = vmatpush.msra.mxu0 %v2704
        %2744 = vmatpush.msra.mxu0 %v2703
        %2745 = vmatmul.f32.gmra.mxu0 %v2724
        %v2746 = vpop.f32.mrf.mxu0
        %v2747 = vadd.f32 0.0, %v2746
        %2748 = vdwg.mxu0
        %2749 = vmatpush.msra.mxu0 0.0
        %2750 = vmatpush.msra.mxu0 0.0
        %2751 = vmatpush.msra.mxu0 0.0
        %2752 = vmatpush.msra.mxu0 0.0
        %2753 = vmatpush.msra.mxu0 0.0
        %2754 = vmatpush.msra.mxu0 0.0
        %2755 = vmatpush.msra.mxu0 0.0
        %2756 = vmatpush.msra.mxu0 0.0
        %2757 = vmatpush.msra.mxu0 0.0
        %2758 = vmatpush.msra.mxu0 0.0
        %2759 = vmatpush.msra.mxu0 0.0
        %2760 = vmatpush.msra.mxu0 0.0
        %2761 = vmatpush.msra.mxu0 %v2722
        %2762 = vmatpush.msra.mxu0 %v2721
        %2763 = vmatpush.msra.mxu0 %v2720
        %2764 = vmatpush.msra.mxu0 %v2719
        %2765 = vmatmul.f32.gmra.mxu0 %v2727
        %v2766 = vpop.f32.mrf.mxu0
        %v2767 = vadd.f32 %v2747, %v2766
        %2768 = vdwg.mxu0
        %v2769 = vadd.f32 %v2699, %v2767
        %s2770 = scalar_lea.vmem [#allocation3], 4
        %v2771 = vld [vmem:[%s2770] ss:$8 sm:$0x3]
        %s2772 = scalar_lea.vmem %s11, 640
        %v2773 = vld [vmem:[%s2772] sm:$0xff]
        %v2774 = vld [vmem:[%s2772 + $0x8] sm:$0xff]
        %v2775 = vld [vmem:[%s2772 + $0x10] sm:$0xff]
        %v2776 = vld [vmem:[%s2772 + $0x18] sm:$0xff]
        %v2777 = vld [vmem:[%s2772 + $0x20] sm:$0xff]
        %v2778 = vld [vmem:[%s2772 + $0x28] sm:$0xff]
        %v2779 = vld [vmem:[%s2772 + $0x30] sm:$0xff]
        %v2780 = vld [vmem:[%s2772 + $0x38] sm:$0xff]
        %v2781 = vld [vmem:[%s2772 + $0x40] sm:$0xff]
        %v2782 = vld [vmem:[%s2772 + $0x48] sm:$0xff]
        %v2783 = vld [vmem:[%s2772 + $0x50] sm:$0xff]
        %v2784 = vld [vmem:[%s2772 + $0x58] sm:$0xff]
        %v2785 = vld [vmem:[%s2772 + $0x60] sm:$0xff]
        %v2786 = vld [vmem:[%s2772 + $0x68] sm:$0xff]
        %v2787 = vld [vmem:[%s2772 + $0x70] sm:$0xff]
        %v2788 = vld [vmem:[%s2772 + $0x78] sm:$0xff]
        %v2789 = vld [vmem:[%s2772 + $0x80] sm:$0xff]
        %v2790 = vld [vmem:[%s2772 + $0x88] sm:$0xff]
        %v2791 = vld [vmem:[%s2772 + $0x90] sm:$0xff]
        %v2792 = vld [vmem:[%s2772 + $0x98] sm:$0xff]
        %v2794 = vperm.slane %v2771, 0
        %v2795 = vperm.slane %v2771, 1
        %v2797 = vsel %vm2287, %v2795, 0
        %2799 = vmatpush.msra.mxu0 %v2788
        %2800 = vmatpush.msra.mxu0 %v2787
        %2801 = vmatpush.msra.mxu0 %v2786
        %2802 = vmatpush.msra.mxu0 %v2785
        %2803 = vmatpush.msra.mxu0 %v2784
        %2804 = vmatpush.msra.mxu0 %v2783
        %2805 = vmatpush.msra.mxu0 %v2782
        %2806 = vmatpush.msra.mxu0 %v2781
        %2807 = vmatpush.msra.mxu0 %v2780
        %2808 = vmatpush.msra.mxu0 %v2779
        %2809 = vmatpush.msra.mxu0 %v2778
        %2810 = vmatpush.msra.mxu0 %v2777
        %2811 = vmatpush.msra.mxu0 %v2776
        %2812 = vmatpush.msra.mxu0 %v2775
        %2813 = vmatpush.msra.mxu0 %v2774
        %2814 = vmatpush.msra.mxu0 %v2773
        %2815 = vmatmul.f32.gmra.mxu0 %v2794
        %v2816 = vpop.f32.mrf.mxu0
        %v2817 = vadd.f32 0.0, %v2816
        %2818 = vdwg.mxu0
        %2819 = vmatpush.msra.mxu0 0.0
        %2820 = vmatpush.msra.mxu0 0.0
        %2821 = vmatpush.msra.mxu0 0.0
        %2822 = vmatpush.msra.mxu0 0.0
        %2823 = vmatpush.msra.mxu0 0.0
        %2824 = vmatpush.msra.mxu0 0.0
        %2825 = vmatpush.msra.mxu0 0.0
        %2826 = vmatpush.msra.mxu0 0.0
        %2827 = vmatpush.msra.mxu0 0.0
        %2828 = vmatpush.msra.mxu0 0.0
        %2829 = vmatpush.msra.mxu0 0.0
        %2830 = vmatpush.msra.mxu0 0.0
        %2831 = vmatpush.msra.mxu0 %v2792
        %2832 = vmatpush.msra.mxu0 %v2791
        %2833 = vmatpush.msra.mxu0 %v2790
        %2834 = vmatpush.msra.mxu0 %v2789
        %2835 = vmatmul.f32.gmra.mxu0 %v2797
        %v2836 = vpop.f32.mrf.mxu0
        %v2837 = vadd.f32 %v2817, %v2836
        %2838 = vdwg.mxu0
        %v2839 = vadd.f32 %v2769, %v2837
        %v2840 = vsub.f32 0.0, %v2839
        %v2841 = vmul.f32 %v2840, 1.442695
        %v2842 = vpow.pop %v2841
        %v2843 = vadd.f32 %v2842, 1.0
        %v2844 = vrcp.pop %v2843
        %v2845 = vld [vmem:[%s13] sm:$0xff]
        %v2846 = vld [vmem:[%s13 + $0x8] sm:$0xff]
        %v2847 = vld [vmem:[%s13 + $0x10] sm:$0xff]
        %v2848 = vld [vmem:[%s13 + $0x18] sm:$0xff]
        %v2849 = vld [vmem:[%s13 + $0x20] sm:$0xff]
        %v2850 = vld [vmem:[%s13 + $0x28] sm:$0xff]
        %v2851 = vld [vmem:[%s13 + $0x30] sm:$0xff]
        %v2852 = vld [vmem:[%s13 + $0x38] sm:$0xff]
        %v2853 = vld [vmem:[%s13 + $0x40] sm:$0xff]
        %v2854 = vld [vmem:[%s13 + $0x48] sm:$0xff]
        %v2855 = vld [vmem:[%s13 + $0x50] sm:$0xff]
        %v2856 = vld [vmem:[%s13 + $0x58] sm:$0xff]
        %v2857 = vld [vmem:[%s13 + $0x60] sm:$0xff]
        %v2858 = vld [vmem:[%s13 + $0x68] sm:$0xff]
        %v2859 = vld [vmem:[%s13 + $0x70] sm:$0xff]
        %v2860 = vld [vmem:[%s13 + $0x78] sm:$0xff]
        %v2861 = vld [vmem:[%s14] sm:$0x1]
        %2862 = vmatpush.msra.mxu0 %v2860
        %2863 = vmatpush.msra.mxu0 %v2859
        %2864 = vmatpush.msra.mxu0 %v2858
        %2865 = vmatpush.msra.mxu0 %v2857
        %2866 = vmatpush.msra.mxu0 %v2856
        %2867 = vmatpush.msra.mxu0 %v2855
        %2868 = vmatpush.msra.mxu0 %v2854
        %2869 = vmatpush.msra.mxu0 %v2853
        %2870 = vmatpush.msra.mxu0 %v2852
        %2871 = vmatpush.msra.mxu0 %v2851
        %2872 = vmatpush.msra.mxu0 %v2850
        %2873 = vmatpush.msra.mxu0 %v2849
        %2874 = vmatpush.msra.mxu0 %v2848
        %2875 = vmatpush.msra.mxu0 %v2847
        %2876 = vmatpush.msra.mxu0 %v2846
        %2877 = vmatpush.msra.mxu0 %v2845
        %2878 = vmatmul.f32.gmra.mxu0 %v2844
        %v2879 = vpop.f32.mrf.mxu0
        %v2880 = vadd.f32 %v2861, %v2879
        %2881 = vdwg.mxu0
        %v2882 = vsub.f32 0.0, %v2880
        %v2883 = vmul.f32 %v2882, 1.442695
        %v2884 = vpow.pop %v2883
        %v2885 = vadd.f32 %v2884, 1.0
        %v2886 = vrcp.pop %v2885
        %v2887 = vld [vmem:[%s15] sm:$0xff]
        %v2888 = vld [vmem:[%s15 + $0x8] sm:$0xff]
        %v2889 = vld [vmem:[%s15 + $0x10] sm:$0xff]
        %v2890 = vld [vmem:[%s15 + $0x18] sm:$0xff]
        %v2891 = vld [vmem:[%s15 + $0x20] sm:$0xff]
        %v2892 = vld [vmem:[%s15 + $0x28] sm:$0xff]
        %v2893 = vld [vmem:[%s15 + $0x30] sm:$0xff]
        %v2894 = vld [vmem:[%s15 + $0x38] sm:$0xff]
        %v2895 = vld [vmem:[%s15 + $0x40] sm:$0xff]
        %v2896 = vld [vmem:[%s15 + $0x48] sm:$0xff]
        %v2897 = vld [vmem:[%s15 + $0x50] sm:$0xff]
        %v2898 = vld [vmem:[%s15 + $0x58] sm:$0xff]
        %v2899 = vld [vmem:[%s15 + $0x60] sm:$0xff]
        %v2900 = vld [vmem:[%s15 + $0x68] sm:$0xff]
        %v2901 = vld [vmem:[%s15 + $0x70] sm:$0xff]
        %v2902 = vld [vmem:[%s15 + $0x78] sm:$0xff]
        %v2903 = vld [vmem:[%s16] sm:$0x1]
        %2904 = vmatpush.msra.mxu0 %v2902
        %2905 = vmatpush.msra.mxu0 %v2901
        %2906 = vmatpush.msra.mxu0 %v2900
        %2907 = vmatpush.msra.mxu0 %v2899
        %2908 = vmatpush.msra.mxu0 %v2898
        %2909 = vmatpush.msra.mxu0 %v2897
        %2910 = vmatpush.msra.mxu0 %v2896
        %2911 = vmatpush.msra.mxu0 %v2895
        %2912 = vmatpush.msra.mxu0 %v2894
        %2913 = vmatpush.msra.mxu0 %v2893
        %2914 = vmatpush.msra.mxu0 %v2892
        %2915 = vmatpush.msra.mxu0 %v2891
        %2916 = vmatpush.msra.mxu0 %v2890
        %2917 = vmatpush.msra.mxu0 %v2889
        %2918 = vmatpush.msra.mxu0 %v2888
        %2919 = vmatpush.msra.mxu0 %v2887
        %2920 = vmatmul.f32.gmra.mxu0 %v2886
        %v2921 = vpop.f32.mrf.mxu0
        %v2922 = vadd.f32 %v2903, %v2921
        %2923 = vdwg.mxu0
        %2924 = vst [vmem:[%s540] sm:$0x1] %v2922
        %s2925 = sand.u32 %s401, 1
        %s2926 = scalar_lea.sflag [#allocation5], %s2925
        %s2927 = sand.u32 %s401, 1
        %s2928 = scalar_lea.vmem [#allocation4], %s2927
        // Predicated region
        $region89: #{net_forward.1} parent=87 // pred_check
          %p2929 = pneg %p411
        $region90: #{net_forward.1} parent=87 // pred_check_branch
          %2931 = sbr.rel (%p2929) target = $region92
        $region91: #{net_forward.1} parent=87 // pred_region
          %2933 = vsyncadd %s2926, 0
          %s2934 = scalar_lea.hbm %s17, %s31
          %s2936 = sshll.u32 %s2928, 4
          %s2937 = int_to_ptr.vmem [resolvable:$true] %s2936
          %s2938 = sshll.u32 %s2934, 4
          %s2939 = int_to_ptr.hbm [resolvable:$true] %s2938
          %2941 = dma.vmem_to_hbm [thread:$0]  %s2937, 16, %s2939, %s2926
        $region92: #{net_forward.1} parent=87 // pred_fallthru
          _
      $region88: #{net_forward.1} parent=5 // pred_fallthru
        _
      %p2942 = scmp.le.s32.totalorder 2, %s26
      // Predicated region
      $region93: #{net_forward.1} parent=5 // pred_check
        %p2943 = pneg %p2942
      $region94: #{net_forward.1} parent=5 // pred_check_branch
        %2945 = sbr.rel (%p2943) target = $region96
      $region95: #{net_forward.1} parent=5 // pred_region
        %s2946 = ssub.s32 %s26, 2
        // Predicated region
        $region97: #{net_forward.1} parent=95 // pred_check
          %p2947 = pneg %p417
        $region98: #{net_forward.1} parent=95 // pred_check_branch
          %2949 = sbr.rel (%p2947) target = $region100
        $region99: #{net_forward.1} parent=95 // pred_region
          %s2950 = sand.u32 %s402, 1
          %s2951 = scalar_lea.sflag [#allocation5], %s2950
          %s2952 = sand.u32 %s402, 1
          %s2953 = scalar_lea.vmem [#allocation4], %s2952
          %2955 = dma.done %s2951, 16
        $region100: #{net_forward.1} parent=95 // pred_fallthru
          _
      $region96: #{net_forward.1} parent=5 // pred_fallthru
        _
    $region6: #{net_forward.1} parent=1 // loop_footer
      %s30 = sadd.s32 1, %s26
    $region7: #{net_forward.1} parent=1 // loop_footer_branch
      %25 = sbr.rel target = $region3
    $region8: #{net_forward.1} parent=1 // loop_exit
      _
    %2956 = vsyncpa [#allocation5], 1
    %s2957 = scalar_lea.sflag [#allocation5], 1
    %2958 = vsyncpa %s2957, 1

</llo_original>
